<compile_context>
chip_gen: v7x
topology: tpu7x:2x2x1
jax: 0.10.0
libtpu: 0.0.40
codegen_flags: <defaults>
</compile_context>

<pallas_src>
import functools

import jax
import jax.numpy as jnp
from jax.experimental import pallas as pl
from jax.experimental.pallas import tpu as pltpu


# ----------------------------------------------------------------------------
# Single fused kernel: L-layer GRU over the sequence + Linear + log_softmax.
# ----------------------------------------------------------------------------
def _decoder_kernel(x_ref, h0_ref, wih_ref, whh_ref, bih_ref, bhh_ref,
                    wout_ref, bout_ref,
                    out_ref, hid_ref,
                    *, seq_len, batch, n_layers):
    S, B, L = seq_len, batch, n_layers
    H = h0_ref.shape[-1]

    # Hoist all weight / bias loads out of the unrolled time loop (JAX does not CSE them).
    wih = [wih_ref[l] for l in range(L)]       # each (H, 3H)
    whh = [whh_ref[l] for l in range(L)]       # each (H, 3H)
    bih = [bih_ref[l] for l in range(L)]       # each (1, 3H)
    bhh = [bhh_ref[l] for l in range(L)]       # each (1, 3H)

    # --- Hoisted layer-0 input projection: ONE (S*B, H) @ (H, 3H) matmul off the serial
    #     path, replacing S separate projections inside the recurrence.
    x_all = x_ref[...]                                              # (S*B, H) f32
    gi0 = jnp.dot(x_all, wih[0], preferred_element_type=jnp.float32) + bih[0]
    gi0_r = gi0[:, 0 * H:1 * H]                                     # (S*B, H)
    gi0_z = gi0[:, 1 * H:2 * H]
    gi0_n = gi0[:, 2 * H:3 * H]

    # Hidden states kept as live values for the whole recurrence (no HBM round-trips).
    h = [h0_ref[l] for l in range(L)]

    # TODO(synk): S is small & static here, so the time loop is fully unrolled; for long
    # sequences switch to lax.fori_loop with scratch-carried hidden state.
    y_rows = []
    for t in range(S):
        xin = None
        for l in range(L):
            if l == 0:
                i_r = gi0_r[t * B:(t + 1) * B]
                i_z = gi0_z[t * B:(t + 1) * B]
                i_n = gi0_n[t * B:(t + 1) * B]
            else:
                # Single fused input-projection matmul for all 3 gates of this layer.
                gi = jnp.dot(xin, wih[l], preferred_element_type=jnp.float32) + bih[l]
                i_r = gi[:, 0 * H:1 * H]
                i_z = gi[:, 1 * H:2 * H]
                i_n = gi[:, 2 * H:3 * H]

            # Single fused hidden-projection matmul for all 3 gates (1 MXU push vs 3).
            gh = jnp.dot(h[l], whh[l], preferred_element_type=jnp.float32) + bhh[l]
            h_r = gh[:, 0 * H:1 * H]
            h_z = gh[:, 1 * H:2 * H]
            h_n = gh[:, 2 * H:3 * H]

            r = jax.nn.sigmoid(i_r + h_r)
            z = jax.nn.sigmoid(i_z + h_z)
            n = jnp.tanh(i_n + r * h_n)
            h[l] = (1.0 - z) * n + z * h[l]
            xin = h[l]

        # Only batch element 0 feeds the head (`output[0]` in the PyTorch code);
        # keep it as a value (no scratch round-trip / masked partial stores).
        y_rows.append(xin[0:1, :])

    # Final hidden states: one store per layer at the end (not per time step).
    for l in range(L):
        hid_ref[l] = h[l].astype(hid_ref.dtype)

    # Fused Linear + log_softmax head on the (S, H) batch-0 slab -> single (S, O) store.
    y0 = jnp.concatenate(y_rows, axis=0)                            # (S, H)
    logits = jnp.dot(y0, wout_ref[...],
                     preferred_element_type=jnp.float32) + bout_ref[...]
    m = jnp.max(logits, axis=1, keepdims=True)
    s = logits - m
    lse = jnp.log(jnp.sum(jnp.exp(s), axis=1, keepdims=True))
    out_ref[...] = (s - lse).astype(out_ref.dtype)


# ----------------------------------------------------------------------------
# Decoder wrapper (parameter setup + glue in plain JAX, all compute in one kernel).
# ----------------------------------------------------------------------------
class PallasDecoder:
    def __init__(self, hidden_size, output_size, dropout_p, n_layers=2, key=None):
        assert hidden_size == output_size, (
            "PyTorch module only type-checks when hidden_size == output_size")
        self.hidden_size = hidden_size
        self.output_size = output_size
        self.dropout_p = dropout_p            # unused at inference
        self.n_layers = n_layers

        key = jax.random.PRNGKey(0) if key is None else key
        ks = list(jax.random.split(key, 4 * n_layers + 2))
        H = output_size
        stdv = 1.0 / (H ** 0.5)

        # Torch-layout parameters (kept for the pure-JAX reference check).
        self.gru_params = []
        for l in range(n_layers):
            in_dim = hidden_size if l == 0 else output_size   # == H in both cases
            w_ih = jax.random.uniform(ks[4 * l + 0], (3 * H, in_dim),
                                      minval=-stdv, maxval=stdv, dtype=jnp.float32)
            w_hh = jax.random.uniform(ks[4 * l + 1], (3 * H, H),
                                      minval=-stdv, maxval=stdv, dtype=jnp.float32)
            b_ih = jax.random.uniform(ks[4 * l + 2], (3 * H,),
                                      minval=-stdv, maxval=stdv, dtype=jnp.float32)
            b_hh = jax.random.uniform(ks[4 * l + 3], (3 * H,),
                                      minval=-stdv, maxval=stdv, dtype=jnp.float32)
            self.gru_params.append((w_ih, w_hh, b_ih, b_hh))

        stdv_o = 1.0 / (hidden_size ** 0.5)
        self.w_out = jax.random.uniform(ks[-2], (output_size, hidden_size),
                                        minval=-stdv_o, maxval=stdv_o, dtype=jnp.float32)
        self.b_out = jax.random.uniform(ks[-1], (output_size,),
                                        minval=-stdv_o, maxval=stdv_o, dtype=jnp.float32)

        # Kernel-layout parameters: transposed + gate-concatenated ONCE here.
        # W.T has shape (H, 3H) with columns ordered [r | z | n] (PyTorch gate order).
        wih_list, whh_list, bih_list, bhh_list = [], [], [], []
        for (w_ih, w_hh, b_ih, b_hh) in self.gru_params:
            wih_list.append(jnp.transpose(w_ih))          # (H, 3H)
            whh_list.append(jnp.transpose(w_hh))          # (H, 3H)
            bih_list.append(b_ih.reshape(1, 3 * H))       # (1, 3H)
            bhh_list.append(b_hh.reshape(1, 3 * H))       # (1, 3H)
        self.wih_stack = jnp.stack(wih_list, axis=0)      # (L, H, 3H)
        self.whh_stack = jnp.stack(whh_list, axis=0)      # (L, H, 3H)
        self.bih_stack = jnp.stack(bih_list, axis=0)      # (L, 1, 3H)
        self.bhh_stack = jnp.stack(bhh_list, axis=0)      # (L, 1, 3H)
        self.wout_t = jnp.transpose(self.w_out)           # (H, O)
        self.bout_2d = self.b_out.reshape(1, output_size)  # (1, O)

    def __call__(self, x, hidden, attn_weights):
        # x: (B, S, hidden_size) batch_first; hidden: (n_layers, B, output_size)
        B, S, H = x.shape
        O = self.output_size
        L = self.n_layers
        x_tm = jnp.transpose(x, (1, 0, 2)).reshape(S * B, H)   # time-major, flat rows

        kernel = functools.partial(_decoder_kernel,
                                   seq_len=S, batch=B, n_layers=L)

        out, hid = pl.pallas_call(
            kernel,
            out_shape=(jax.ShapeDtypeStruct((S, O), jnp.float32),
                       jax.ShapeDtypeStruct((L, B, H), jnp.float32)),
            grid_spec=pltpu.PrefetchScalarGridSpec(
                num_scalar_prefetch=0,
                grid=(1,),
                in_specs=[
                    pl.BlockSpec((S * B, H), lambda i: (0, 0)),
                    pl.BlockSpec((L, B, H), lambda i: (0, 0, 0)),
                    pl.BlockSpec((L, H, 3 * H), lambda i: (0, 0, 0)),
                    pl.BlockSpec((L, H, 3 * H), lambda i: (0, 0, 0)),
                    pl.BlockSpec((L, 1, 3 * H), lambda i: (0, 0, 0)),
                    pl.BlockSpec((L, 1, 3 * H), lambda i: (0, 0, 0)),
                    pl.BlockSpec((H, O), lambda i: (0, 0)),
                    pl.BlockSpec((1, O), lambda i: (0, 0)),
                ],
                out_specs=(
                    pl.BlockSpec((S, O), lambda i: (0, 0)),
                    pl.BlockSpec((L, B, H), lambda i: (0, 0, 0)),
                ),
            ),
            compiler_params=pltpu.CompilerParams(
                dimension_semantics=("arbitrary",)),
        )(x_tm, hidden, self.wih_stack, self.whh_stack,
          self.bih_stack, self.bhh_stack, self.wout_t, self.bout_2d)

        return out, hid, attn_weights


# ----------------------------------------------------------------------------
# Pure-JAX reference (correctness check).
# ----------------------------------------------------------------------------
def _ref_gru_layer(x_tm, h0, w_ih, w_hh, b_ih, b_hh):
    H = h0.shape[-1]

    def step(h, x_t):
        gi = x_t @ w_ih.T + b_ih
        gh = h @ w_hh.T + b_hh
        r = jax.nn.sigmoid(gi[:, :H] + gh[:, :H])
        z = jax.nn.sigmoid(gi[:, H:2 * H] + gh[:, H:2 * H])
        n = jnp.tanh(gi[:, 2 * H:] + r * gh[:, 2 * H:])
        h_new = (1.0 - z) * n + z * h
        return h_new, h_new

    hT, ys = jax.lax.scan(step, h0, x_tm)
    return ys, hT


def _ref_decoder(dec, x, hidden, attn_weights):
    x_tm = jnp.transpose(x, (1, 0, 2))
    cur = x_tm
    h_finals = []
    for l in range(dec.n_layers):
        cur, hT = _ref_gru_layer(cur, hidden[l], *dec.gru_params[l])
        h_finals.append(hT)
    hidden_out = jnp.stack(h_finals, axis=0)
    out0 = cur[:, 0, :]
    logits = out0 @ dec.w_out.T + dec.b_out
    return jax.nn.log_softmax(logits, axis=1), hidden_out, attn_weights


if __name__ == "__main__":
    B, S = 2, 8
    hidden_size = 32
    output_size = 32
    n_layers = 2

    key = jax.random.PRNGKey(0)
    k_x, k_h, k_a, k_p = jax.random.split(key, 4)
    x = jax.random.normal(k_x, (B, S, hidden_size), dtype=jnp.float32)
    h0 = jax.random.normal(k_h, (n_layers, B, output_size), dtype=jnp.float32)
    attn_weights = jax.random.normal(k_a, (B, S, S), dtype=jnp.float32)

    decoder = PallasDecoder(hidden_size, output_size, dropout_p=0.1,
                            n_layers=n_layers, key=k_p)

    out, hid, attn = decoder(x, h0, attn_weights)
    jax.block_until_ready((out, hid, attn))

    ref_out, ref_hid, ref_attn = _ref_decoder(decoder, x, h0, attn_weights)
    assert out.shape == (S, output_size)
    assert hid.shape == (n_layers, B, output_size)
    assert jnp.allclose(out, ref_out, rtol=1e-4, atol=1e-4)
    assert jnp.allclose(hid, ref_hid, rtol=1e-4, atol=1e-4)
    assert jnp.allclose(attn, ref_attn)

    print("KERNEL_OK")
</pallas_src>

<mosaic_0001>
module attributes {stable_mosaic.version = 11 : i64} {
  func.func @_decoder_kernel(%arg0: i32, %arg1: memref<16x32xf32, #tpu.memory_space<vmem>>, %arg2: memref<2x2x32xf32, #tpu.memory_space<vmem>>, %arg3: memref<2x32x96xf32, #tpu.memory_space<vmem>>, %arg4: memref<2x32x96xf32, #tpu.memory_space<vmem>>, %arg5: memref<2x1x96xf32, #tpu.memory_space<vmem>>, %arg6: memref<2x1x96xf32, #tpu.memory_space<vmem>>, %arg7: memref<32x32xf32, #tpu.memory_space<vmem>>, %arg8: memref<1x32xf32, #tpu.memory_space<vmem>>, %arg9: memref<8x32xf32, #tpu.memory_space<vmem>>, %arg10: memref<2x2x32xf32, #tpu.memory_space<vmem>>) attributes {dimension_semantics = [#tpu.dimension_semantics<arbitrary>], iteration_bounds = array<i64: 1>, scalar_prefetch = 0 : i64, scratch_operands = 0 : i64, tpu.core_type = #tpu.core_type<tc>, window_params = [{pipeline_mode = #tpu.pipeline_mode<synchronous>, transform_indices = @transform_0, window_bounds = array<i64: 16, 32>}, {pipeline_mode = #tpu.pipeline_mode<synchronous>, transform_indices = @transform_1, window_bounds = array<i64: 2, 2, 32>}, {pipeline_mode = #tpu.pipeline_mode<synchronous>, transform_indices = @transform_2, window_bounds = array<i64: 2, 32, 96>}, {pipeline_mode = #tpu.pipeline_mode<synchronous>, transform_indices = @transform_3, window_bounds = array<i64: 2, 32, 96>}, {pipeline_mode = #tpu.pipeline_mode<synchronous>, transform_indices = @transform_4, window_bounds = array<i64: 2, 1, 96>}, {pipeline_mode = #tpu.pipeline_mode<synchronous>, transform_indices = @transform_5, window_bounds = array<i64: 2, 1, 96>}, {pipeline_mode = #tpu.pipeline_mode<synchronous>, transform_indices = @transform_6, window_bounds = array<i64: 32, 32>}, {pipeline_mode = #tpu.pipeline_mode<synchronous>, transform_indices = @transform_7, window_bounds = array<i64: 1, 32>}, {pipeline_mode = #tpu.pipeline_mode<synchronous>, transform_indices = @transform_8, window_bounds = array<i64: 8, 32>}, {pipeline_mode = #tpu.pipeline_mode<synchronous>, transform_indices = @transform_9, window_bounds = array<i64: 2, 2, 32>}]} {
    %c0 = arith.constant 0 : index
    %c0_0 = arith.constant 0 : index
    %c0_1 = arith.constant 0 : index
    %0 = vector.load %arg3[%c0, %c0_0, %c0_1] : memref<2x32x96xf32, #tpu.memory_space<vmem>>, vector<1x32x96xf32>
    %1 = vector.shape_cast %0 : vector<1x32x96xf32> to vector<32x96xf32>
    %c1 = arith.constant 1 : index
    %c0_2 = arith.constant 0 : index
    %c0_3 = arith.constant 0 : index
    %2 = vector.load %arg3[%c1, %c0_2, %c0_3] : memref<2x32x96xf32, #tpu.memory_space<vmem>>, vector<1x32x96xf32>
    %3 = vector.shape_cast %2 : vector<1x32x96xf32> to vector<32x96xf32>
    %c0_4 = arith.constant 0 : index
    %c0_5 = arith.constant 0 : index
    %c0_6 = arith.constant 0 : index
    %4 = vector.load %arg4[%c0_4, %c0_5, %c0_6] : memref<2x32x96xf32, #tpu.memory_space<vmem>>, vector<1x32x96xf32>
    %5 = vector.shape_cast %4 : vector<1x32x96xf32> to vector<32x96xf32>
    %c1_7 = arith.constant 1 : index
    %c0_8 = arith.constant 0 : index
    %c0_9 = arith.constant 0 : index
    %6 = vector.load %arg4[%c1_7, %c0_8, %c0_9] : memref<2x32x96xf32, #tpu.memory_space<vmem>>, vector<1x32x96xf32>
    %7 = vector.shape_cast %6 : vector<1x32x96xf32> to vector<32x96xf32>
    %c0_10 = arith.constant 0 : index
    %c0_11 = arith.constant 0 : index
    %c0_12 = arith.constant 0 : index
    %8 = vector.load %arg5[%c0_10, %c0_11, %c0_12] : memref<2x1x96xf32, #tpu.memory_space<vmem>>, vector<1x1x96xf32>
    %9 = vector.shape_cast %8 : vector<1x1x96xf32> to vector<1x96xf32>
    %c1_13 = arith.constant 1 : index
    %c0_14 = arith.constant 0 : index
    %c0_15 = arith.constant 0 : index
    %10 = vector.load %arg5[%c1_13, %c0_14, %c0_15] : memref<2x1x96xf32, #tpu.memory_space<vmem>>, vector<1x1x96xf32>
    %11 = vector.shape_cast %10 : vector<1x1x96xf32> to vector<1x96xf32>
    %c0_16 = arith.constant 0 : index
    %c0_17 = arith.constant 0 : index
    %c0_18 = arith.constant 0 : index
    %12 = vector.load %arg6[%c0_16, %c0_17, %c0_18] : memref<2x1x96xf32, #tpu.memory_space<vmem>>, vector<1x1x96xf32>
    %13 = vector.shape_cast %12 : vector<1x1x96xf32> to vector<1x96xf32>
    %c1_19 = arith.constant 1 : index
    %c0_20 = arith.constant 0 : index
    %c0_21 = arith.constant 0 : index
    %14 = vector.load %arg6[%c1_19, %c0_20, %c0_21] : memref<2x1x96xf32, #tpu.memory_space<vmem>>, vector<1x1x96xf32>
    %15 = vector.shape_cast %14 : vector<1x1x96xf32> to vector<1x96xf32>
    %c0_22 = arith.constant 0 : index
    %c0_23 = arith.constant 0 : index
    %16 = vector.load %arg1[%c0_22, %c0_23] : memref<16x32xf32, #tpu.memory_space<vmem>>, vector<16x32xf32>
    %cst = arith.constant dense<0.000000e+00> : vector<16x96xf32>
    %17 = tpu.matmul %16, %1, %cst {dimension_numbers = #tpu.dot_dimension_numbers<[1], [0], [0], [1], [0, 0, 1, 1], [], []>} : vector<16x32xf32>, vector<32x96xf32>, vector<16x96xf32> -> vector<16x96xf32>
    %18 = vector.broadcast %9 : vector<1x96xf32> to vector<16x96xf32>
    %19 = arith.addf %17, %18 : vector<16x96xf32>
    %20 = vector.extract_strided_slice %19 {offsets = [0, 0], sizes = [16, 32], strides = [1, 1]} : vector<16x96xf32> to vector<16x32xf32>
    %21 = vector.extract_strided_slice %19 {offsets = [0, 32], sizes = [16, 32], strides = [1, 1]} : vector<16x96xf32> to vector<16x32xf32>
    %22 = vector.extract_strided_slice %19 {offsets = [0, 64], sizes = [16, 32], strides = [1, 1]} : vector<16x96xf32> to vector<16x32xf32>
    %c0_24 = arith.constant 0 : index
    %c0_25 = arith.constant 0 : index
    %c0_26 = arith.constant 0 : index
    %23 = vector.load %arg2[%c0_24, %c0_25, %c0_26] : memref<2x2x32xf32, #tpu.memory_space<vmem>>, vector<1x2x32xf32>
    %24 = vector.shape_cast %23 : vector<1x2x32xf32> to vector<2x32xf32>
    %c1_27 = arith.constant 1 : index
    %c0_28 = arith.constant 0 : index
    %c0_29 = arith.constant 0 : index
    %25 = vector.load %arg2[%c1_27, %c0_28, %c0_29] : memref<2x2x32xf32, #tpu.memory_space<vmem>>, vector<1x2x32xf32>
    %26 = vector.shape_cast %25 : vector<1x2x32xf32> to vector<2x32xf32>
    %27 = vector.extract_strided_slice %20 {offsets = [0, 0], sizes = [2, 32], strides = [1, 1]} : vector<16x32xf32> to vector<2x32xf32>
    %28 = vector.extract_strided_slice %21 {offsets = [0, 0], sizes = [2, 32], strides = [1, 1]} : vector<16x32xf32> to vector<2x32xf32>
    %29 = vector.extract_strided_slice %22 {offsets = [0, 0], sizes = [2, 32], strides = [1, 1]} : vector<16x32xf32> to vector<2x32xf32>
    %cst_30 = arith.constant dense<0.000000e+00> : vector<2x96xf32>
    %30 = tpu.matmul %24, %5, %cst_30 {dimension_numbers = #tpu.dot_dimension_numbers<[1], [0], [0], [1], [0, 0, 1, 1], [], []>} : vector<2x32xf32>, vector<32x96xf32>, vector<2x96xf32> -> vector<2x96xf32>
    %31 = vector.broadcast %13 : vector<1x96xf32> to vector<2x96xf32>
    %32 = arith.addf %30, %31 : vector<2x96xf32>
    %33 = vector.extract_strided_slice %32 {offsets = [0, 0], sizes = [2, 32], strides = [1, 1]} : vector<2x96xf32> to vector<2x32xf32>
    %34 = vector.extract_strided_slice %32 {offsets = [0, 32], sizes = [2, 32], strides = [1, 1]} : vector<2x96xf32> to vector<2x32xf32>
    %35 = vector.extract_strided_slice %32 {offsets = [0, 64], sizes = [2, 32], strides = [1, 1]} : vector<2x96xf32> to vector<2x32xf32>
    %36 = arith.addf %27, %33 : vector<2x32xf32>
    %37 = arith.negf %36 : vector<2x32xf32>
    %38 = math.exp %37 : vector<2x32xf32>
    %cst_31 = arith.constant 1.000000e+00 : f32
    %39 = vector.broadcast %cst_31 : f32 to vector<2x32xf32>
    %40 = arith.addf %39, %38 : vector<2x32xf32>
    %41 = arith.divf %39, %40 : vector<2x32xf32>
    %42 = arith.addf %28, %34 : vector<2x32xf32>
    %43 = arith.negf %42 : vector<2x32xf32>
    %44 = math.exp %43 : vector<2x32xf32>
    %cst_32 = arith.constant 1.000000e+00 : f32
    %45 = vector.broadcast %cst_32 : f32 to vector<2x32xf32>
    %46 = arith.addf %45, %44 : vector<2x32xf32>
    %47 = arith.divf %45, %46 : vector<2x32xf32>
    %48 = arith.mulf %41, %35 : vector<2x32xf32>
    %49 = arith.addf %29, %48 : vector<2x32xf32>
    %50 = math.tanh %49 : vector<2x32xf32>
    %cst_33 = arith.constant 1.000000e+00 : f32
    %51 = vector.broadcast %cst_33 : f32 to vector<2x32xf32>
    %52 = arith.subf %51, %47 : vector<2x32xf32>
    %53 = arith.mulf %52, %50 : vector<2x32xf32>
    %54 = arith.mulf %47, %24 : vector<2x32xf32>
    %55 = arith.addf %53, %54 : vector<2x32xf32>
    %cst_34 = arith.constant dense<0.000000e+00> : vector<2x96xf32>
    %56 = tpu.matmul %55, %3, %cst_34 {dimension_numbers = #tpu.dot_dimension_numbers<[1], [0], [0], [1], [0, 0, 1, 1], [], []>} : vector<2x32xf32>, vector<32x96xf32>, vector<2x96xf32> -> vector<2x96xf32>
    %57 = vector.broadcast %11 : vector<1x96xf32> to vector<2x96xf32>
    %58 = arith.addf %56, %57 : vector<2x96xf32>
    %59 = vector.extract_strided_slice %58 {offsets = [0, 0], sizes = [2, 32], strides = [1, 1]} : vector<2x96xf32> to vector<2x32xf32>
    %60 = vector.extract_strided_slice %58 {offsets = [0, 32], sizes = [2, 32], strides = [1, 1]} : vector<2x96xf32> to vector<2x32xf32>
    %61 = vector.extract_strided_slice %58 {offsets = [0, 64], sizes = [2, 32], strides = [1, 1]} : vector<2x96xf32> to vector<2x32xf32>
    %cst_35 = arith.constant dense<0.000000e+00> : vector<2x96xf32>
    %62 = tpu.matmul %26, %7, %cst_35 {dimension_numbers = #tpu.dot_dimension_numbers<[1], [0], [0], [1], [0, 0, 1, 1], [], []>} : vector<2x32xf32>, vector<32x96xf32>, vector<2x96xf32> -> vector<2x96xf32>
    %63 = vector.broadcast %15 : vector<1x96xf32> to vector<2x96xf32>
    %64 = arith.addf %62, %63 : vector<2x96xf32>
    %65 = vector.extract_strided_slice %64 {offsets = [0, 0], sizes = [2, 32], strides = [1, 1]} : vector<2x96xf32> to vector<2x32xf32>
    %66 = vector.extract_strided_slice %64 {offsets = [0, 32], sizes = [2, 32], strides = [1, 1]} : vector<2x96xf32> to vector<2x32xf32>
    %67 = vector.extract_strided_slice %64 {offsets = [0, 64], sizes = [2, 32], strides = [1, 1]} : vector<2x96xf32> to vector<2x32xf32>
    %68 = arith.addf %59, %65 : vector<2x32xf32>
    %69 = arith.negf %68 : vector<2x32xf32>
    %70 = math.exp %69 : vector<2x32xf32>
    %cst_36 = arith.constant 1.000000e+00 : f32
    %71 = vector.broadcast %cst_36 : f32 to vector<2x32xf32>
    %72 = arith.addf %71, %70 : vector<2x32xf32>
    %73 = arith.divf %71, %72 : vector<2x32xf32>
    %74 = arith.addf %60, %66 : vector<2x32xf32>
    %75 = arith.negf %74 : vector<2x32xf32>
    %76 = math.exp %75 : vector<2x32xf32>
    %cst_37 = arith.constant 1.000000e+00 : f32
    %77 = vector.broadcast %cst_37 : f32 to vector<2x32xf32>
    %78 = arith.addf %77, %76 : vector<2x32xf32>
    %79 = arith.divf %77, %78 : vector<2x32xf32>
    %80 = arith.mulf %73, %67 : vector<2x32xf32>
    %81 = arith.addf %61, %80 : vector<2x32xf32>
    %82 = math.tanh %81 : vector<2x32xf32>
    %cst_38 = arith.constant 1.000000e+00 : f32
    %83 = vector.broadcast %cst_38 : f32 to vector<2x32xf32>
    %84 = arith.subf %83, %79 : vector<2x32xf32>
    %85 = arith.mulf %84, %82 : vector<2x32xf32>
    %86 = arith.mulf %79, %26 : vector<2x32xf32>
    %87 = arith.addf %85, %86 : vector<2x32xf32>
    %88 = vector.extract_strided_slice %87 {offsets = [0, 0], sizes = [1, 32], strides = [1, 1]} : vector<2x32xf32> to vector<1x32xf32>
    %89 = vector.extract_strided_slice %20 {offsets = [2, 0], sizes = [2, 32], strides = [1, 1]} : vector<16x32xf32> to vector<2x32xf32>
    %90 = vector.extract_strided_slice %21 {offsets = [2, 0], sizes = [2, 32], strides = [1, 1]} : vector<16x32xf32> to vector<2x32xf32>
    %91 = vector.extract_strided_slice %22 {offsets = [2, 0], sizes = [2, 32], strides = [1, 1]} : vector<16x32xf32> to vector<2x32xf32>
    %cst_39 = arith.constant dense<0.000000e+00> : vector<2x96xf32>
    %92 = tpu.matmul %55, %5, %cst_39 {dimension_numbers = #tpu.dot_dimension_numbers<[1], [0], [0], [1], [0, 0, 1, 1], [], []>} : vector<2x32xf32>, vector<32x96xf32>, vector<2x96xf32> -> vector<2x96xf32>
    %93 = vector.broadcast %13 : vector<1x96xf32> to vector<2x96xf32>
    %94 = arith.addf %92, %93 : vector<2x96xf32>
    %95 = vector.extract_strided_slice %94 {offsets = [0, 0], sizes = [2, 32], strides = [1, 1]} : vector<2x96xf32> to vector<2x32xf32>
    %96 = vector.extract_strided_slice %94 {offsets = [0, 32], sizes = [2, 32], strides = [1, 1]} : vector<2x96xf32> to vector<2x32xf32>
    %97 = vector.extract_strided_slice %94 {offsets = [0, 64], sizes = [2, 32], strides = [1, 1]} : vector<2x96xf32> to vector<2x32xf32>
    %98 = arith.addf %89, %95 : vector<2x32xf32>
    %99 = arith.negf %98 : vector<2x32xf32>
    %100 = math.exp %99 : vector<2x32xf32>
    %cst_40 = arith.constant 1.000000e+00 : f32
    %101 = vector.broadcast %cst_40 : f32 to vector<2x32xf32>
    %102 = arith.addf %101, %100 : vector<2x32xf32>
    %103 = arith.divf %101, %102 : vector<2x32xf32>
    %104 = arith.addf %90, %96 : vector<2x32xf32>
    %105 = arith.negf %104 : vector<2x32xf32>
    %106 = math.exp %105 : vector<2x32xf32>
    %cst_41 = arith.constant 1.000000e+00 : f32
    %107 = vector.broadcast %cst_41 : f32 to vector<2x32xf32>
    %108 = arith.addf %107, %106 : vector<2x32xf32>
    %109 = arith.divf %107, %108 : vector<2x32xf32>
    %110 = arith.mulf %103, %97 : vector<2x32xf32>
    %111 = arith.addf %91, %110 : vector<2x32xf32>
    %112 = math.tanh %111 : vector<2x32xf32>
    %cst_42 = arith.constant 1.000000e+00 : f32
    %113 = vector.broadcast %cst_42 : f32 to vector<2x32xf32>
    %114 = arith.subf %113, %109 : vector<2x32xf32>
    %115 = arith.mulf %114, %112 : vector<2x32xf32>
    %116 = arith.mulf %109, %55 : vector<2x32xf32>
    %117 = arith.addf %115, %116 : vector<2x32xf32>
    %cst_43 = arith.constant dense<0.000000e+00> : vector<2x96xf32>
    %118 = tpu.matmul %117, %3, %cst_43 {dimension_numbers = #tpu.dot_dimension_numbers<[1], [0], [0], [1], [0, 0, 1, 1], [], []>} : vector<2x32xf32>, vector<32x96xf32>, vector<2x96xf32> -> vector<2x96xf32>
    %119 = vector.broadcast %11 : vector<1x96xf32> to vector<2x96xf32>
    %120 = arith.addf %118, %119 : vector<2x96xf32>
    %121 = vector.extract_strided_slice %120 {offsets = [0, 0], sizes = [2, 32], strides = [1, 1]} : vector<2x96xf32> to vector<2x32xf32>
    %122 = vector.extract_strided_slice %120 {offsets = [0, 32], sizes = [2, 32], strides = [1, 1]} : vector<2x96xf32> to vector<2x32xf32>
    %123 = vector.extract_strided_slice %120 {offsets = [0, 64], sizes = [2, 32], strides = [1, 1]} : vector<2x96xf32> to vector<2x32xf32>
    %cst_44 = arith.constant dense<0.000000e+00> : vector<2x96xf32>
    %124 = tpu.matmul %87, %7, %cst_44 {dimension_numbers = #tpu.dot_dimension_numbers<[1], [0], [0], [1], [0, 0, 1, 1], [], []>} : vector<2x32xf32>, vector<32x96xf32>, vector<2x96xf32> -> vector<2x96xf32>
    %125 = vector.broadcast %15 : vector<1x96xf32> to vector<2x96xf32>
    %126 = arith.addf %124, %125 : vector<2x96xf32>
    %127 = vector.extract_strided_slice %126 {offsets = [0, 0], sizes = [2, 32], strides = [1, 1]} : vector<2x96xf32> to vector<2x32xf32>
    %128 = vector.extract_strided_slice %126 {offsets = [0, 32], sizes = [2, 32], strides = [1, 1]} : vector<2x96xf32> to vector<2x32xf32>
    %129 = vector.extract_strided_slice %126 {offsets = [0, 64], sizes = [2, 32], strides = [1, 1]} : vector<2x96xf32> to vector<2x32xf32>
    %130 = arith.addf %121, %127 : vector<2x32xf32>
    %131 = arith.negf %130 : vector<2x32xf32>
    %132 = math.exp %131 : vector<2x32xf32>
    %cst_45 = arith.constant 1.000000e+00 : f32
    %133 = vector.broadcast %cst_45 : f32 to vector<2x32xf32>
    %134 = arith.addf %133, %132 : vector<2x32xf32>
    %135 = arith.divf %133, %134 : vector<2x32xf32>
    %136 = arith.addf %122, %128 : vector<2x32xf32>
    %137 = arith.negf %136 : vector<2x32xf32>
    %138 = math.exp %137 : vector<2x32xf32>
    %cst_46 = arith.constant 1.000000e+00 : f32
    %139 = vector.broadcast %cst_46 : f32 to vector<2x32xf32>
    %140 = arith.addf %139, %138 : vector<2x32xf32>
    %141 = arith.divf %139, %140 : vector<2x32xf32>
    %142 = arith.mulf %135, %129 : vector<2x32xf32>
    %143 = arith.addf %123, %142 : vector<2x32xf32>
    %144 = math.tanh %143 : vector<2x32xf32>
    %cst_47 = arith.constant 1.000000e+00 : f32
    %145 = vector.broadcast %cst_47 : f32 to vector<2x32xf32>
    %146 = arith.subf %145, %141 : vector<2x32xf32>
    %147 = arith.mulf %146, %144 : vector<2x32xf32>
    %148 = arith.mulf %141, %87 : vector<2x32xf32>
    %149 = arith.addf %147, %148 : vector<2x32xf32>
    %150 = vector.extract_strided_slice %149 {offsets = [0, 0], sizes = [1, 32], strides = [1, 1]} : vector<2x32xf32> to vector<1x32xf32>
    %151 = vector.extract_strided_slice %20 {offsets = [4, 0], sizes = [2, 32], strides = [1, 1]} : vector<16x32xf32> to vector<2x32xf32>
    %152 = vector.extract_strided_slice %21 {offsets = [4, 0], sizes = [2, 32], strides = [1, 1]} : vector<16x32xf32> to vector<2x32xf32>
    %153 = vector.extract_strided_slice %22 {offsets = [4, 0], sizes = [2, 32], strides = [1, 1]} : vector<16x32xf32> to vector<2x32xf32>
    %cst_48 = arith.constant dense<0.000000e+00> : vector<2x96xf32>
    %154 = tpu.matmul %117, %5, %cst_48 {dimension_numbers = #tpu.dot_dimension_numbers<[1], [0], [0], [1], [0, 0, 1, 1], [], []>} : vector<2x32xf32>, vector<32x96xf32>, vector<2x96xf32> -> vector<2x96xf32>
    %155 = vector.broadcast %13 : vector<1x96xf32> to vector<2x96xf32>
    %156 = arith.addf %154, %155 : vector<2x96xf32>
    %157 = vector.extract_strided_slice %156 {offsets = [0, 0], sizes = [2, 32], strides = [1, 1]} : vector<2x96xf32> to vector<2x32xf32>
    %158 = vector.extract_strided_slice %156 {offsets = [0, 32], sizes = [2, 32], strides = [1, 1]} : vector<2x96xf32> to vector<2x32xf32>
    %159 = vector.extract_strided_slice %156 {offsets = [0, 64], sizes = [2, 32], strides = [1, 1]} : vector<2x96xf32> to vector<2x32xf32>
    %160 = arith.addf %151, %157 : vector<2x32xf32>
    %161 = arith.negf %160 : vector<2x32xf32>
    %162 = math.exp %161 : vector<2x32xf32>
    %cst_49 = arith.constant 1.000000e+00 : f32
    %163 = vector.broadcast %cst_49 : f32 to vector<2x32xf32>
    %164 = arith.addf %163, %162 : vector<2x32xf32>
    %165 = arith.divf %163, %164 : vector<2x32xf32>
    %166 = arith.addf %152, %158 : vector<2x32xf32>
    %167 = arith.negf %166 : vector<2x32xf32>
    %168 = math.exp %167 : vector<2x32xf32>
    %cst_50 = arith.constant 1.000000e+00 : f32
    %169 = vector.broadcast %cst_50 : f32 to vector<2x32xf32>
    %170 = arith.addf %169, %168 : vector<2x32xf32>
    %171 = arith.divf %169, %170 : vector<2x32xf32>
    %172 = arith.mulf %165, %159 : vector<2x32xf32>
    %173 = arith.addf %153, %172 : vector<2x32xf32>
    %174 = math.tanh %173 : vector<2x32xf32>
    %cst_51 = arith.constant 1.000000e+00 : f32
    %175 = vector.broadcast %cst_51 : f32 to vector<2x32xf32>
    %176 = arith.subf %175, %171 : vector<2x32xf32>
    %177 = arith.mulf %176, %174 : vector<2x32xf32>
    %178 = arith.mulf %171, %117 : vector<2x32xf32>
    %179 = arith.addf %177, %178 : vector<2x32xf32>
    %cst_52 = arith.constant dense<0.000000e+00> : vector<2x96xf32>
    %180 = tpu.matmul %179, %3, %cst_52 {dimension_numbers = #tpu.dot_dimension_numbers<[1], [0], [0], [1], [0, 0, 1, 1], [], []>} : vector<2x32xf32>, vector<32x96xf32>, vector<2x96xf32> -> vector<2x96xf32>
    %181 = vector.broadcast %11 : vector<1x96xf32> to vector<2x96xf32>
    %182 = arith.addf %180, %181 : vector<2x96xf32>
    %183 = vector.extract_strided_slice %182 {offsets = [0, 0], sizes = [2, 32], strides = [1, 1]} : vector<2x96xf32> to vector<2x32xf32>
    %184 = vector.extract_strided_slice %182 {offsets = [0, 32], sizes = [2, 32], strides = [1, 1]} : vector<2x96xf32> to vector<2x32xf32>
    %185 = vector.extract_strided_slice %182 {offsets = [0, 64], sizes = [2, 32], strides = [1, 1]} : vector<2x96xf32> to vector<2x32xf32>
    %cst_53 = arith.constant dense<0.000000e+00> : vector<2x96xf32>
    %186 = tpu.matmul %149, %7, %cst_53 {dimension_numbers = #tpu.dot_dimension_numbers<[1], [0], [0], [1], [0, 0, 1, 1], [], []>} : vector<2x32xf32>, vector<32x96xf32>, vector<2x96xf32> -> vector<2x96xf32>
    %187 = vector.broadcast %15 : vector<1x96xf32> to vector<2x96xf32>
    %188 = arith.addf %186, %187 : vector<2x96xf32>
    %189 = vector.extract_strided_slice %188 {offsets = [0, 0], sizes = [2, 32], strides = [1, 1]} : vector<2x96xf32> to vector<2x32xf32>
    %190 = vector.extract_strided_slice %188 {offsets = [0, 32], sizes = [2, 32], strides = [1, 1]} : vector<2x96xf32> to vector<2x32xf32>
    %191 = vector.extract_strided_slice %188 {offsets = [0, 64], sizes = [2, 32], strides = [1, 1]} : vector<2x96xf32> to vector<2x32xf32>
    %192 = arith.addf %183, %189 : vector<2x32xf32>
    %193 = arith.negf %192 : vector<2x32xf32>
    %194 = math.exp %193 : vector<2x32xf32>
    %cst_54 = arith.constant 1.000000e+00 : f32
    %195 = vector.broadcast %cst_54 : f32 to vector<2x32xf32>
    %196 = arith.addf %195, %194 : vector<2x32xf32>
    %197 = arith.divf %195, %196 : vector<2x32xf32>
    %198 = arith.addf %184, %190 : vector<2x32xf32>
    %199 = arith.negf %198 : vector<2x32xf32>
    %200 = math.exp %199 : vector<2x32xf32>
    %cst_55 = arith.constant 1.000000e+00 : f32
    %201 = vector.broadcast %cst_55 : f32 to vector<2x32xf32>
    %202 = arith.addf %201, %200 : vector<2x32xf32>
    %203 = arith.divf %201, %202 : vector<2x32xf32>
    %204 = arith.mulf %197, %191 : vector<2x32xf32>
    %205 = arith.addf %185, %204 : vector<2x32xf32>
    %206 = math.tanh %205 : vector<2x32xf32>
    %cst_56 = arith.constant 1.000000e+00 : f32
    %207 = vector.broadcast %cst_56 : f32 to vector<2x32xf32>
    %208 = arith.subf %207, %203 : vector<2x32xf32>
    %209 = arith.mulf %208, %206 : vector<2x32xf32>
    %210 = arith.mulf %203, %149 : vector<2x32xf32>
    %211 = arith.addf %209, %210 : vector<2x32xf32>
    %212 = vector.extract_strided_slice %211 {offsets = [0, 0], sizes = [1, 32], strides = [1, 1]} : vector<2x32xf32> to vector<1x32xf32>
    %213 = vector.extract_strided_slice %20 {offsets = [6, 0], sizes = [2, 32], strides = [1, 1]} : vector<16x32xf32> to vector<2x32xf32>
    %214 = vector.extract_strided_slice %21 {offsets = [6, 0], sizes = [2, 32], strides = [1, 1]} : vector<16x32xf32> to vector<2x32xf32>
    %215 = vector.extract_strided_slice %22 {offsets = [6, 0], sizes = [2, 32], strides = [1, 1]} : vector<16x32xf32> to vector<2x32xf32>
    %cst_57 = arith.constant dense<0.000000e+00> : vector<2x96xf32>
    %216 = tpu.matmul %179, %5, %cst_57 {dimension_numbers = #tpu.dot_dimension_numbers<[1], [0], [0], [1], [0, 0, 1, 1], [], []>} : vector<2x32xf32>, vector<32x96xf32>, vector<2x96xf32> -> vector<2x96xf32>
    %217 = vector.broadcast %13 : vector<1x96xf32> to vector<2x96xf32>
    %218 = arith.addf %216, %217 : vector<2x96xf32>
    %219 = vector.extract_strided_slice %218 {offsets = [0, 0], sizes = [2, 32], strides = [1, 1]} : vector<2x96xf32> to vector<2x32xf32>
    %220 = vector.extract_strided_slice %218 {offsets = [0, 32], sizes = [2, 32], strides = [1, 1]} : vector<2x96xf32> to vector<2x32xf32>
    %221 = vector.extract_strided_slice %218 {offsets = [0, 64], sizes = [2, 32], strides = [1, 1]} : vector<2x96xf32> to vector<2x32xf32>
    %222 = arith.addf %213, %219 : vector<2x32xf32>
    %223 = arith.negf %222 : vector<2x32xf32>
    %224 = math.exp %223 : vector<2x32xf32>
    %cst_58 = arith.constant 1.000000e+00 : f32
    %225 = vector.broadcast %cst_58 : f32 to vector<2x32xf32>
    %226 = arith.addf %225, %224 : vector<2x32xf32>
    %227 = arith.divf %225, %226 : vector<2x32xf32>
    %228 = arith.addf %214, %220 : vector<2x32xf32>
    %229 = arith.negf %228 : vector<2x32xf32>
    %230 = math.exp %229 : vector<2x32xf32>
    %cst_59 = arith.constant 1.000000e+00 : f32
    %231 = vector.broadcast %cst_59 : f32 to vector<2x32xf32>
    %232 = arith.addf %231, %230 : vector<2x32xf32>
    %233 = arith.divf %231, %232 : vector<2x32xf32>
    %234 = arith.mulf %227, %221 : vector<2x32xf32>
    %235 = arith.addf %215, %234 : vector<2x32xf32>
    %236 = math.tanh %235 : vector<2x32xf32>
    %cst_60 = arith.constant 1.000000e+00 : f32
    %237 = vector.broadcast %cst_60 : f32 to vector<2x32xf32>
    %238 = arith.subf %237, %233 : vector<2x32xf32>
    %239 = arith.mulf %238, %236 : vector<2x32xf32>
    %240 = arith.mulf %233, %179 : vector<2x32xf32>
    %241 = arith.addf %239, %240 : vector<2x32xf32>
    %cst_61 = arith.constant dense<0.000000e+00> : vector<2x96xf32>
    %242 = tpu.matmul %241, %3, %cst_61 {dimension_numbers = #tpu.dot_dimension_numbers<[1], [0], [0], [1], [0, 0, 1, 1], [], []>} : vector<2x32xf32>, vector<32x96xf32>, vector<2x96xf32> -> vector<2x96xf32>
    %243 = vector.broadcast %11 : vector<1x96xf32> to vector<2x96xf32>
    %244 = arith.addf %242, %243 : vector<2x96xf32>
    %245 = vector.extract_strided_slice %244 {offsets = [0, 0], sizes = [2, 32], strides = [1, 1]} : vector<2x96xf32> to vector<2x32xf32>
    %246 = vector.extract_strided_slice %244 {offsets = [0, 32], sizes = [2, 32], strides = [1, 1]} : vector<2x96xf32> to vector<2x32xf32>
    %247 = vector.extract_strided_slice %244 {offsets = [0, 64], sizes = [2, 32], strides = [1, 1]} : vector<2x96xf32> to vector<2x32xf32>
    %cst_62 = arith.constant dense<0.000000e+00> : vector<2x96xf32>
    %248 = tpu.matmul %211, %7, %cst_62 {dimension_numbers = #tpu.dot_dimension_numbers<[1], [0], [0], [1], [0, 0, 1, 1], [], []>} : vector<2x32xf32>, vector<32x96xf32>, vector<2x96xf32> -> vector<2x96xf32>
    %249 = vector.broadcast %15 : vector<1x96xf32> to vector<2x96xf32>
    %250 = arith.addf %248, %249 : vector<2x96xf32>
    %251 = vector.extract_strided_slice %250 {offsets = [0, 0], sizes = [2, 32], strides = [1, 1]} : vector<2x96xf32> to vector<2x32xf32>
    %252 = vector.extract_strided_slice %250 {offsets = [0, 32], sizes = [2, 32], strides = [1, 1]} : vector<2x96xf32> to vector<2x32xf32>
    %253 = vector.extract_strided_slice %250 {offsets = [0, 64], sizes = [2, 32], strides = [1, 1]} : vector<2x96xf32> to vector<2x32xf32>
    %254 = arith.addf %245, %251 : vector<2x32xf32>
    %255 = arith.negf %254 : vector<2x32xf32>
    %256 = math.exp %255 : vector<2x32xf32>
    %cst_63 = arith.constant 1.000000e+00 : f32
    %257 = vector.broadcast %cst_63 : f32 to vector<2x32xf32>
    %258 = arith.addf %257, %256 : vector<2x32xf32>
    %259 = arith.divf %257, %258 : vector<2x32xf32>
    %260 = arith.addf %246, %252 : vector<2x32xf32>
    %261 = arith.negf %260 : vector<2x32xf32>
    %262 = math.exp %261 : vector<2x32xf32>
    %cst_64 = arith.constant 1.000000e+00 : f32
    %263 = vector.broadcast %cst_64 : f32 to vector<2x32xf32>
    %264 = arith.addf %263, %262 : vector<2x32xf32>
    %265 = arith.divf %263, %264 : vector<2x32xf32>
    %266 = arith.mulf %259, %253 : vector<2x32xf32>
    %267 = arith.addf %247, %266 : vector<2x32xf32>
    %268 = math.tanh %267 : vector<2x32xf32>
    %cst_65 = arith.constant 1.000000e+00 : f32
    %269 = vector.broadcast %cst_65 : f32 to vector<2x32xf32>
    %270 = arith.subf %269, %265 : vector<2x32xf32>
    %271 = arith.mulf %270, %268 : vector<2x32xf32>
    %272 = arith.mulf %265, %211 : vector<2x32xf32>
    %273 = arith.addf %271, %272 : vector<2x32xf32>
    %274 = vector.extract_strided_slice %273 {offsets = [0, 0], sizes = [1, 32], strides = [1, 1]} : vector<2x32xf32> to vector<1x32xf32>
    %275 = vector.extract_strided_slice %20 {offsets = [8, 0], sizes = [2, 32], strides = [1, 1]} : vector<16x32xf32> to vector<2x32xf32>
    %276 = vector.extract_strided_slice %21 {offsets = [8, 0], sizes = [2, 32], strides = [1, 1]} : vector<16x32xf32> to vector<2x32xf32>
    %277 = vector.extract_strided_slice %22 {offsets = [8, 0], sizes = [2, 32], strides = [1, 1]} : vector<16x32xf32> to vector<2x32xf32>
    %cst_66 = arith.constant dense<0.000000e+00> : vector<2x96xf32>
    %278 = tpu.matmul %241, %5, %cst_66 {dimension_numbers = #tpu.dot_dimension_numbers<[1], [0], [0], [1], [0, 0, 1, 1], [], []>} : vector<2x32xf32>, vector<32x96xf32>, vector<2x96xf32> -> vector<2x96xf32>
    %279 = vector.broadcast %13 : vector<1x96xf32> to vector<2x96xf32>
    %280 = arith.addf %278, %279 : vector<2x96xf32>
    %281 = vector.extract_strided_slice %280 {offsets = [0, 0], sizes = [2, 32], strides = [1, 1]} : vector<2x96xf32> to vector<2x32xf32>
    %282 = vector.extract_strided_slice %280 {offsets = [0, 32], sizes = [2, 32], strides = [1, 1]} : vector<2x96xf32> to vector<2x32xf32>
    %283 = vector.extract_strided_slice %280 {offsets = [0, 64], sizes = [2, 32], strides = [1, 1]} : vector<2x96xf32> to vector<2x32xf32>
    %284 = arith.addf %275, %281 : vector<2x32xf32>
    %285 = arith.negf %284 : vector<2x32xf32>
    %286 = math.exp %285 : vector<2x32xf32>
    %cst_67 = arith.constant 1.000000e+00 : f32
    %287 = vector.broadcast %cst_67 : f32 to vector<2x32xf32>
    %288 = arith.addf %287, %286 : vector<2x32xf32>
    %289 = arith.divf %287, %288 : vector<2x32xf32>
    %290 = arith.addf %276, %282 : vector<2x32xf32>
    %291 = arith.negf %290 : vector<2x32xf32>
    %292 = math.exp %291 : vector<2x32xf32>
    %cst_68 = arith.constant 1.000000e+00 : f32
    %293 = vector.broadcast %cst_68 : f32 to vector<2x32xf32>
    %294 = arith.addf %293, %292 : vector<2x32xf32>
    %295 = arith.divf %293, %294 : vector<2x32xf32>
    %296 = arith.mulf %289, %283 : vector<2x32xf32>
    %297 = arith.addf %277, %296 : vector<2x32xf32>
    %298 = math.tanh %297 : vector<2x32xf32>
    %cst_69 = arith.constant 1.000000e+00 : f32
    %299 = vector.broadcast %cst_69 : f32 to vector<2x32xf32>
    %300 = arith.subf %299, %295 : vector<2x32xf32>
    %301 = arith.mulf %300, %298 : vector<2x32xf32>
    %302 = arith.mulf %295, %241 : vector<2x32xf32>
    %303 = arith.addf %301, %302 : vector<2x32xf32>
    %cst_70 = arith.constant dense<0.000000e+00> : vector<2x96xf32>
    %304 = tpu.matmul %303, %3, %cst_70 {dimension_numbers = #tpu.dot_dimension_numbers<[1], [0], [0], [1], [0, 0, 1, 1], [], []>} : vector<2x32xf32>, vector<32x96xf32>, vector<2x96xf32> -> vector<2x96xf32>
    %305 = vector.broadcast %11 : vector<1x96xf32> to vector<2x96xf32>
    %306 = arith.addf %304, %305 : vector<2x96xf32>
    %307 = vector.extract_strided_slice %306 {offsets = [0, 0], sizes = [2, 32], strides = [1, 1]} : vector<2x96xf32> to vector<2x32xf32>
    %308 = vector.extract_strided_slice %306 {offsets = [0, 32], sizes = [2, 32], strides = [1, 1]} : vector<2x96xf32> to vector<2x32xf32>
    %309 = vector.extract_strided_slice %306 {offsets = [0, 64], sizes = [2, 32], strides = [1, 1]} : vector<2x96xf32> to vector<2x32xf32>
    %cst_71 = arith.constant dense<0.000000e+00> : vector<2x96xf32>
    %310 = tpu.matmul %273, %7, %cst_71 {dimension_numbers = #tpu.dot_dimension_numbers<[1], [0], [0], [1], [0, 0, 1, 1], [], []>} : vector<2x32xf32>, vector<32x96xf32>, vector<2x96xf32> -> vector<2x96xf32>
    %311 = vector.broadcast %15 : vector<1x96xf32> to vector<2x96xf32>
    %312 = arith.addf %310, %311 : vector<2x96xf32>
    %313 = vector.extract_strided_slice %312 {offsets = [0, 0], sizes = [2, 32], strides = [1, 1]} : vector<2x96xf32> to vector<2x32xf32>
    %314 = vector.extract_strided_slice %312 {offsets = [0, 32], sizes = [2, 32], strides = [1, 1]} : vector<2x96xf32> to vector<2x32xf32>
    %315 = vector.extract_strided_slice %312 {offsets = [0, 64], sizes = [2, 32], strides = [1, 1]} : vector<2x96xf32> to vector<2x32xf32>
    %316 = arith.addf %307, %313 : vector<2x32xf32>
    %317 = arith.negf %316 : vector<2x32xf32>
    %318 = math.exp %317 : vector<2x32xf32>
    %cst_72 = arith.constant 1.000000e+00 : f32
    %319 = vector.broadcast %cst_72 : f32 to vector<2x32xf32>
    %320 = arith.addf %319, %318 : vector<2x32xf32>
    %321 = arith.divf %319, %320 : vector<2x32xf32>
    %322 = arith.addf %308, %314 : vector<2x32xf32>
    %323 = arith.negf %322 : vector<2x32xf32>
    %324 = math.exp %323 : vector<2x32xf32>
    %cst_73 = arith.constant 1.000000e+00 : f32
    %325 = vector.broadcast %cst_73 : f32 to vector<2x32xf32>
    %326 = arith.addf %325, %324 : vector<2x32xf32>
    %327 = arith.divf %325, %326 : vector<2x32xf32>
    %328 = arith.mulf %321, %315 : vector<2x32xf32>
    %329 = arith.addf %309, %328 : vector<2x32xf32>
    %330 = math.tanh %329 : vector<2x32xf32>
    %cst_74 = arith.constant 1.000000e+00 : f32
    %331 = vector.broadcast %cst_74 : f32 to vector<2x32xf32>
    %332 = arith.subf %331, %327 : vector<2x32xf32>
    %333 = arith.mulf %332, %330 : vector<2x32xf32>
    %334 = arith.mulf %327, %273 : vector<2x32xf32>
    %335 = arith.addf %333, %334 : vector<2x32xf32>
    %336 = vector.extract_strided_slice %335 {offsets = [0, 0], sizes = [1, 32], strides = [1, 1]} : vector<2x32xf32> to vector<1x32xf32>
    %337 = vector.extract_strided_slice %20 {offsets = [10, 0], sizes = [2, 32], strides = [1, 1]} : vector<16x32xf32> to vector<2x32xf32>
    %338 = vector.extract_strided_slice %21 {offsets = [10, 0], sizes = [2, 32], strides = [1, 1]} : vector<16x32xf32> to vector<2x32xf32>
    %339 = vector.extract_strided_slice %22 {offsets = [10, 0], sizes = [2, 32], strides = [1, 1]} : vector<16x32xf32> to vector<2x32xf32>
    %cst_75 = arith.constant dense<0.000000e+00> : vector<2x96xf32>
    %340 = tpu.matmul %303, %5, %cst_75 {dimension_numbers = #tpu.dot_dimension_numbers<[1], [0], [0], [1], [0, 0, 1, 1], [], []>} : vector<2x32xf32>, vector<32x96xf32>, vector<2x96xf32> -> vector<2x96xf32>
    %341 = vector.broadcast %13 : vector<1x96xf32> to vector<2x96xf32>
    %342 = arith.addf %340, %341 : vector<2x96xf32>
    %343 = vector.extract_strided_slice %342 {offsets = [0, 0], sizes = [2, 32], strides = [1, 1]} : vector<2x96xf32> to vector<2x32xf32>
    %344 = vector.extract_strided_slice %342 {offsets = [0, 32], sizes = [2, 32], strides = [1, 1]} : vector<2x96xf32> to vector<2x32xf32>
    %345 = vector.extract_strided_slice %342 {offsets = [0, 64], sizes = [2, 32], strides = [1, 1]} : vector<2x96xf32> to vector<2x32xf32>
    %346 = arith.addf %337, %343 : vector<2x32xf32>
    %347 = arith.negf %346 : vector<2x32xf32>
    %348 = math.exp %347 : vector<2x32xf32>
    %cst_76 = arith.constant 1.000000e+00 : f32
    %349 = vector.broadcast %cst_76 : f32 to vector<2x32xf32>
    %350 = arith.addf %349, %348 : vector<2x32xf32>
    %351 = arith.divf %349, %350 : vector<2x32xf32>
    %352 = arith.addf %338, %344 : vector<2x32xf32>
    %353 = arith.negf %352 : vector<2x32xf32>
    %354 = math.exp %353 : vector<2x32xf32>
    %cst_77 = arith.constant 1.000000e+00 : f32
    %355 = vector.broadcast %cst_77 : f32 to vector<2x32xf32>
    %356 = arith.addf %355, %354 : vector<2x32xf32>
    %357 = arith.divf %355, %356 : vector<2x32xf32>
    %358 = arith.mulf %351, %345 : vector<2x32xf32>
    %359 = arith.addf %339, %358 : vector<2x32xf32>
    %360 = math.tanh %359 : vector<2x32xf32>
    %cst_78 = arith.constant 1.000000e+00 : f32
    %361 = vector.broadcast %cst_78 : f32 to vector<2x32xf32>
    %362 = arith.subf %361, %357 : vector<2x32xf32>
    %363 = arith.mulf %362, %360 : vector<2x32xf32>
    %364 = arith.mulf %357, %303 : vector<2x32xf32>
    %365 = arith.addf %363, %364 : vector<2x32xf32>
    %cst_79 = arith.constant dense<0.000000e+00> : vector<2x96xf32>
    %366 = tpu.matmul %365, %3, %cst_79 {dimension_numbers = #tpu.dot_dimension_numbers<[1], [0], [0], [1], [0, 0, 1, 1], [], []>} : vector<2x32xf32>, vector<32x96xf32>, vector<2x96xf32> -> vector<2x96xf32>
    %367 = vector.broadcast %11 : vector<1x96xf32> to vector<2x96xf32>
    %368 = arith.addf %366, %367 : vector<2x96xf32>
    %369 = vector.extract_strided_slice %368 {offsets = [0, 0], sizes = [2, 32], strides = [1, 1]} : vector<2x96xf32> to vector<2x32xf32>
    %370 = vector.extract_strided_slice %368 {offsets = [0, 32], sizes = [2, 32], strides = [1, 1]} : vector<2x96xf32> to vector<2x32xf32>
    %371 = vector.extract_strided_slice %368 {offsets = [0, 64], sizes = [2, 32], strides = [1, 1]} : vector<2x96xf32> to vector<2x32xf32>
    %cst_80 = arith.constant dense<0.000000e+00> : vector<2x96xf32>
    %372 = tpu.matmul %335, %7, %cst_80 {dimension_numbers = #tpu.dot_dimension_numbers<[1], [0], [0], [1], [0, 0, 1, 1], [], []>} : vector<2x32xf32>, vector<32x96xf32>, vector<2x96xf32> -> vector<2x96xf32>
    %373 = vector.broadcast %15 : vector<1x96xf32> to vector<2x96xf32>
    %374 = arith.addf %372, %373 : vector<2x96xf32>
    %375 = vector.extract_strided_slice %374 {offsets = [0, 0], sizes = [2, 32], strides = [1, 1]} : vector<2x96xf32> to vector<2x32xf32>
    %376 = vector.extract_strided_slice %374 {offsets = [0, 32], sizes = [2, 32], strides = [1, 1]} : vector<2x96xf32> to vector<2x32xf32>
    %377 = vector.extract_strided_slice %374 {offsets = [0, 64], sizes = [2, 32], strides = [1, 1]} : vector<2x96xf32> to vector<2x32xf32>
    %378 = arith.addf %369, %375 : vector<2x32xf32>
    %379 = arith.negf %378 : vector<2x32xf32>
    %380 = math.exp %379 : vector<2x32xf32>
    %cst_81 = arith.constant 1.000000e+00 : f32
    %381 = vector.broadcast %cst_81 : f32 to vector<2x32xf32>
    %382 = arith.addf %381, %380 : vector<2x32xf32>
    %383 = arith.divf %381, %382 : vector<2x32xf32>
    %384 = arith.addf %370, %376 : vector<2x32xf32>
    %385 = arith.negf %384 : vector<2x32xf32>
    %386 = math.exp %385 : vector<2x32xf32>
    %cst_82 = arith.constant 1.000000e+00 : f32
    %387 = vector.broadcast %cst_82 : f32 to vector<2x32xf32>
    %388 = arith.addf %387, %386 : vector<2x32xf32>
    %389 = arith.divf %387, %388 : vector<2x32xf32>
    %390 = arith.mulf %383, %377 : vector<2x32xf32>
    %391 = arith.addf %371, %390 : vector<2x32xf32>
    %392 = math.tanh %391 : vector<2x32xf32>
    %cst_83 = arith.constant 1.000000e+00 : f32
    %393 = vector.broadcast %cst_83 : f32 to vector<2x32xf32>
    %394 = arith.subf %393, %389 : vector<2x32xf32>
    %395 = arith.mulf %394, %392 : vector<2x32xf32>
    %396 = arith.mulf %389, %335 : vector<2x32xf32>
    %397 = arith.addf %395, %396 : vector<2x32xf32>
    %398 = vector.extract_strided_slice %397 {offsets = [0, 0], sizes = [1, 32], strides = [1, 1]} : vector<2x32xf32> to vector<1x32xf32>
    %399 = vector.extract_strided_slice %20 {offsets = [12, 0], sizes = [2, 32], strides = [1, 1]} : vector<16x32xf32> to vector<2x32xf32>
    %400 = vector.extract_strided_slice %21 {offsets = [12, 0], sizes = [2, 32], strides = [1, 1]} : vector<16x32xf32> to vector<2x32xf32>
    %401 = vector.extract_strided_slice %22 {offsets = [12, 0], sizes = [2, 32], strides = [1, 1]} : vector<16x32xf32> to vector<2x32xf32>
    %cst_84 = arith.constant dense<0.000000e+00> : vector<2x96xf32>
    %402 = tpu.matmul %365, %5, %cst_84 {dimension_numbers = #tpu.dot_dimension_numbers<[1], [0], [0], [1], [0, 0, 1, 1], [], []>} : vector<2x32xf32>, vector<32x96xf32>, vector<2x96xf32> -> vector<2x96xf32>
    %403 = vector.broadcast %13 : vector<1x96xf32> to vector<2x96xf32>
    %404 = arith.addf %402, %403 : vector<2x96xf32>
    %405 = vector.extract_strided_slice %404 {offsets = [0, 0], sizes = [2, 32], strides = [1, 1]} : vector<2x96xf32> to vector<2x32xf32>
    %406 = vector.extract_strided_slice %404 {offsets = [0, 32], sizes = [2, 32], strides = [1, 1]} : vector<2x96xf32> to vector<2x32xf32>
    %407 = vector.extract_strided_slice %404 {offsets = [0, 64], sizes = [2, 32], strides = [1, 1]} : vector<2x96xf32> to vector<2x32xf32>
    %408 = arith.addf %399, %405 : vector<2x32xf32>
    %409 = arith.negf %408 : vector<2x32xf32>
    %410 = math.exp %409 : vector<2x32xf32>
    %cst_85 = arith.constant 1.000000e+00 : f32
    %411 = vector.broadcast %cst_85 : f32 to vector<2x32xf32>
    %412 = arith.addf %411, %410 : vector<2x32xf32>
    %413 = arith.divf %411, %412 : vector<2x32xf32>
    %414 = arith.addf %400, %406 : vector<2x32xf32>
    %415 = arith.negf %414 : vector<2x32xf32>
    %416 = math.exp %415 : vector<2x32xf32>
    %cst_86 = arith.constant 1.000000e+00 : f32
    %417 = vector.broadcast %cst_86 : f32 to vector<2x32xf32>
    %418 = arith.addf %417, %416 : vector<2x32xf32>
    %419 = arith.divf %417, %418 : vector<2x32xf32>
    %420 = arith.mulf %413, %407 : vector<2x32xf32>
    %421 = arith.addf %401, %420 : vector<2x32xf32>
    %422 = math.tanh %421 : vector<2x32xf32>
    %cst_87 = arith.constant 1.000000e+00 : f32
    %423 = vector.broadcast %cst_87 : f32 to vector<2x32xf32>
    %424 = arith.subf %423, %419 : vector<2x32xf32>
    %425 = arith.mulf %424, %422 : vector<2x32xf32>
    %426 = arith.mulf %419, %365 : vector<2x32xf32>
    %427 = arith.addf %425, %426 : vector<2x32xf32>
    %cst_88 = arith.constant dense<0.000000e+00> : vector<2x96xf32>
    %428 = tpu.matmul %427, %3, %cst_88 {dimension_numbers = #tpu.dot_dimension_numbers<[1], [0], [0], [1], [0, 0, 1, 1], [], []>} : vector<2x32xf32>, vector<32x96xf32>, vector<2x96xf32> -> vector<2x96xf32>
    %429 = vector.broadcast %11 : vector<1x96xf32> to vector<2x96xf32>
    %430 = arith.addf %428, %429 : vector<2x96xf32>
    %431 = vector.extract_strided_slice %430 {offsets = [0, 0], sizes = [2, 32], strides = [1, 1]} : vector<2x96xf32> to vector<2x32xf32>
    %432 = vector.extract_strided_slice %430 {offsets = [0, 32], sizes = [2, 32], strides = [1, 1]} : vector<2x96xf32> to vector<2x32xf32>
    %433 = vector.extract_strided_slice %430 {offsets = [0, 64], sizes = [2, 32], strides = [1, 1]} : vector<2x96xf32> to vector<2x32xf32>
    %cst_89 = arith.constant dense<0.000000e+00> : vector<2x96xf32>
    %434 = tpu.matmul %397, %7, %cst_89 {dimension_numbers = #tpu.dot_dimension_numbers<[1], [0], [0], [1], [0, 0, 1, 1], [], []>} : vector<2x32xf32>, vector<32x96xf32>, vector<2x96xf32> -> vector<2x96xf32>
    %435 = vector.broadcast %15 : vector<1x96xf32> to vector<2x96xf32>
    %436 = arith.addf %434, %435 : vector<2x96xf32>
    %437 = vector.extract_strided_slice %436 {offsets = [0, 0], sizes = [2, 32], strides = [1, 1]} : vector<2x96xf32> to vector<2x32xf32>
    %438 = vector.extract_strided_slice %436 {offsets = [0, 32], sizes = [2, 32], strides = [1, 1]} : vector<2x96xf32> to vector<2x32xf32>
    %439 = vector.extract_strided_slice %436 {offsets = [0, 64], sizes = [2, 32], strides = [1, 1]} : vector<2x96xf32> to vector<2x32xf32>
    %440 = arith.addf %431, %437 : vector<2x32xf32>
    %441 = arith.negf %440 : vector<2x32xf32>
    %442 = math.exp %441 : vector<2x32xf32>
    %cst_90 = arith.constant 1.000000e+00 : f32
    %443 = vector.broadcast %cst_90 : f32 to vector<2x32xf32>
    %444 = arith.addf %443, %442 : vector<2x32xf32>
    %445 = arith.divf %443, %444 : vector<2x32xf32>
    %446 = arith.addf %432, %438 : vector<2x32xf32>
    %447 = arith.negf %446 : vector<2x32xf32>
    %448 = math.exp %447 : vector<2x32xf32>
    %cst_91 = arith.constant 1.000000e+00 : f32
    %449 = vector.broadcast %cst_91 : f32 to vector<2x32xf32>
    %450 = arith.addf %449, %448 : vector<2x32xf32>
    %451 = arith.divf %449, %450 : vector<2x32xf32>
    %452 = arith.mulf %445, %439 : vector<2x32xf32>
    %453 = arith.addf %433, %452 : vector<2x32xf32>
    %454 = math.tanh %453 : vector<2x32xf32>
    %cst_92 = arith.constant 1.000000e+00 : f32
    %455 = vector.broadcast %cst_92 : f32 to vector<2x32xf32>
    %456 = arith.subf %455, %451 : vector<2x32xf32>
    %457 = arith.mulf %456, %454 : vector<2x32xf32>
    %458 = arith.mulf %451, %397 : vector<2x32xf32>
    %459 = arith.addf %457, %458 : vector<2x32xf32>
    %460 = vector.extract_strided_slice %459 {offsets = [0, 0], sizes = [1, 32], strides = [1, 1]} : vector<2x32xf32> to vector<1x32xf32>
    %461 = vector.extract_strided_slice %20 {offsets = [14, 0], sizes = [2, 32], strides = [1, 1]} : vector<16x32xf32> to vector<2x32xf32>
    %462 = vector.extract_strided_slice %21 {offsets = [14, 0], sizes = [2, 32], strides = [1, 1]} : vector<16x32xf32> to vector<2x32xf32>
    %463 = vector.extract_strided_slice %22 {offsets = [14, 0], sizes = [2, 32], strides = [1, 1]} : vector<16x32xf32> to vector<2x32xf32>
    %cst_93 = arith.constant dense<0.000000e+00> : vector<2x96xf32>
    %464 = tpu.matmul %427, %5, %cst_93 {dimension_numbers = #tpu.dot_dimension_numbers<[1], [0], [0], [1], [0, 0, 1, 1], [], []>} : vector<2x32xf32>, vector<32x96xf32>, vector<2x96xf32> -> vector<2x96xf32>
    %465 = vector.broadcast %13 : vector<1x96xf32> to vector<2x96xf32>
    %466 = arith.addf %464, %465 : vector<2x96xf32>
    %467 = vector.extract_strided_slice %466 {offsets = [0, 0], sizes = [2, 32], strides = [1, 1]} : vector<2x96xf32> to vector<2x32xf32>
    %468 = vector.extract_strided_slice %466 {offsets = [0, 32], sizes = [2, 32], strides = [1, 1]} : vector<2x96xf32> to vector<2x32xf32>
    %469 = vector.extract_strided_slice %466 {offsets = [0, 64], sizes = [2, 32], strides = [1, 1]} : vector<2x96xf32> to vector<2x32xf32>
    %470 = arith.addf %461, %467 : vector<2x32xf32>
    %471 = arith.negf %470 : vector<2x32xf32>
    %472 = math.exp %471 : vector<2x32xf32>
    %cst_94 = arith.constant 1.000000e+00 : f32
    %473 = vector.broadcast %cst_94 : f32 to vector<2x32xf32>
    %474 = arith.addf %473, %472 : vector<2x32xf32>
    %475 = arith.divf %473, %474 : vector<2x32xf32>
    %476 = arith.addf %462, %468 : vector<2x32xf32>
    %477 = arith.negf %476 : vector<2x32xf32>
    %478 = math.exp %477 : vector<2x32xf32>
    %cst_95 = arith.constant 1.000000e+00 : f32
    %479 = vector.broadcast %cst_95 : f32 to vector<2x32xf32>
    %480 = arith.addf %479, %478 : vector<2x32xf32>
    %481 = arith.divf %479, %480 : vector<2x32xf32>
    %482 = arith.mulf %475, %469 : vector<2x32xf32>
    %483 = arith.addf %463, %482 : vector<2x32xf32>
    %484 = math.tanh %483 : vector<2x32xf32>
    %cst_96 = arith.constant 1.000000e+00 : f32
    %485 = vector.broadcast %cst_96 : f32 to vector<2x32xf32>
    %486 = arith.subf %485, %481 : vector<2x32xf32>
    %487 = arith.mulf %486, %484 : vector<2x32xf32>
    %488 = arith.mulf %481, %427 : vector<2x32xf32>
    %489 = arith.addf %487, %488 : vector<2x32xf32>
    %cst_97 = arith.constant dense<0.000000e+00> : vector<2x96xf32>
    %490 = tpu.matmul %489, %3, %cst_97 {dimension_numbers = #tpu.dot_dimension_numbers<[1], [0], [0], [1], [0, 0, 1, 1], [], []>} : vector<2x32xf32>, vector<32x96xf32>, vector<2x96xf32> -> vector<2x96xf32>
    %491 = vector.broadcast %11 : vector<1x96xf32> to vector<2x96xf32>
    %492 = arith.addf %490, %491 : vector<2x96xf32>
    %493 = vector.extract_strided_slice %492 {offsets = [0, 0], sizes = [2, 32], strides = [1, 1]} : vector<2x96xf32> to vector<2x32xf32>
    %494 = vector.extract_strided_slice %492 {offsets = [0, 32], sizes = [2, 32], strides = [1, 1]} : vector<2x96xf32> to vector<2x32xf32>
    %495 = vector.extract_strided_slice %492 {offsets = [0, 64], sizes = [2, 32], strides = [1, 1]} : vector<2x96xf32> to vector<2x32xf32>
    %cst_98 = arith.constant dense<0.000000e+00> : vector<2x96xf32>
    %496 = tpu.matmul %459, %7, %cst_98 {dimension_numbers = #tpu.dot_dimension_numbers<[1], [0], [0], [1], [0, 0, 1, 1], [], []>} : vector<2x32xf32>, vector<32x96xf32>, vector<2x96xf32> -> vector<2x96xf32>
    %497 = vector.broadcast %15 : vector<1x96xf32> to vector<2x96xf32>
    %498 = arith.addf %496, %497 : vector<2x96xf32>
    %499 = vector.extract_strided_slice %498 {offsets = [0, 0], sizes = [2, 32], strides = [1, 1]} : vector<2x96xf32> to vector<2x32xf32>
    %500 = vector.extract_strided_slice %498 {offsets = [0, 32], sizes = [2, 32], strides = [1, 1]} : vector<2x96xf32> to vector<2x32xf32>
    %501 = vector.extract_strided_slice %498 {offsets = [0, 64], sizes = [2, 32], strides = [1, 1]} : vector<2x96xf32> to vector<2x32xf32>
    %502 = arith.addf %493, %499 : vector<2x32xf32>
    %503 = arith.negf %502 : vector<2x32xf32>
    %504 = math.exp %503 : vector<2x32xf32>
    %cst_99 = arith.constant 1.000000e+00 : f32
    %505 = vector.broadcast %cst_99 : f32 to vector<2x32xf32>
    %506 = arith.addf %505, %504 : vector<2x32xf32>
    %507 = arith.divf %505, %506 : vector<2x32xf32>
    %508 = arith.addf %494, %500 : vector<2x32xf32>
    %509 = arith.negf %508 : vector<2x32xf32>
    %510 = math.exp %509 : vector<2x32xf32>
    %cst_100 = arith.constant 1.000000e+00 : f32
    %511 = vector.broadcast %cst_100 : f32 to vector<2x32xf32>
    %512 = arith.addf %511, %510 : vector<2x32xf32>
    %513 = arith.divf %511, %512 : vector<2x32xf32>
    %514 = arith.mulf %507, %501 : vector<2x32xf32>
    %515 = arith.addf %495, %514 : vector<2x32xf32>
    %516 = math.tanh %515 : vector<2x32xf32>
    %cst_101 = arith.constant 1.000000e+00 : f32
    %517 = vector.broadcast %cst_101 : f32 to vector<2x32xf32>
    %518 = arith.subf %517, %513 : vector<2x32xf32>
    %519 = arith.mulf %518, %516 : vector<2x32xf32>
    %520 = arith.mulf %513, %459 : vector<2x32xf32>
    %521 = arith.addf %519, %520 : vector<2x32xf32>
    %522 = vector.extract_strided_slice %521 {offsets = [0, 0], sizes = [1, 32], strides = [1, 1]} : vector<2x32xf32> to vector<1x32xf32>
    %c0_102 = arith.constant 0 : index
    %c0_103 = arith.constant 0 : index
    %c0_104 = arith.constant 0 : index
    %523 = vector.load %arg10[%c0_102, %c0_103, %c0_104] : memref<2x2x32xf32, #tpu.memory_space<vmem>>, vector<1x2x32xf32>
    %524 = vector.shape_cast %523 : vector<1x2x32xf32> to vector<2x32xf32>
    %525 = vector.shape_cast %489 : vector<2x32xf32> to vector<1x2x32xf32>
    tpu.vector_store %arg10[%c0_102, %c0_103, %c0_104], %525 {strides = array<i32>} : memref<2x2x32xf32, #tpu.memory_space<vmem>>, vector<1x2x32xf32>,
    %c1_105 = arith.constant 1 : index
    %c0_106 = arith.constant 0 : index
    %c0_107 = arith.constant 0 : index
    %526 = vector.load %arg10[%c1_105, %c0_106, %c0_107] : memref<2x2x32xf32, #tpu.memory_space<vmem>>, vector<1x2x32xf32>
    %527 = vector.shape_cast %526 : vector<1x2x32xf32> to vector<2x32xf32>
    %528 = vector.shape_cast %521 : vector<2x32xf32> to vector<1x2x32xf32>
    tpu.vector_store %arg10[%c1_105, %c0_106, %c0_107], %528 {strides = array<i32>} : memref<2x2x32xf32, #tpu.memory_space<vmem>>, vector<1x2x32xf32>,
    %529 = tpu.concatenate %88, %150, %212, %274, %336, %398, %460, %522 in 0 : vector<1x32xf32>, vector<1x32xf32>, vector<1x32xf32>, vector<1x32xf32>, vector<1x32xf32>, vector<1x32xf32>, vector<1x32xf32>, vector<1x32xf32> -> vector<8x32xf32>
    %c0_108 = arith.constant 0 : index
    %c0_109 = arith.constant 0 : index
    %530 = vector.load %arg7[%c0_108, %c0_109] : memref<32x32xf32, #tpu.memory_space<vmem>>, vector<32x32xf32>
    %cst_110 = arith.constant dense<0.000000e+00> : vector<8x32xf32>
    %531 = tpu.matmul %529, %530, %cst_110 {dimension_numbers = #tpu.dot_dimension_numbers<[1], [0], [0], [1], [0, 0, 1, 1], [], []>} : vector<8x32xf32>, vector<32x32xf32>, vector<8x32xf32> -> vector<8x32xf32>
    %c0_111 = arith.constant 0 : index
    %c0_112 = arith.constant 0 : index
    %532 = vector.load %arg8[%c0_111, %c0_112] : memref<1x32xf32, #tpu.memory_space<vmem>>, vector<1x32xf32>
    %533 = vector.broadcast %532 : vector<1x32xf32> to vector<8x32xf32>
    %534 = arith.addf %531, %533 : vector<8x32xf32>
    %cst_113 = arith.constant dense<0xFF800000> : vector<8xf32>
    %535 = vector.multi_reduction <maximumf>, %534, %cst_113 [1] : vector<8x32xf32> to vector<8xf32>
    %536 = vector.shape_cast %535 : vector<8xf32> to vector<8x1xf32>
    %537 = vector.broadcast %536 : vector<8x1xf32> to vector<8x32xf32>
    %538 = arith.subf %534, %537 : vector<8x32xf32>
    %539 = math.exp %538 : vector<8x32xf32>
    %cst_114 = arith.constant dense<0.000000e+00> : vector<8xf32>
    %540 = vector.multi_reduction <add>, %539, %cst_114 [1] : vector<8x32xf32> to vector<8xf32>
    %541 = vector.shape_cast %540 : vector<8xf32> to vector<8x1xf32>
    %542 = math.log %541 : vector<8x1xf32>
    %543 = vector.broadcast %542 : vector<8x1xf32> to vector<8x32xf32>
    %544 = arith.subf %538, %543 : vector<8x32xf32>
    %c0_115 = arith.constant 0 : index
    %c0_116 = arith.constant 0 : index
    %545 = vector.load %arg9[%c0_115, %c0_116] : memref<8x32xf32, #tpu.memory_space<vmem>>, vector<8x32xf32>
    tpu.vector_store %arg9[%c0_115, %c0_116], %544 {strides = array<i32>} : memref<8x32xf32, #tpu.memory_space<vmem>>, vector<8x32xf32>,
    return
  }
  func.func @transform_0(%arg0: i32) -> (i32, i32) {
    %c0_i32 = arith.constant 0 : i32
    %c0_i32_0 = arith.constant 0 : i32
    %c0_i32_1 = arith.constant 0 : i32
    return %c0_i32, %c0_i32_0 : i32, i32
  }
  func.func @transform_1(%arg0: i32) -> (i32, i32, i32) {
    %c0_i32 = arith.constant 0 : i32
    %c0_i32_0 = arith.constant 0 : i32
    %c0_i32_1 = arith.constant 0 : i32
    %c0_i32_2 = arith.constant 0 : i32
    return %c0_i32, %c0_i32_0, %c0_i32_1 : i32, i32, i32
  }
  func.func @transform_2(%arg0: i32) -> (i32, i32, i32) {
    %c0_i32 = arith.constant 0 : i32
    %c0_i32_0 = arith.constant 0 : i32
    %c0_i32_1 = arith.constant 0 : i32
    %c0_i32_2 = arith.constant 0 : i32
    return %c0_i32, %c0_i32_0, %c0_i32_1 : i32, i32, i32
  }
  func.func @transform_3(%arg0: i32) -> (i32, i32, i32) {
    %c0_i32 = arith.constant 0 : i32
    %c0_i32_0 = arith.constant 0 : i32
    %c0_i32_1 = arith.constant 0 : i32
    %c0_i32_2 = arith.constant 0 : i32
    return %c0_i32, %c0_i32_0, %c0_i32_1 : i32, i32, i32
  }
  func.func @transform_4(%arg0: i32) -> (i32, i32, i32) {
    %c0_i32 = arith.constant 0 : i32
    %c0_i32_0 = arith.constant 0 : i32
    %c0_i32_1 = arith.constant 0 : i32
    %c0_i32_2 = arith.constant 0 : i32
    return %c0_i32, %c0_i32_0, %c0_i32_1 : i32, i32, i32
  }
  func.func @transform_5(%arg0: i32) -> (i32, i32, i32) {
    %c0_i32 = arith.constant 0 : i32
    %c0_i32_0 = arith.constant 0 : i32
    %c0_i32_1 = arith.constant 0 : i32
    %c0_i32_2 = arith.constant 0 : i32
    return %c0_i32, %c0_i32_0, %c0_i32_1 : i32, i32, i32
  }
  func.func @transform_6(%arg0: i32) -> (i32, i32) {
    %c0_i32 = arith.constant 0 : i32
    %c0_i32_0 = arith.constant 0 : i32
    %c0_i32_1 = arith.constant 0 : i32
    return %c0_i32, %c0_i32_0 : i32, i32
  }
  func.func @transform_7(%arg0: i32) -> (i32, i32) {
    %c0_i32 = arith.constant 0 : i32
    %c0_i32_0 = arith.constant 0 : i32
    %c0_i32_1 = arith.constant 0 : i32
    return %c0_i32, %c0_i32_0 : i32, i32
  }
  func.func @transform_8(%arg0: i32) -> (i32, i32) {
    %c0_i32 = arith.constant 0 : i32
    %c0_i32_0 = arith.constant 0 : i32
    %c0_i32_1 = arith.constant 0 : i32
    return %c0_i32, %c0_i32_0 : i32, i32
  }
  func.func @transform_9(%arg0: i32) -> (i32, i32, i32) {
    %c0_i32 = arith.constant 0 : i32
    %c0_i32_0 = arith.constant 0 : i32
    %c0_i32_1 = arith.constant 0 : i32
    %c0_i32_2 = arith.constant 0 : i32
    return %c0_i32, %c0_i32_0, %c0_i32_1 : i32, i32, i32
  }
}

</mosaic_0001>

<llo_original>
// kernel: tpu_custom_call.1
$region0: #{tpu_custom_call.1}
  #allocation0 [shape = 'u32[]', space=smem, size = 0x4, offset = 0x4, fixed_abs, tag = 'smem constant byte address 0x4 - core index']
  #allocation1 [shape = 'u32[144,128]{1,0:T(1,128)}', space=vmem, size = 0x12000, scoped, tag = 'internal scratch']
  %s0 = inlined_call_operand.hbm [shape: f32[16,32], index: 0, kind: input, shape index: {}]
  %s1 = inlined_call_operand.hbm [shape: f32[2,2,32], index: 1, kind: input, shape index: {}]
  %s2 = inlined_call_operand.hbm [shape: f32[2,32,96], index: 2, kind: input, shape index: {}]
  %s3 = inlined_call_operand.hbm [shape: f32[2,32,96], index: 3, kind: input, shape index: {}]
  %s4 = inlined_call_operand.vmem [shape: f32[2,1,96], index: 4, kind: input, shape index: {}]
  %s5 = inlined_call_operand.vmem [shape: f32[2,1,96], index: 5, kind: input, shape index: {}]
  %s6 = inlined_call_operand.hbm [shape: f32[32,32], index: 6, kind: input, shape index: {}]
  %s7 = inlined_call_operand.vmem [shape: f32[1,32], index: 7, kind: input, shape index: {}]
  %s8 = inlined_call_operand.hbm [shape: f32[8,32], index: 8, kind: output, shape index: {0}]
  %s9 = inlined_call_operand.hbm [shape: f32[2,2,32], index: 9, kind: output, shape index: {1}]
  %10 = xla_tuple %s8, %s9
  %s11 = sld [smem:[#allocation0]]
  $region70: #{tpu_custom_call.1} parent=0
    _
  %s13 = ssub.s32 1, %s11
  %s14 = scalar_select 0, %s13, %s11
  $region1: #{tpu_custom_call.1} parent=0
    #allocation2 [shape = 'u8[8192]{0}', space=vmem, size = 0x2000, scoped, tag = 'input window, operand 0, single buffered']
    #allocation3 [shape = 's32[1]{0}', space=sflag, size = 0x4, scoped, tag = 'scoped memory for tpu_custom_call.1']
    #allocation4 [shape = 's32[1]{0}', space=sflag, size = 0x4, scoped, tag = 'scoped memory for tpu_custom_call.1']
    #allocation5 [shape = 'u8[2048]{0}', space=vmem, size = 0x800, scoped, tag = 'input window, operand 1, single buffered']
    #allocation6 [shape = 's32[1]{0}', space=sflag, size = 0x4, scoped, tag = 'scoped memory for tpu_custom_call.1']
    #allocation7 [shape = 'u8[32768]{0}', space=vmem, size = 0x8000, scoped, tag = 'input window, operand 2, single buffered']
    #allocation8 [shape = 'u8[32768]{0}', space=vmem, size = 0x8000, scoped, tag = 'input window, operand 3, single buffered']
    #allocation9 [shape = 's32[1]{0}', space=sflag, size = 0x4, scoped, tag = 'scoped memory for tpu_custom_call.1']
    #allocation10 [shape = 'u8[16384]{0}', space=vmem, size = 0x4000, scoped, tag = 'input window, operand 6, single buffered']
    #allocation11 [shape = 'u8[4096]{0}', space=vmem, size = 0x1000, scoped, tag = 'output window, operand 0, single buffered']
    #allocation12 [shape = 'u8[2048]{0}', space=vmem, size = 0x800, scoped, tag = 'output window, operand 1, single buffered']
    #allocation13 [shape = 's32[1]{0}', space=sflag, size = 0x4, scoped, tag = 'scoped memory for tpu_custom_call.1']
    %15 = vsyncpa [#allocation3], 0
    %16 = vsyncpa [#allocation6], 0
    %17 = vsyncpa [#allocation9], 0
    %18 = vsyncpa [#allocation4], 0
    %19 = vsyncpa [#allocation13], 0
    // Predicated region
    $region2: #{tpu_custom_call.1} parent=1 // pred_check
      _
    $region3: #{tpu_custom_call.1} parent=1 // pred_check_branch
      %21 = sbr.rel (0) target = $region5
    $region4: #{tpu_custom_call.1} parent=1 // pred_region
      %s23 = ssub.s32 256, 256
      %24 = vsyncadd [#allocation3], %s23
      %s25 = sshll.u32 [#allocation2], 4
      %s26 = int_to_ptr.vmem [resolvable:$true] %s25
      %31 = dma.hbm_to_vmem [thread:$0]  %s0, 256, %s26, [#allocation3], 128, 128, 8
    $region5: #{tpu_custom_call.1} parent=1 // pred_fallthru
      _
    // Predicated region
    $region6: #{tpu_custom_call.1} parent=1 // pred_check
      _
    $region7: #{tpu_custom_call.1} parent=1 // pred_check_branch
      %33 = sbr.rel (0) target = $region9
    $region8: #{tpu_custom_call.1} parent=1 // pred_region
      %s35 = ssub.s32 64, 64
      %36 = vsyncadd [#allocation6], %s35
      %s37 = sshll.u32 [#allocation5], 4
      %s38 = int_to_ptr.vmem [resolvable:$true] %s37
      %43 = dma.hbm_to_vmem [thread:$0]  %s1, 64, %s38, [#allocation6], 32, 32, 2
    $region9: #{tpu_custom_call.1} parent=1 // pred_fallthru
      _
    // Predicated region
    $region10: #{tpu_custom_call.1} parent=1 // pred_check
      _
    $region11: #{tpu_custom_call.1} parent=1 // pred_check_branch
      %45 = sbr.rel (0) target = $region13
    $region12: #{tpu_custom_call.1} parent=1 // pred_region
      %s47 = ssub.s32 1024, 1024
      %48 = vsyncadd [#allocation6], %s47
      %s49 = sshll.u32 [#allocation7], 4
      %s50 = int_to_ptr.vmem [resolvable:$true] %s49
      %55 = dma.hbm_to_vmem [thread:$0]  %s2, 1024, %s50, [#allocation6], 128, 128, 8
    $region13: #{tpu_custom_call.1} parent=1 // pred_fallthru
      _
    // Predicated region
    $region14: #{tpu_custom_call.1} parent=1 // pred_check
      _
    $region15: #{tpu_custom_call.1} parent=1 // pred_check_branch
      %57 = sbr.rel (0) target = $region17
    $region16: #{tpu_custom_call.1} parent=1 // pred_region
      %s59 = ssub.s32 1024, 1024
      %60 = vsyncadd [#allocation9], %s59
      %s61 = sshll.u32 [#allocation8], 4
      %s62 = int_to_ptr.vmem [resolvable:$true] %s61
      %67 = dma.hbm_to_vmem [thread:$0]  %s3, 1024, %s62, [#allocation9], 128, 128, 8
    $region17: #{tpu_custom_call.1} parent=1 // pred_fallthru
      _
    // Predicated region
    $region18: #{tpu_custom_call.1} parent=1 // pred_check
      _
    $region19: #{tpu_custom_call.1} parent=1 // pred_check_branch
      %69 = sbr.rel (0) target = $region21
    $region20: #{tpu_custom_call.1} parent=1 // pred_region
      _
    $region21: #{tpu_custom_call.1} parent=1 // pred_fallthru
      _
    // Predicated region
    $region22: #{tpu_custom_call.1} parent=1 // pred_check
      _
    $region23: #{tpu_custom_call.1} parent=1 // pred_check_branch
      %71 = sbr.rel (0) target = $region25
    $region24: #{tpu_custom_call.1} parent=1 // pred_region
      _
    $region25: #{tpu_custom_call.1} parent=1 // pred_fallthru
      _
    // Predicated region
    $region26: #{tpu_custom_call.1} parent=1 // pred_check
      _
    $region27: #{tpu_custom_call.1} parent=1 // pred_check_branch
      %73 = sbr.rel (0) target = $region29
    $region28: #{tpu_custom_call.1} parent=1 // pred_region
      %s75 = ssub.s32 512, 512
      %76 = vsyncadd [#allocation9], %s75
      %s77 = sshll.u32 [#allocation10], 4
      %s78 = int_to_ptr.vmem [resolvable:$true] %s77
      %83 = dma.hbm_to_vmem [thread:$0]  %s6, 512, %s78, [#allocation9], 128, 128, 8
    $region29: #{tpu_custom_call.1} parent=1 // pred_fallthru
      _
    // Predicated region
    $region30: #{tpu_custom_call.1} parent=1 // pred_check
      _
    $region31: #{tpu_custom_call.1} parent=1 // pred_check_branch
      %85 = sbr.rel (0) target = $region33
    $region32: #{tpu_custom_call.1} parent=1 // pred_region
      _
    $region33: #{tpu_custom_call.1} parent=1 // pred_fallthru
      _
    // Predicated region
    $region34: #{tpu_custom_call.1} parent=1 // pred_check
      _
    $region35: #{tpu_custom_call.1} parent=1 // pred_check_branch
      %87 = sbr.rel (0) target = $region37
    $region36: #{tpu_custom_call.1} parent=1 // pred_region
      %88 = dma.done [#allocation3], 256
    $region37: #{tpu_custom_call.1} parent=1 // pred_fallthru
      _
    // Predicated region
    $region38: #{tpu_custom_call.1} parent=1 // pred_check
      _
    $region39: #{tpu_custom_call.1} parent=1 // pred_check_branch
      %90 = sbr.rel (0) target = $region41
    $region40: #{tpu_custom_call.1} parent=1 // pred_region
      %91 = dma.done [#allocation6], 64
    $region41: #{tpu_custom_call.1} parent=1 // pred_fallthru
      _
    // Predicated region
    $region42: #{tpu_custom_call.1} parent=1 // pred_check
      _
    $region43: #{tpu_custom_call.1} parent=1 // pred_check_branch
      %93 = sbr.rel (0) target = $region45
    $region44: #{tpu_custom_call.1} parent=1 // pred_region
      %94 = dma.done [#allocation6], 1024
    $region45: #{tpu_custom_call.1} parent=1 // pred_fallthru
      _
    // Predicated region
    $region46: #{tpu_custom_call.1} parent=1 // pred_check
      _
    $region47: #{tpu_custom_call.1} parent=1 // pred_check_branch
      %96 = sbr.rel (0) target = $region49
    $region48: #{tpu_custom_call.1} parent=1 // pred_region
      %97 = dma.done [#allocation9], 1024
    $region49: #{tpu_custom_call.1} parent=1 // pred_fallthru
      _
    // Predicated region
    $region50: #{tpu_custom_call.1} parent=1 // pred_check
      _
    $region51: #{tpu_custom_call.1} parent=1 // pred_check_branch
      %99 = sbr.rel (0) target = $region53
    $region52: #{tpu_custom_call.1} parent=1 // pred_region
      %100 = dma.done [#allocation9], 512
    $region53: #{tpu_custom_call.1} parent=1 // pred_fallthru
      _
    %v101 = vld [vmem:[#allocation7] sm:$0xff]
    %v102 = vld [vmem:[#allocation7 + $0x8] sm:$0xff]
    %v103 = vld [vmem:[#allocation7 + $0x10] sm:$0xff]
    %v104 = vld [vmem:[#allocation7 + $0x18] sm:$0xff]
    %s105 = scalar_lea.vmem [#allocation7], 32
    %v106 = vld [vmem:[%s105] sm:$0xff]
    %v107 = vld [vmem:[%s105 + $0x8] sm:$0xff]
    %v108 = vld [vmem:[%s105 + $0x10] sm:$0xff]
    %v109 = vld [vmem:[%s105 + $0x18] sm:$0xff]
    %v110 = vld [vmem:[#allocation8] sm:$0xff]
    %v111 = vld [vmem:[#allocation8 + $0x8] sm:$0xff]
    %v112 = vld [vmem:[#allocation8 + $0x10] sm:$0xff]
    %v113 = vld [vmem:[#allocation8 + $0x18] sm:$0xff]
    %s114 = scalar_lea.vmem [#allocation8], 32
    %v115 = vld [vmem:[%s114] sm:$0xff]
    %v116 = vld [vmem:[%s114 + $0x8] sm:$0xff]
    %v117 = vld [vmem:[%s114 + $0x10] sm:$0xff]
    %v118 = vld [vmem:[%s114 + $0x18] sm:$0xff]
    %v119 = vld [vmem:[%s4] sm:$0x1]
    %s120 = scalar_lea.vmem %s4, 1
    %v121 = vld [vmem:[%s120] sm:$0x1]
    %v122 = vld [vmem:[%s5] sm:$0x1]
    %s123 = scalar_lea.vmem %s5, 1
    %v124 = vld [vmem:[%s123] sm:$0x1]
    %v125 = vld [vmem:[#allocation2] sm:$0xff]
    %v126 = vld [vmem:[#allocation2 + $0x8] sm:$0xff]
    %v128 = vlaneseq
    %v129 = vshrl.u32 %v128, 7
    %v130 = vsub.s32 0, %v129
    %v131 = vrot.slane %v119, %v130
    %vm133 = vcmask 261120
    %v135 = vsel %vm133, %v125, 0
    %v138 = vsel %vm133, %v126, 0
    %140 = vmatprep.subr.mxu0 0.0
    %141 = vmatpush1.msra.mxu0 %v101
    %142 = vmatprep.subr.mxu0 0.0
    %143 = vmatpush1.msra.mxu0 %v102
    %144 = vmatprep.subr.mxu0 0.0
    %145 = vmatpush1.msra.mxu0 %v103
    %146 = vmatprep.subr.mxu0 0.0
    %147 = vmatpush1.msra.mxu0 %v104
    %148 = vmatprep.subr.mxu0 0.0
    %149 = vmatpush1.msra.mxu0 0.0
    %150 = vmatprep.subr.mxu0 0.0
    %151 = vmatpush1.msra.mxu0 0.0
    %152 = vmatprep.subr.mxu0 0.0
    %153 = vmatpush1.msra.mxu0 0.0
    %154 = vmatprep.subr.mxu0 0.0
    %155 = vmatpush1.msra.mxu0 0.0
    %156 = vmatprep.subr.mxu0 0.0
    %157 = vmatpush1.msra.mxu0 0.0
    %158 = vmatprep.subr.mxu0 0.0
    %159 = vmatpush1.msra.mxu0 0.0
    %160 = vmatprep.subr.mxu0 0.0
    %161 = vmatpush1.msra.mxu0 0.0
    %162 = vmatprep.subr.mxu0 0.0
    %163 = vmatpush1.msra.mxu0 0.0
    %164 = vmatprep.subr.mxu0 0.0
    %165 = vmatpush1.msra.mxu0 0.0
    %166 = vmatprep.subr.mxu0 0.0
    %167 = vmatpush1.msra.mxu0 0.0
    %168 = vmatprep.subr.mxu0 0.0
    %169 = vmatpush1.msra.mxu0 0.0
    %170 = vmatprep.subr.mxu0 0.0
    %171 = vmatpush1.msra.mxu0 0.0
    %172 = vmatprep.subr.mxu0 0.0
    %173 = vmatpush1.msra.mxu0 0.0
    %174 = vmatprep.subr.mxu0 0.0
    %175 = vmatpush1.msra.mxu0 0.0
    %176 = vmatprep.subr.mxu0 0.0
    %177 = vmatpush1.msra.mxu0 0.0
    %178 = vmatprep.subr.mxu0 0.0
    %179 = vmatpush1.msra.mxu0 0.0
    %180 = vmatprep.subr.mxu0 0.0
    %181 = vmatpush1.msra.mxu0 0.0
    %182 = vmatprep.subr.mxu0 0.0
    %183 = vmatpush1.msra.mxu0 0.0
    %184 = vmatprep.subr.mxu0 0.0
    %185 = vmatpush1.msra.mxu0 0.0
    %186 = vmatprep.subr.mxu0 0.0
    %187 = vmatpush1.msra.mxu0 0.0
    %188 = vmatprep.subr.mxu0 0.0
    %189 = vmatpush1.msra.mxu0 0.0
    %190 = vmatprep.subr.mxu0 0.0
    %191 = vmatpush1.msra.mxu0 0.0
    %192 = vmatprep.subr.mxu0 0.0
    %193 = vmatpush1.msra.mxu0 0.0
    %194 = vmatprep.subr.mxu0 0.0
    %195 = vmatpush1.msra.mxu0 0.0
    %196 = vmatprep.subr.mxu0 0.0
    %197 = vmatpush1.msra.mxu0 0.0
    %198 = vmatprep.subr.mxu0 0.0
    %199 = vmatpush1.msra.mxu0 0.0
    %200 = vmatprep.subr.mxu0 0.0
    %201 = vmatpush1.msra.mxu0 0.0
    %202 = vmatprep.subr.mxu0 0.0
    %203 = vmatpush1.msra.mxu0 0.0
    %204 = vmatprep.mubr.f32.mxu0 0.0
    %205 = vmatmul.mubr.f32.gmra.mrb[0].mxu0 %v135
    %v206 = vpop.f32.mrb[0].mxu0
    %v207 = vadd.f32 %v131, %v206
    %v208 = vpop.f32.mrb[0].mxu0
    %209 = vmatprep.mubr.f32.mxu0 0.0
    %210 = vmatmul.mubr.f32.gmra.mrb[0].mxu0 %v138
    %v211 = vpop.f32.mrb[0].mxu0
    %v212 = vadd.f32 %v131, %v211
    %v213 = vpop.f32.mrb[0].mxu0
    %214 = vdwg.mxu0
    %v215 = vld [vmem:[#allocation5] sm:$0x3]
    %s216 = scalar_lea.vmem [#allocation5], 2
    %v217 = vld [vmem:[%s216] sm:$0x3]
    %v219 = vlaneseq
    %v220 = vshrl.u32 %v219, 7
    %v221 = vsub.s32 0, %v220
    %v222 = vrot.slane %v122, %v221
    %v225 = vsel %vm133, %v215, 0
    %227 = vmatprep.subr.mxu0 0.0
    %228 = vmatpush1.msra.mxu0 %v110
    %229 = vmatprep.subr.mxu0 0.0
    %230 = vmatpush1.msra.mxu0 %v111
    %231 = vmatprep.subr.mxu0 0.0
    %232 = vmatpush1.msra.mxu0 %v112
    %233 = vmatprep.subr.mxu0 0.0
    %234 = vmatpush1.msra.mxu0 %v113
    %235 = vmatprep.subr.mxu0 0.0
    %236 = vmatpush1.msra.mxu0 0.0
    %237 = vmatprep.subr.mxu0 0.0
    %238 = vmatpush1.msra.mxu0 0.0
    %239 = vmatprep.subr.mxu0 0.0
    %240 = vmatpush1.msra.mxu0 0.0
    %241 = vmatprep.subr.mxu0 0.0
    %242 = vmatpush1.msra.mxu0 0.0
    %243 = vmatprep.subr.mxu0 0.0
    %244 = vmatpush1.msra.mxu0 0.0
    %245 = vmatprep.subr.mxu0 0.0
    %246 = vmatpush1.msra.mxu0 0.0
    %247 = vmatprep.subr.mxu0 0.0
    %248 = vmatpush1.msra.mxu0 0.0
    %249 = vmatprep.subr.mxu0 0.0
    %250 = vmatpush1.msra.mxu0 0.0
    %251 = vmatprep.subr.mxu0 0.0
    %252 = vmatpush1.msra.mxu0 0.0
    %253 = vmatprep.subr.mxu0 0.0
    %254 = vmatpush1.msra.mxu0 0.0
    %255 = vmatprep.subr.mxu0 0.0
    %256 = vmatpush1.msra.mxu0 0.0
    %257 = vmatprep.subr.mxu0 0.0
    %258 = vmatpush1.msra.mxu0 0.0
    %259 = vmatprep.subr.mxu0 0.0
    %260 = vmatpush1.msra.mxu0 0.0
    %261 = vmatprep.subr.mxu0 0.0
    %262 = vmatpush1.msra.mxu0 0.0
    %263 = vmatprep.subr.mxu0 0.0
    %264 = vmatpush1.msra.mxu0 0.0
    %265 = vmatprep.subr.mxu0 0.0
    %266 = vmatpush1.msra.mxu0 0.0
    %267 = vmatprep.subr.mxu0 0.0
    %268 = vmatpush1.msra.mxu0 0.0
    %269 = vmatprep.subr.mxu0 0.0
    %270 = vmatpush1.msra.mxu0 0.0
    %271 = vmatprep.subr.mxu0 0.0
    %272 = vmatpush1.msra.mxu0 0.0
    %273 = vmatprep.subr.mxu0 0.0
    %274 = vmatpush1.msra.mxu0 0.0
    %275 = vmatprep.subr.mxu0 0.0
    %276 = vmatpush1.msra.mxu0 0.0
    %277 = vmatprep.subr.mxu0 0.0
    %278 = vmatpush1.msra.mxu0 0.0
    %279 = vmatprep.subr.mxu0 0.0
    %280 = vmatpush1.msra.mxu0 0.0
    %281 = vmatprep.subr.mxu0 0.0
    %282 = vmatpush1.msra.mxu0 0.0
    %283 = vmatprep.subr.mxu0 0.0
    %284 = vmatpush1.msra.mxu0 0.0
    %285 = vmatprep.subr.mxu0 0.0
    %286 = vmatpush1.msra.mxu0 0.0
    %287 = vmatprep.subr.mxu0 0.0
    %288 = vmatpush1.msra.mxu0 0.0
    %289 = vmatprep.subr.mxu0 0.0
    %290 = vmatpush1.msra.mxu0 0.0
    %291 = vmatprep.mubr.f32.mxu0 0.0
    %292 = vmatmul.mubr.f32.gmra.mrb[0].mxu0 %v225
    %v293 = vpop.f32.mrb[0].mxu0
    %v294 = vadd.f32 %v222, %v293
    %v295 = vpop.f32.mrb[0].mxu0
    %296 = vdwg.mxu0
    %v297 = vadd.f32 %v207, %v294
    %v298 = vxor.u32 %v297, 2147483648
    %v299 = vmul.f32 %v298, 1.442695
    %v300 = vpow.pop %v299
    %v301 = vadd.f32 %v300, 1.0
    %v302 = vrcp.pop %v301
    %v303 = vmul.f32 1.0, %v302
    %305 = vrot.lane.b32.xlu0 %v294, 64
    %v306 = vpop.permute.xlu0 %305
    %v308 = vmul.f32 %v303, %v306
    %310 = vrot.lane.b32.xlu0 %v308, 64
    %v311 = vpop.permute.xlu0 %310
    %v313 = vadd.f32 %v207, %v311
    %v314 = vtanh.pop %v313
    %v315 = vsub.f32 1.0, %v303
    %317 = vrot.lane.b32.xlu0 %v314, 96
    %v318 = vpop.permute.xlu0 %317
    %v320 = vmul.f32 %v315, %v318
    %321 = vrot.lane.b32.xlu0 %v215, 32
    %v322 = vpop.permute.xlu0 %321
    %v324 = vmul.f32 %v303, %v322
    %v325 = vadd.f32 %v320, %v324
    %v327 = vlaneseq
    %v328 = vshrl.u32 %v327, 7
    %v329 = vsub.s32 0, %v328
    %v330 = vrot.slane %v121, %v329
    %333 = vrot.lane.b32.xlu0 %v325, 96
    %v334 = vpop.permute.xlu0 %333
    %v335 = vsel %vm133, %v334, 0
    %337 = vmatprep.subr.mxu0 0.0
    %338 = vmatpush1.msra.mxu0 %v106
    %339 = vmatprep.subr.mxu0 0.0
    %340 = vmatpush1.msra.mxu0 %v107
    %341 = vmatprep.subr.mxu0 0.0
    %342 = vmatpush1.msra.mxu0 %v108
    %343 = vmatprep.subr.mxu0 0.0
    %344 = vmatpush1.msra.mxu0 %v109
    %345 = vmatprep.subr.mxu0 0.0
    %346 = vmatpush1.msra.mxu0 0.0
    %347 = vmatprep.subr.mxu0 0.0
    %348 = vmatpush1.msra.mxu0 0.0
    %349 = vmatprep.subr.mxu0 0.0
    %350 = vmatpush1.msra.mxu0 0.0
    %351 = vmatprep.subr.mxu0 0.0
    %352 = vmatpush1.msra.mxu0 0.0
    %353 = vmatprep.subr.mxu0 0.0
    %354 = vmatpush1.msra.mxu0 0.0
    %355 = vmatprep.subr.mxu0 0.0
    %356 = vmatpush1.msra.mxu0 0.0
    %357 = vmatprep.subr.mxu0 0.0
    %358 = vmatpush1.msra.mxu0 0.0
    %359 = vmatprep.subr.mxu0 0.0
    %360 = vmatpush1.msra.mxu0 0.0
    %361 = vmatprep.subr.mxu0 0.0
    %362 = vmatpush1.msra.mxu0 0.0
    %363 = vmatprep.subr.mxu0 0.0
    %364 = vmatpush1.msra.mxu0 0.0
    %365 = vmatprep.subr.mxu0 0.0
    %366 = vmatpush1.msra.mxu0 0.0
    %367 = vmatprep.subr.mxu0 0.0
    %368 = vmatpush1.msra.mxu0 0.0
    %369 = vmatprep.subr.mxu0 0.0
    %370 = vmatpush1.msra.mxu0 0.0
    %371 = vmatprep.subr.mxu0 0.0
    %372 = vmatpush1.msra.mxu0 0.0
    %373 = vmatprep.subr.mxu0 0.0
    %374 = vmatpush1.msra.mxu0 0.0
    %375 = vmatprep.subr.mxu0 0.0
    %376 = vmatpush1.msra.mxu0 0.0
    %377 = vmatprep.subr.mxu0 0.0
    %378 = vmatpush1.msra.mxu0 0.0
    %379 = vmatprep.subr.mxu0 0.0
    %380 = vmatpush1.msra.mxu0 0.0
    %381 = vmatprep.subr.mxu0 0.0
    %382 = vmatpush1.msra.mxu0 0.0
    %383 = vmatprep.subr.mxu0 0.0
    %384 = vmatpush1.msra.mxu0 0.0
    %385 = vmatprep.subr.mxu0 0.0
    %386 = vmatpush1.msra.mxu0 0.0
    %387 = vmatprep.subr.mxu0 0.0
    %388 = vmatpush1.msra.mxu0 0.0
    %389 = vmatprep.subr.mxu0 0.0
    %390 = vmatpush1.msra.mxu0 0.0
    %391 = vmatprep.subr.mxu0 0.0
    %392 = vmatpush1.msra.mxu0 0.0
    %393 = vmatprep.subr.mxu0 0.0
    %394 = vmatpush1.msra.mxu0 0.0
    %395 = vmatprep.subr.mxu0 0.0
    %396 = vmatpush1.msra.mxu0 0.0
    %397 = vmatprep.subr.mxu0 0.0
    %398 = vmatpush1.msra.mxu0 0.0
    %399 = vmatprep.subr.mxu0 0.0
    %400 = vmatpush1.msra.mxu0 0.0
    %401 = vmatprep.mubr.f32.mxu0 0.0
    %402 = vmatmul.mubr.f32.gmra.mrb[0].mxu0 %v335
    %v403 = vpop.f32.mrb[0].mxu0
    %v404 = vadd.f32 %v330, %v403
    %v405 = vpop.f32.mrb[0].mxu0
    %406 = vdwg.mxu0
    %v408 = vlaneseq
    %v409 = vshrl.u32 %v408, 7
    %v410 = vsub.s32 0, %v409
    %v411 = vrot.slane %v124, %v410
    %v414 = vsel %vm133, %v217, 0
    %416 = vmatprep.subr.mxu0 0.0
    %417 = vmatpush1.msra.mxu0 %v115
    %418 = vmatprep.subr.mxu0 0.0
    %419 = vmatpush1.msra.mxu0 %v116
    %420 = vmatprep.subr.mxu0 0.0
    %421 = vmatpush1.msra.mxu0 %v117
    %422 = vmatprep.subr.mxu0 0.0
    %423 = vmatpush1.msra.mxu0 %v118
    %424 = vmatprep.subr.mxu0 0.0
    %425 = vmatpush1.msra.mxu0 0.0
    %426 = vmatprep.subr.mxu0 0.0
    %427 = vmatpush1.msra.mxu0 0.0
    %428 = vmatprep.subr.mxu0 0.0
    %429 = vmatpush1.msra.mxu0 0.0
    %430 = vmatprep.subr.mxu0 0.0
    %431 = vmatpush1.msra.mxu0 0.0
    %432 = vmatprep.subr.mxu0 0.0
    %433 = vmatpush1.msra.mxu0 0.0
    %434 = vmatprep.subr.mxu0 0.0
    %435 = vmatpush1.msra.mxu0 0.0
    %436 = vmatprep.subr.mxu0 0.0
    %437 = vmatpush1.msra.mxu0 0.0
    %438 = vmatprep.subr.mxu0 0.0
    %439 = vmatpush1.msra.mxu0 0.0
    %440 = vmatprep.subr.mxu0 0.0
    %441 = vmatpush1.msra.mxu0 0.0
    %442 = vmatprep.subr.mxu0 0.0
    %443 = vmatpush1.msra.mxu0 0.0
    %444 = vmatprep.subr.mxu0 0.0
    %445 = vmatpush1.msra.mxu0 0.0
    %446 = vmatprep.subr.mxu0 0.0
    %447 = vmatpush1.msra.mxu0 0.0
    %448 = vmatprep.subr.mxu0 0.0
    %449 = vmatpush1.msra.mxu0 0.0
    %450 = vmatprep.subr.mxu0 0.0
    %451 = vmatpush1.msra.mxu0 0.0
    %452 = vmatprep.subr.mxu0 0.0
    %453 = vmatpush1.msra.mxu0 0.0
    %454 = vmatprep.subr.mxu0 0.0
    %455 = vmatpush1.msra.mxu0 0.0
    %456 = vmatprep.subr.mxu0 0.0
    %457 = vmatpush1.msra.mxu0 0.0
    %458 = vmatprep.subr.mxu0 0.0
    %459 = vmatpush1.msra.mxu0 0.0
    %460 = vmatprep.subr.mxu0 0.0
    %461 = vmatpush1.msra.mxu0 0.0
    %462 = vmatprep.subr.mxu0 0.0
    %463 = vmatpush1.msra.mxu0 0.0
    %464 = vmatprep.subr.mxu0 0.0
    %465 = vmatpush1.msra.mxu0 0.0
    %466 = vmatprep.subr.mxu0 0.0
    %467 = vmatpush1.msra.mxu0 0.0
    %468 = vmatprep.subr.mxu0 0.0
    %469 = vmatpush1.msra.mxu0 0.0
    %470 = vmatprep.subr.mxu0 0.0
    %471 = vmatpush1.msra.mxu0 0.0
    %472 = vmatprep.subr.mxu0 0.0
    %473 = vmatpush1.msra.mxu0 0.0
    %474 = vmatprep.subr.mxu0 0.0
    %475 = vmatpush1.msra.mxu0 0.0
    %476 = vmatprep.subr.mxu0 0.0
    %477 = vmatpush1.msra.mxu0 0.0
    %478 = vmatprep.subr.mxu0 0.0
    %479 = vmatpush1.msra.mxu0 0.0
    %480 = vmatprep.mubr.f32.mxu0 0.0
    %481 = vmatmul.mubr.f32.gmra.mrb[0].mxu0 %v414
    %v482 = vpop.f32.mrb[0].mxu0
    %v483 = vadd.f32 %v411, %v482
    %v484 = vpop.f32.mrb[0].mxu0
    %485 = vdwg.mxu0
    %v486 = vadd.f32 %v404, %v483
    %v487 = vxor.u32 %v486, 2147483648
    %v488 = vmul.f32 %v487, 1.442695
    %v489 = vpow.pop %v488
    %v490 = vadd.f32 %v489, 1.0
    %v491 = vrcp.pop %v490
    %v492 = vmul.f32 1.0, %v491
    %494 = vrot.lane.b32.xlu0 %v483, 64
    %v495 = vpop.permute.xlu0 %494
    %v497 = vmul.f32 %v492, %v495
    %499 = vrot.lane.b32.xlu0 %v497, 64
    %v500 = vpop.permute.xlu0 %499
    %v502 = vadd.f32 %v404, %v500
    %v503 = vtanh.pop %v502
    %v504 = vsub.f32 1.0, %v492
    %506 = vrot.lane.b32.xlu0 %v503, 96
    %v507 = vpop.permute.xlu0 %506
    %v509 = vmul.f32 %v504, %v507
    %510 = vrot.lane.b32.xlu0 %v217, 32
    %v511 = vpop.permute.xlu0 %510
    %v513 = vmul.f32 %v492, %v511
    %v514 = vadd.f32 %v509, %v513
    %515 = vmatprep.subr.mxu0 0.0
    %516 = vmatpush1.msra.mxu0 %v110
    %517 = vmatprep.subr.mxu0 0.0
    %518 = vmatpush1.msra.mxu0 %v111
    %519 = vmatprep.subr.mxu0 0.0
    %520 = vmatpush1.msra.mxu0 %v112
    %521 = vmatprep.subr.mxu0 0.0
    %522 = vmatpush1.msra.mxu0 %v113
    %523 = vmatprep.subr.mxu0 0.0
    %524 = vmatpush1.msra.mxu0 0.0
    %525 = vmatprep.subr.mxu0 0.0
    %526 = vmatpush1.msra.mxu0 0.0
    %527 = vmatprep.subr.mxu0 0.0
    %528 = vmatpush1.msra.mxu0 0.0
    %529 = vmatprep.subr.mxu0 0.0
    %530 = vmatpush1.msra.mxu0 0.0
    %531 = vmatprep.subr.mxu0 0.0
    %532 = vmatpush1.msra.mxu0 0.0
    %533 = vmatprep.subr.mxu0 0.0
    %534 = vmatpush1.msra.mxu0 0.0
    %535 = vmatprep.subr.mxu0 0.0
    %536 = vmatpush1.msra.mxu0 0.0
    %537 = vmatprep.subr.mxu0 0.0
    %538 = vmatpush1.msra.mxu0 0.0
    %539 = vmatprep.subr.mxu0 0.0
    %540 = vmatpush1.msra.mxu0 0.0
    %541 = vmatprep.subr.mxu0 0.0
    %542 = vmatpush1.msra.mxu0 0.0
    %543 = vmatprep.subr.mxu0 0.0
    %544 = vmatpush1.msra.mxu0 0.0
    %545 = vmatprep.subr.mxu0 0.0
    %546 = vmatpush1.msra.mxu0 0.0
    %547 = vmatprep.subr.mxu0 0.0
    %548 = vmatpush1.msra.mxu0 0.0
    %549 = vmatprep.subr.mxu0 0.0
    %550 = vmatpush1.msra.mxu0 0.0
    %551 = vmatprep.subr.mxu0 0.0
    %552 = vmatpush1.msra.mxu0 0.0
    %553 = vmatprep.subr.mxu0 0.0
    %554 = vmatpush1.msra.mxu0 0.0
    %555 = vmatprep.subr.mxu0 0.0
    %556 = vmatpush1.msra.mxu0 0.0
    %557 = vmatprep.subr.mxu0 0.0
    %558 = vmatpush1.msra.mxu0 0.0
    %559 = vmatprep.subr.mxu0 0.0
    %560 = vmatpush1.msra.mxu0 0.0
    %561 = vmatprep.subr.mxu0 0.0
    %562 = vmatpush1.msra.mxu0 0.0
    %563 = vmatprep.subr.mxu0 0.0
    %564 = vmatpush1.msra.mxu0 0.0
    %565 = vmatprep.subr.mxu0 0.0
    %566 = vmatpush1.msra.mxu0 0.0
    %567 = vmatprep.subr.mxu0 0.0
    %568 = vmatpush1.msra.mxu0 0.0
    %569 = vmatprep.subr.mxu0 0.0
    %570 = vmatpush1.msra.mxu0 0.0
    %571 = vmatprep.subr.mxu0 0.0
    %572 = vmatpush1.msra.mxu0 0.0
    %573 = vmatprep.subr.mxu0 0.0
    %574 = vmatpush1.msra.mxu0 0.0
    %575 = vmatprep.subr.mxu0 0.0
    %576 = vmatpush1.msra.mxu0 0.0
    %577 = vmatprep.subr.mxu0 0.0
    %578 = vmatpush1.msra.mxu0 0.0
    %579 = vmatprep.mubr.f32.mxu0 0.0
    %580 = vmatmul.mubr.f32.gmra.mrb[0].mxu0 %v335
    %v581 = vpop.f32.mrb[0].mxu0
    %v582 = vadd.f32 %v222, %v581
    %v583 = vpop.f32.mrb[0].mxu0
    %584 = vdwg.mxu0
    %v586 = vrot.slane %v582, 6
    %v588 = vadd.f32 %v207, %v586
    %v589 = vxor.u32 %v588, 2147483648
    %v590 = vmul.f32 %v589, 1.442695
    %v591 = vpow.pop %v590
    %v592 = vadd.f32 %v591, 1.0
    %v593 = vrcp.pop %v592
    %v594 = vmul.f32 1.0, %v593
    %595 = vrot.lane.b32.xlu0 %v586, 64
    %v596 = vpop.permute.xlu0 %595
    %v598 = vmul.f32 %v594, %v596
    %600 = vrot.lane.b32.xlu0 %v598, 64
    %v601 = vpop.permute.xlu0 %600
    %v603 = vadd.f32 %v207, %v601
    %v604 = vtanh.pop %v603
    %v605 = vsub.f32 1.0, %v594
    %607 = vrot.lane.b32.xlu0 %v604, 96
    %v608 = vpop.permute.xlu0 %607
    %v610 = vmul.f32 %v605, %v608
    %v611 = vrot.slane %v325, 6
    %v613 = vmul.f32 %v594, %v611
    %v614 = vadd.f32 %v610, %v613
    %v616 = vrot.slane %v614, 2
    %617 = vrot.lane.b32.xlu0 %v616, 96
    %v618 = vpop.permute.xlu0 %617
    %v619 = vsel %vm133, %v618, 0
    %621 = vmatprep.subr.mxu0 0.0
    %622 = vmatpush1.msra.mxu0 %v106
    %623 = vmatprep.subr.mxu0 0.0
    %624 = vmatpush1.msra.mxu0 %v107
    %625 = vmatprep.subr.mxu0 0.0
    %626 = vmatpush1.msra.mxu0 %v108
    %627 = vmatprep.subr.mxu0 0.0
    %628 = vmatpush1.msra.mxu0 %v109
    %629 = vmatprep.subr.mxu0 0.0
    %630 = vmatpush1.msra.mxu0 0.0
    %631 = vmatprep.subr.mxu0 0.0
    %632 = vmatpush1.msra.mxu0 0.0
    %633 = vmatprep.subr.mxu0 0.0
    %634 = vmatpush1.msra.mxu0 0.0
    %635 = vmatprep.subr.mxu0 0.0
    %636 = vmatpush1.msra.mxu0 0.0
    %637 = vmatprep.subr.mxu0 0.0
    %638 = vmatpush1.msra.mxu0 0.0
    %639 = vmatprep.subr.mxu0 0.0
    %640 = vmatpush1.msra.mxu0 0.0
    %641 = vmatprep.subr.mxu0 0.0
    %642 = vmatpush1.msra.mxu0 0.0
    %643 = vmatprep.subr.mxu0 0.0
    %644 = vmatpush1.msra.mxu0 0.0
    %645 = vmatprep.subr.mxu0 0.0
    %646 = vmatpush1.msra.mxu0 0.0
    %647 = vmatprep.subr.mxu0 0.0
    %648 = vmatpush1.msra.mxu0 0.0
    %649 = vmatprep.subr.mxu0 0.0
    %650 = vmatpush1.msra.mxu0 0.0
    %651 = vmatprep.subr.mxu0 0.0
    %652 = vmatpush1.msra.mxu0 0.0
    %653 = vmatprep.subr.mxu0 0.0
    %654 = vmatpush1.msra.mxu0 0.0
    %655 = vmatprep.subr.mxu0 0.0
    %656 = vmatpush1.msra.mxu0 0.0
    %657 = vmatprep.subr.mxu0 0.0
    %658 = vmatpush1.msra.mxu0 0.0
    %659 = vmatprep.subr.mxu0 0.0
    %660 = vmatpush1.msra.mxu0 0.0
    %661 = vmatprep.subr.mxu0 0.0
    %662 = vmatpush1.msra.mxu0 0.0
    %663 = vmatprep.subr.mxu0 0.0
    %664 = vmatpush1.msra.mxu0 0.0
    %665 = vmatprep.subr.mxu0 0.0
    %666 = vmatpush1.msra.mxu0 0.0
    %667 = vmatprep.subr.mxu0 0.0
    %668 = vmatpush1.msra.mxu0 0.0
    %669 = vmatprep.subr.mxu0 0.0
    %670 = vmatpush1.msra.mxu0 0.0
    %671 = vmatprep.subr.mxu0 0.0
    %672 = vmatpush1.msra.mxu0 0.0
    %673 = vmatprep.subr.mxu0 0.0
    %674 = vmatpush1.msra.mxu0 0.0
    %675 = vmatprep.subr.mxu0 0.0
    %676 = vmatpush1.msra.mxu0 0.0
    %677 = vmatprep.subr.mxu0 0.0
    %678 = vmatpush1.msra.mxu0 0.0
    %679 = vmatprep.subr.mxu0 0.0
    %680 = vmatpush1.msra.mxu0 0.0
    %681 = vmatprep.subr.mxu0 0.0
    %682 = vmatpush1.msra.mxu0 0.0
    %683 = vmatprep.subr.mxu0 0.0
    %684 = vmatpush1.msra.mxu0 0.0
    %685 = vmatprep.mubr.f32.mxu0 0.0
    %686 = vmatmul.mubr.f32.gmra.mrb[0].mxu0 %v619
    %v687 = vpop.f32.mrb[0].mxu0
    %v688 = vadd.f32 %v330, %v687
    %v689 = vpop.f32.mrb[0].mxu0
    %690 = vdwg.mxu0
    %692 = vrot.lane.b32.xlu0 %v514, 96
    %v693 = vpop.permute.xlu0 %692
    %v694 = vsel %vm133, %v693, 0
    %696 = vmatprep.subr.mxu0 0.0
    %697 = vmatpush1.msra.mxu0 %v115
    %698 = vmatprep.subr.mxu0 0.0
    %699 = vmatpush1.msra.mxu0 %v116
    %700 = vmatprep.subr.mxu0 0.0
    %701 = vmatpush1.msra.mxu0 %v117
    %702 = vmatprep.subr.mxu0 0.0
    %703 = vmatpush1.msra.mxu0 %v118
    %704 = vmatprep.subr.mxu0 0.0
    %705 = vmatpush1.msra.mxu0 0.0
    %706 = vmatprep.subr.mxu0 0.0
    %707 = vmatpush1.msra.mxu0 0.0
    %708 = vmatprep.subr.mxu0 0.0
    %709 = vmatpush1.msra.mxu0 0.0
    %710 = vmatprep.subr.mxu0 0.0
    %711 = vmatpush1.msra.mxu0 0.0
    %712 = vmatprep.subr.mxu0 0.0
    %713 = vmatpush1.msra.mxu0 0.0
    %714 = vmatprep.subr.mxu0 0.0
    %715 = vmatpush1.msra.mxu0 0.0
    %716 = vmatprep.subr.mxu0 0.0
    %717 = vmatpush1.msra.mxu0 0.0
    %718 = vmatprep.subr.mxu0 0.0
    %719 = vmatpush1.msra.mxu0 0.0
    %720 = vmatprep.subr.mxu0 0.0
    %721 = vmatpush1.msra.mxu0 0.0
    %722 = vmatprep.subr.mxu0 0.0
    %723 = vmatpush1.msra.mxu0 0.0
    %724 = vmatprep.subr.mxu0 0.0
    %725 = vmatpush1.msra.mxu0 0.0
    %726 = vmatprep.subr.mxu0 0.0
    %727 = vmatpush1.msra.mxu0 0.0
    %728 = vmatprep.subr.mxu0 0.0
    %729 = vmatpush1.msra.mxu0 0.0
    %730 = vmatprep.subr.mxu0 0.0
    %731 = vmatpush1.msra.mxu0 0.0
    %732 = vmatprep.subr.mxu0 0.0
    %733 = vmatpush1.msra.mxu0 0.0
    %734 = vmatprep.subr.mxu0 0.0
    %735 = vmatpush1.msra.mxu0 0.0
    %736 = vmatprep.subr.mxu0 0.0
    %737 = vmatpush1.msra.mxu0 0.0
    %738 = vmatprep.subr.mxu0 0.0
    %739 = vmatpush1.msra.mxu0 0.0
    %740 = vmatprep.subr.mxu0 0.0
    %741 = vmatpush1.msra.mxu0 0.0
    %742 = vmatprep.subr.mxu0 0.0
    %743 = vmatpush1.msra.mxu0 0.0
    %744 = vmatprep.subr.mxu0 0.0
    %745 = vmatpush1.msra.mxu0 0.0
    %746 = vmatprep.subr.mxu0 0.0
    %747 = vmatpush1.msra.mxu0 0.0
    %748 = vmatprep.subr.mxu0 0.0
    %749 = vmatpush1.msra.mxu0 0.0
    %750 = vmatprep.subr.mxu0 0.0
    %751 = vmatpush1.msra.mxu0 0.0
    %752 = vmatprep.subr.mxu0 0.0
    %753 = vmatpush1.msra.mxu0 0.0
    %754 = vmatprep.subr.mxu0 0.0
    %755 = vmatpush1.msra.mxu0 0.0
    %756 = vmatprep.subr.mxu0 0.0
    %757 = vmatpush1.msra.mxu0 0.0
    %758 = vmatprep.subr.mxu0 0.0
    %759 = vmatpush1.msra.mxu0 0.0
    %760 = vmatprep.mubr.f32.mxu0 0.0
    %761 = vmatmul.mubr.f32.gmra.mrb[0].mxu0 %v694
    %v762 = vpop.f32.mrb[0].mxu0
    %v763 = vadd.f32 %v411, %v762
    %v764 = vpop.f32.mrb[0].mxu0
    %765 = vdwg.mxu0
    %v766 = vadd.f32 %v688, %v763
    %v767 = vxor.u32 %v766, 2147483648
    %v768 = vmul.f32 %v767, 1.442695
    %v769 = vpow.pop %v768
    %v770 = vadd.f32 %v769, 1.0
    %v771 = vrcp.pop %v770
    %v772 = vmul.f32 1.0, %v771
    %774 = vrot.lane.b32.xlu0 %v763, 64
    %v775 = vpop.permute.xlu0 %774
    %v777 = vmul.f32 %v772, %v775
    %779 = vrot.lane.b32.xlu0 %v777, 64
    %v780 = vpop.permute.xlu0 %779
    %v782 = vadd.f32 %v688, %v780
    %v783 = vtanh.pop %v782
    %v784 = vsub.f32 1.0, %v772
    %786 = vrot.lane.b32.xlu0 %v783, 96
    %v787 = vpop.permute.xlu0 %786
    %v789 = vmul.f32 %v784, %v787
    %v790 = vmul.f32 %v772, %v514
    %v791 = vadd.f32 %v789, %v790
    %792 = vmatprep.subr.mxu0 0.0
    %793 = vmatpush1.msra.mxu0 %v110
    %794 = vmatprep.subr.mxu0 0.0
    %795 = vmatpush1.msra.mxu0 %v111
    %796 = vmatprep.subr.mxu0 0.0
    %797 = vmatpush1.msra.mxu0 %v112
    %798 = vmatprep.subr.mxu0 0.0
    %799 = vmatpush1.msra.mxu0 %v113
    %800 = vmatprep.subr.mxu0 0.0
    %801 = vmatpush1.msra.mxu0 0.0
    %802 = vmatprep.subr.mxu0 0.0
    %803 = vmatpush1.msra.mxu0 0.0
    %804 = vmatprep.subr.mxu0 0.0
    %805 = vmatpush1.msra.mxu0 0.0
    %806 = vmatprep.subr.mxu0 0.0
    %807 = vmatpush1.msra.mxu0 0.0
    %808 = vmatprep.subr.mxu0 0.0
    %809 = vmatpush1.msra.mxu0 0.0
    %810 = vmatprep.subr.mxu0 0.0
    %811 = vmatpush1.msra.mxu0 0.0
    %812 = vmatprep.subr.mxu0 0.0
    %813 = vmatpush1.msra.mxu0 0.0
    %814 = vmatprep.subr.mxu0 0.0
    %815 = vmatpush1.msra.mxu0 0.0
    %816 = vmatprep.subr.mxu0 0.0
    %817 = vmatpush1.msra.mxu0 0.0
    %818 = vmatprep.subr.mxu0 0.0
    %819 = vmatpush1.msra.mxu0 0.0
    %820 = vmatprep.subr.mxu0 0.0
    %821 = vmatpush1.msra.mxu0 0.0
    %822 = vmatprep.subr.mxu0 0.0
    %823 = vmatpush1.msra.mxu0 0.0
    %824 = vmatprep.subr.mxu0 0.0
    %825 = vmatpush1.msra.mxu0 0.0
    %826 = vmatprep.subr.mxu0 0.0
    %827 = vmatpush1.msra.mxu0 0.0
    %828 = vmatprep.subr.mxu0 0.0
    %829 = vmatpush1.msra.mxu0 0.0
    %830 = vmatprep.subr.mxu0 0.0
    %831 = vmatpush1.msra.mxu0 0.0
    %832 = vmatprep.subr.mxu0 0.0
    %833 = vmatpush1.msra.mxu0 0.0
    %834 = vmatprep.subr.mxu0 0.0
    %835 = vmatpush1.msra.mxu0 0.0
    %836 = vmatprep.subr.mxu0 0.0
    %837 = vmatpush1.msra.mxu0 0.0
    %838 = vmatprep.subr.mxu0 0.0
    %839 = vmatpush1.msra.mxu0 0.0
    %840 = vmatprep.subr.mxu0 0.0
    %841 = vmatpush1.msra.mxu0 0.0
    %842 = vmatprep.subr.mxu0 0.0
    %843 = vmatpush1.msra.mxu0 0.0
    %844 = vmatprep.subr.mxu0 0.0
    %845 = vmatpush1.msra.mxu0 0.0
    %846 = vmatprep.subr.mxu0 0.0
    %847 = vmatpush1.msra.mxu0 0.0
    %848 = vmatprep.subr.mxu0 0.0
    %849 = vmatpush1.msra.mxu0 0.0
    %850 = vmatprep.subr.mxu0 0.0
    %851 = vmatpush1.msra.mxu0 0.0
    %852 = vmatprep.subr.mxu0 0.0
    %853 = vmatpush1.msra.mxu0 0.0
    %854 = vmatprep.subr.mxu0 0.0
    %855 = vmatpush1.msra.mxu0 0.0
    %856 = vmatprep.mubr.f32.mxu0 0.0
    %857 = vmatmul.mubr.f32.gmra.mrb[0].mxu0 %v619
    %v858 = vpop.f32.mrb[0].mxu0
    %v859 = vadd.f32 %v222, %v858
    %v860 = vpop.f32.mrb[0].mxu0
    %861 = vdwg.mxu0
    %v863 = vrot.slane %v859, 4
    %v865 = vadd.f32 %v207, %v863
    %v866 = vxor.u32 %v865, 2147483648
    %v867 = vmul.f32 %v866, 1.442695
    %v868 = vpow.pop %v867
    %v869 = vadd.f32 %v868, 1.0
    %v870 = vrcp.pop %v869
    %v871 = vmul.f32 1.0, %v870
    %872 = vrot.lane.b32.xlu0 %v863, 64
    %v873 = vpop.permute.xlu0 %872
    %v875 = vmul.f32 %v871, %v873
    %877 = vrot.lane.b32.xlu0 %v875, 64
    %v878 = vpop.permute.xlu0 %877
    %v880 = vadd.f32 %v207, %v878
    %v881 = vtanh.pop %v880
    %v882 = vsub.f32 1.0, %v871
    %884 = vrot.lane.b32.xlu0 %v881, 96
    %v885 = vpop.permute.xlu0 %884
    %v887 = vmul.f32 %v882, %v885
    %v888 = vrot.slane %v614, 6
    %v890 = vmul.f32 %v871, %v888
    %v891 = vadd.f32 %v887, %v890
    %v893 = vrot.slane %v891, 4
    %894 = vrot.lane.b32.xlu0 %v893, 96
    %v895 = vpop.permute.xlu0 %894
    %v896 = vsel %vm133, %v895, 0
    %898 = vmatprep.subr.mxu0 0.0
    %899 = vmatpush1.msra.mxu0 %v106
    %900 = vmatprep.subr.mxu0 0.0
    %901 = vmatpush1.msra.mxu0 %v107
    %902 = vmatprep.subr.mxu0 0.0
    %903 = vmatpush1.msra.mxu0 %v108
    %904 = vmatprep.subr.mxu0 0.0
    %905 = vmatpush1.msra.mxu0 %v109
    %906 = vmatprep.subr.mxu0 0.0
    %907 = vmatpush1.msra.mxu0 0.0
    %908 = vmatprep.subr.mxu0 0.0
    %909 = vmatpush1.msra.mxu0 0.0
    %910 = vmatprep.subr.mxu0 0.0
    %911 = vmatpush1.msra.mxu0 0.0
    %912 = vmatprep.subr.mxu0 0.0
    %913 = vmatpush1.msra.mxu0 0.0
    %914 = vmatprep.subr.mxu0 0.0
    %915 = vmatpush1.msra.mxu0 0.0
    %916 = vmatprep.subr.mxu0 0.0
    %917 = vmatpush1.msra.mxu0 0.0
    %918 = vmatprep.subr.mxu0 0.0
    %919 = vmatpush1.msra.mxu0 0.0
    %920 = vmatprep.subr.mxu0 0.0
    %921 = vmatpush1.msra.mxu0 0.0
    %922 = vmatprep.subr.mxu0 0.0
    %923 = vmatpush1.msra.mxu0 0.0
    %924 = vmatprep.subr.mxu0 0.0
    %925 = vmatpush1.msra.mxu0 0.0
    %926 = vmatprep.subr.mxu0 0.0
    %927 = vmatpush1.msra.mxu0 0.0
    %928 = vmatprep.subr.mxu0 0.0
    %929 = vmatpush1.msra.mxu0 0.0
    %930 = vmatprep.subr.mxu0 0.0
    %931 = vmatpush1.msra.mxu0 0.0
    %932 = vmatprep.subr.mxu0 0.0
    %933 = vmatpush1.msra.mxu0 0.0
    %934 = vmatprep.subr.mxu0 0.0
    %935 = vmatpush1.msra.mxu0 0.0
    %936 = vmatprep.subr.mxu0 0.0
    %937 = vmatpush1.msra.mxu0 0.0
    %938 = vmatprep.subr.mxu0 0.0
    %939 = vmatpush1.msra.mxu0 0.0
    %940 = vmatprep.subr.mxu0 0.0
    %941 = vmatpush1.msra.mxu0 0.0
    %942 = vmatprep.subr.mxu0 0.0
    %943 = vmatpush1.msra.mxu0 0.0
    %944 = vmatprep.subr.mxu0 0.0
    %945 = vmatpush1.msra.mxu0 0.0
    %946 = vmatprep.subr.mxu0 0.0
    %947 = vmatpush1.msra.mxu0 0.0
    %948 = vmatprep.subr.mxu0 0.0
    %949 = vmatpush1.msra.mxu0 0.0
    %950 = vmatprep.subr.mxu0 0.0
    %951 = vmatpush1.msra.mxu0 0.0
    %952 = vmatprep.subr.mxu0 0.0
    %953 = vmatpush1.msra.mxu0 0.0
    %954 = vmatprep.subr.mxu0 0.0
    %955 = vmatpush1.msra.mxu0 0.0
    %956 = vmatprep.subr.mxu0 0.0
    %957 = vmatpush1.msra.mxu0 0.0
    %958 = vmatprep.subr.mxu0 0.0
    %959 = vmatpush1.msra.mxu0 0.0
    %960 = vmatprep.subr.mxu0 0.0
    %961 = vmatpush1.msra.mxu0 0.0
    %962 = vmatprep.mubr.f32.mxu0 0.0
    %963 = vmatmul.mubr.f32.gmra.mrb[0].mxu0 %v896
    %v964 = vpop.f32.mrb[0].mxu0
    %v965 = vadd.f32 %v330, %v964
    %v966 = vpop.f32.mrb[0].mxu0
    %967 = vdwg.mxu0
    %969 = vrot.lane.b32.xlu0 %v791, 96
    %v970 = vpop.permute.xlu0 %969
    %v971 = vsel %vm133, %v970, 0
    %973 = vmatprep.subr.mxu0 0.0
    %974 = vmatpush1.msra.mxu0 %v115
    %975 = vmatprep.subr.mxu0 0.0
    %976 = vmatpush1.msra.mxu0 %v116
    %977 = vmatprep.subr.mxu0 0.0
    %978 = vmatpush1.msra.mxu0 %v117
    %979 = vmatprep.subr.mxu0 0.0
    %980 = vmatpush1.msra.mxu0 %v118
    %981 = vmatprep.subr.mxu0 0.0
    %982 = vmatpush1.msra.mxu0 0.0
    %983 = vmatprep.subr.mxu0 0.0
    %984 = vmatpush1.msra.mxu0 0.0
    %985 = vmatprep.subr.mxu0 0.0
    %986 = vmatpush1.msra.mxu0 0.0
    %987 = vmatprep.subr.mxu0 0.0
    %988 = vmatpush1.msra.mxu0 0.0
    %989 = vmatprep.subr.mxu0 0.0
    %990 = vmatpush1.msra.mxu0 0.0
    %991 = vmatprep.subr.mxu0 0.0
    %992 = vmatpush1.msra.mxu0 0.0
    %993 = vmatprep.subr.mxu0 0.0
    %994 = vmatpush1.msra.mxu0 0.0
    %995 = vmatprep.subr.mxu0 0.0
    %996 = vmatpush1.msra.mxu0 0.0
    %997 = vmatprep.subr.mxu0 0.0
    %998 = vmatpush1.msra.mxu0 0.0
    %999 = vmatprep.subr.mxu0 0.0
    %1000 = vmatpush1.msra.mxu0 0.0
    %1001 = vmatprep.subr.mxu0 0.0
    %1002 = vmatpush1.msra.mxu0 0.0
    %1003 = vmatprep.subr.mxu0 0.0
    %1004 = vmatpush1.msra.mxu0 0.0
    %1005 = vmatprep.subr.mxu0 0.0
    %1006 = vmatpush1.msra.mxu0 0.0
    %1007 = vmatprep.subr.mxu0 0.0
    %1008 = vmatpush1.msra.mxu0 0.0
    %1009 = vmatprep.subr.mxu0 0.0
    %1010 = vmatpush1.msra.mxu0 0.0
    %1011 = vmatprep.subr.mxu0 0.0
    %1012 = vmatpush1.msra.mxu0 0.0
    %1013 = vmatprep.subr.mxu0 0.0
    %1014 = vmatpush1.msra.mxu0 0.0
    %1015 = vmatprep.subr.mxu0 0.0
    %1016 = vmatpush1.msra.mxu0 0.0
    %1017 = vmatprep.subr.mxu0 0.0
    %1018 = vmatpush1.msra.mxu0 0.0
    %1019 = vmatprep.subr.mxu0 0.0
    %1020 = vmatpush1.msra.mxu0 0.0
    %1021 = vmatprep.subr.mxu0 0.0
    %1022 = vmatpush1.msra.mxu0 0.0
    %1023 = vmatprep.subr.mxu0 0.0
    %1024 = vmatpush1.msra.mxu0 0.0
    %1025 = vmatprep.subr.mxu0 0.0
    %1026 = vmatpush1.msra.mxu0 0.0
    %1027 = vmatprep.subr.mxu0 0.0
    %1028 = vmatpush1.msra.mxu0 0.0
    %1029 = vmatprep.subr.mxu0 0.0
    %1030 = vmatpush1.msra.mxu0 0.0
    %1031 = vmatprep.subr.mxu0 0.0
    %1032 = vmatpush1.msra.mxu0 0.0
    %1033 = vmatprep.subr.mxu0 0.0
    %1034 = vmatpush1.msra.mxu0 0.0
    %1035 = vmatprep.subr.mxu0 0.0
    %1036 = vmatpush1.msra.mxu0 0.0
    %1037 = vmatprep.mubr.f32.mxu0 0.0
    %1038 = vmatmul.mubr.f32.gmra.mrb[0].mxu0 %v971
    %v1039 = vpop.f32.mrb[0].mxu0
    %v1040 = vadd.f32 %v411, %v1039
    %v1041 = vpop.f32.mrb[0].mxu0
    %1042 = vdwg.mxu0
    %v1043 = vadd.f32 %v965, %v1040
    %v1044 = vxor.u32 %v1043, 2147483648
    %v1045 = vmul.f32 %v1044, 1.442695
    %v1046 = vpow.pop %v1045
    %v1047 = vadd.f32 %v1046, 1.0
    %v1048 = vrcp.pop %v1047
    %v1049 = vmul.f32 1.0, %v1048
    %1051 = vrot.lane.b32.xlu0 %v1040, 64
    %v1052 = vpop.permute.xlu0 %1051
    %v1054 = vmul.f32 %v1049, %v1052
    %1056 = vrot.lane.b32.xlu0 %v1054, 64
    %v1057 = vpop.permute.xlu0 %1056
    %v1059 = vadd.f32 %v965, %v1057
    %v1060 = vtanh.pop %v1059
    %v1061 = vsub.f32 1.0, %v1049
    %1063 = vrot.lane.b32.xlu0 %v1060, 96
    %v1064 = vpop.permute.xlu0 %1063
    %v1066 = vmul.f32 %v1061, %v1064
    %v1067 = vmul.f32 %v1049, %v791
    %v1068 = vadd.f32 %v1066, %v1067
    %1069 = vmatprep.subr.mxu0 0.0
    %1070 = vmatpush1.msra.mxu0 %v110
    %1071 = vmatprep.subr.mxu0 0.0
    %1072 = vmatpush1.msra.mxu0 %v111
    %1073 = vmatprep.subr.mxu0 0.0
    %1074 = vmatpush1.msra.mxu0 %v112
    %1075 = vmatprep.subr.mxu0 0.0
    %1076 = vmatpush1.msra.mxu0 %v113
    %1077 = vmatprep.subr.mxu0 0.0
    %1078 = vmatpush1.msra.mxu0 0.0
    %1079 = vmatprep.subr.mxu0 0.0
    %1080 = vmatpush1.msra.mxu0 0.0
    %1081 = vmatprep.subr.mxu0 0.0
    %1082 = vmatpush1.msra.mxu0 0.0
    %1083 = vmatprep.subr.mxu0 0.0
    %1084 = vmatpush1.msra.mxu0 0.0
    %1085 = vmatprep.subr.mxu0 0.0
    %1086 = vmatpush1.msra.mxu0 0.0
    %1087 = vmatprep.subr.mxu0 0.0
    %1088 = vmatpush1.msra.mxu0 0.0
    %1089 = vmatprep.subr.mxu0 0.0
    %1090 = vmatpush1.msra.mxu0 0.0
    %1091 = vmatprep.subr.mxu0 0.0
    %1092 = vmatpush1.msra.mxu0 0.0
    %1093 = vmatprep.subr.mxu0 0.0
    %1094 = vmatpush1.msra.mxu0 0.0
    %1095 = vmatprep.subr.mxu0 0.0
    %1096 = vmatpush1.msra.mxu0 0.0
    %1097 = vmatprep.subr.mxu0 0.0
    %1098 = vmatpush1.msra.mxu0 0.0
    %1099 = vmatprep.subr.mxu0 0.0
    %1100 = vmatpush1.msra.mxu0 0.0
    %1101 = vmatprep.subr.mxu0 0.0
    %1102 = vmatpush1.msra.mxu0 0.0
    %1103 = vmatprep.subr.mxu0 0.0
    %1104 = vmatpush1.msra.mxu0 0.0
    %1105 = vmatprep.subr.mxu0 0.0
    %1106 = vmatpush1.msra.mxu0 0.0
    %1107 = vmatprep.subr.mxu0 0.0
    %1108 = vmatpush1.msra.mxu0 0.0
    %1109 = vmatprep.subr.mxu0 0.0
    %1110 = vmatpush1.msra.mxu0 0.0
    %1111 = vmatprep.subr.mxu0 0.0
    %1112 = vmatpush1.msra.mxu0 0.0
    %1113 = vmatprep.subr.mxu0 0.0
    %1114 = vmatpush1.msra.mxu0 0.0
    %1115 = vmatprep.subr.mxu0 0.0
    %1116 = vmatpush1.msra.mxu0 0.0
    %1117 = vmatprep.subr.mxu0 0.0
    %1118 = vmatpush1.msra.mxu0 0.0
    %1119 = vmatprep.subr.mxu0 0.0
    %1120 = vmatpush1.msra.mxu0 0.0
    %1121 = vmatprep.subr.mxu0 0.0
    %1122 = vmatpush1.msra.mxu0 0.0
    %1123 = vmatprep.subr.mxu0 0.0
    %1124 = vmatpush1.msra.mxu0 0.0
    %1125 = vmatprep.subr.mxu0 0.0
    %1126 = vmatpush1.msra.mxu0 0.0
    %1127 = vmatprep.subr.mxu0 0.0
    %1128 = vmatpush1.msra.mxu0 0.0
    %1129 = vmatprep.subr.mxu0 0.0
    %1130 = vmatpush1.msra.mxu0 0.0
    %1131 = vmatprep.subr.mxu0 0.0
    %1132 = vmatpush1.msra.mxu0 0.0
    %1133 = vmatprep.mubr.f32.mxu0 0.0
    %1134 = vmatmul.mubr.f32.gmra.mrb[0].mxu0 %v896
    %v1135 = vpop.f32.mrb[0].mxu0
    %v1136 = vadd.f32 %v222, %v1135
    %v1137 = vpop.f32.mrb[0].mxu0
    %1138 = vdwg.mxu0
    %v1140 = vrot.slane %v1136, 2
    %v1142 = vadd.f32 %v207, %v1140
    %v1143 = vxor.u32 %v1142, 2147483648
    %v1144 = vmul.f32 %v1143, 1.442695
    %v1145 = vpow.pop %v1144
    %v1146 = vadd.f32 %v1145, 1.0
    %v1147 = vrcp.pop %v1146
    %v1148 = vmul.f32 1.0, %v1147
    %1149 = vrot.lane.b32.xlu0 %v1140, 64
    %v1150 = vpop.permute.xlu0 %1149
    %v1152 = vmul.f32 %v1148, %v1150
    %1154 = vrot.lane.b32.xlu0 %v1152, 64
    %v1155 = vpop.permute.xlu0 %1154
    %v1157 = vadd.f32 %v207, %v1155
    %v1158 = vtanh.pop %v1157
    %v1159 = vsub.f32 1.0, %v1148
    %1161 = vrot.lane.b32.xlu0 %v1158, 96
    %v1162 = vpop.permute.xlu0 %1161
    %v1164 = vmul.f32 %v1159, %v1162
    %v1165 = vrot.slane %v891, 6
    %v1167 = vmul.f32 %v1148, %v1165
    %v1168 = vadd.f32 %v1164, %v1167
    %v1170 = vrot.slane %v1168, 6
    %1171 = vrot.lane.b32.xlu0 %v1170, 96
    %v1172 = vpop.permute.xlu0 %1171
    %v1173 = vsel %vm133, %v1172, 0
    %1175 = vmatprep.subr.mxu0 0.0
    %1176 = vmatpush1.msra.mxu0 %v106
    %1177 = vmatprep.subr.mxu0 0.0
    %1178 = vmatpush1.msra.mxu0 %v107
    %1179 = vmatprep.subr.mxu0 0.0
    %1180 = vmatpush1.msra.mxu0 %v108
    %1181 = vmatprep.subr.mxu0 0.0
    %1182 = vmatpush1.msra.mxu0 %v109
    %1183 = vmatprep.subr.mxu0 0.0
    %1184 = vmatpush1.msra.mxu0 0.0
    %1185 = vmatprep.subr.mxu0 0.0
    %1186 = vmatpush1.msra.mxu0 0.0
    %1187 = vmatprep.subr.mxu0 0.0
    %1188 = vmatpush1.msra.mxu0 0.0
    %1189 = vmatprep.subr.mxu0 0.0
    %1190 = vmatpush1.msra.mxu0 0.0
    %1191 = vmatprep.subr.mxu0 0.0
    %1192 = vmatpush1.msra.mxu0 0.0
    %1193 = vmatprep.subr.mxu0 0.0
    %1194 = vmatpush1.msra.mxu0 0.0
    %1195 = vmatprep.subr.mxu0 0.0
    %1196 = vmatpush1.msra.mxu0 0.0
    %1197 = vmatprep.subr.mxu0 0.0
    %1198 = vmatpush1.msra.mxu0 0.0
    %1199 = vmatprep.subr.mxu0 0.0
    %1200 = vmatpush1.msra.mxu0 0.0
    %1201 = vmatprep.subr.mxu0 0.0
    %1202 = vmatpush1.msra.mxu0 0.0
    %1203 = vmatprep.subr.mxu0 0.0
    %1204 = vmatpush1.msra.mxu0 0.0
    %1205 = vmatprep.subr.mxu0 0.0
    %1206 = vmatpush1.msra.mxu0 0.0
    %1207 = vmatprep.subr.mxu0 0.0
    %1208 = vmatpush1.msra.mxu0 0.0
    %1209 = vmatprep.subr.mxu0 0.0
    %1210 = vmatpush1.msra.mxu0 0.0
    %1211 = vmatprep.subr.mxu0 0.0
    %1212 = vmatpush1.msra.mxu0 0.0
    %1213 = vmatprep.subr.mxu0 0.0
    %1214 = vmatpush1.msra.mxu0 0.0
    %1215 = vmatprep.subr.mxu0 0.0
    %1216 = vmatpush1.msra.mxu0 0.0
    %1217 = vmatprep.subr.mxu0 0.0
    %1218 = vmatpush1.msra.mxu0 0.0
    %1219 = vmatprep.subr.mxu0 0.0
    %1220 = vmatpush1.msra.mxu0 0.0
    %1221 = vmatprep.subr.mxu0 0.0
    %1222 = vmatpush1.msra.mxu0 0.0
    %1223 = vmatprep.subr.mxu0 0.0
    %1224 = vmatpush1.msra.mxu0 0.0
    %1225 = vmatprep.subr.mxu0 0.0
    %1226 = vmatpush1.msra.mxu0 0.0
    %1227 = vmatprep.subr.mxu0 0.0
    %1228 = vmatpush1.msra.mxu0 0.0
    %1229 = vmatprep.subr.mxu0 0.0
    %1230 = vmatpush1.msra.mxu0 0.0
    %1231 = vmatprep.subr.mxu0 0.0
    %1232 = vmatpush1.msra.mxu0 0.0
    %1233 = vmatprep.subr.mxu0 0.0
    %1234 = vmatpush1.msra.mxu0 0.0
    %1235 = vmatprep.subr.mxu0 0.0
    %1236 = vmatpush1.msra.mxu0 0.0
    %1237 = vmatprep.subr.mxu0 0.0
    %1238 = vmatpush1.msra.mxu0 0.0
    %1239 = vmatprep.mubr.f32.mxu0 0.0
    %1240 = vmatmul.mubr.f32.gmra.mrb[0].mxu0 %v1173
    %v1241 = vpop.f32.mrb[0].mxu0
    %v1242 = vadd.f32 %v330, %v1241
    %v1243 = vpop.f32.mrb[0].mxu0
    %1244 = vdwg.mxu0
    %1246 = vrot.lane.b32.xlu0 %v1068, 96
    %v1247 = vpop.permute.xlu0 %1246
    %v1248 = vsel %vm133, %v1247, 0
    %1250 = vmatprep.subr.mxu0 0.0
    %1251 = vmatpush1.msra.mxu0 %v115
    %1252 = vmatprep.subr.mxu0 0.0
    %1253 = vmatpush1.msra.mxu0 %v116
    %1254 = vmatprep.subr.mxu0 0.0
    %1255 = vmatpush1.msra.mxu0 %v117
    %1256 = vmatprep.subr.mxu0 0.0
    %1257 = vmatpush1.msra.mxu0 %v118
    %1258 = vmatprep.subr.mxu0 0.0
    %1259 = vmatpush1.msra.mxu0 0.0
    %1260 = vmatprep.subr.mxu0 0.0
    %1261 = vmatpush1.msra.mxu0 0.0
    %1262 = vmatprep.subr.mxu0 0.0
    %1263 = vmatpush1.msra.mxu0 0.0
    %1264 = vmatprep.subr.mxu0 0.0
    %1265 = vmatpush1.msra.mxu0 0.0
    %1266 = vmatprep.subr.mxu0 0.0
    %1267 = vmatpush1.msra.mxu0 0.0
    %1268 = vmatprep.subr.mxu0 0.0
    %1269 = vmatpush1.msra.mxu0 0.0
    %1270 = vmatprep.subr.mxu0 0.0
    %1271 = vmatpush1.msra.mxu0 0.0
    %1272 = vmatprep.subr.mxu0 0.0
    %1273 = vmatpush1.msra.mxu0 0.0
    %1274 = vmatprep.subr.mxu0 0.0
    %1275 = vmatpush1.msra.mxu0 0.0
    %1276 = vmatprep.subr.mxu0 0.0
    %1277 = vmatpush1.msra.mxu0 0.0
    %1278 = vmatprep.subr.mxu0 0.0
    %1279 = vmatpush1.msra.mxu0 0.0
    %1280 = vmatprep.subr.mxu0 0.0
    %1281 = vmatpush1.msra.mxu0 0.0
    %1282 = vmatprep.subr.mxu0 0.0
    %1283 = vmatpush1.msra.mxu0 0.0
    %1284 = vmatprep.subr.mxu0 0.0
    %1285 = vmatpush1.msra.mxu0 0.0
    %1286 = vmatprep.subr.mxu0 0.0
    %1287 = vmatpush1.msra.mxu0 0.0
    %1288 = vmatprep.subr.mxu0 0.0
    %1289 = vmatpush1.msra.mxu0 0.0
    %1290 = vmatprep.subr.mxu0 0.0
    %1291 = vmatpush1.msra.mxu0 0.0
    %1292 = vmatprep.subr.mxu0 0.0
    %1293 = vmatpush1.msra.mxu0 0.0
    %1294 = vmatprep.subr.mxu0 0.0
    %1295 = vmatpush1.msra.mxu0 0.0
    %1296 = vmatprep.subr.mxu0 0.0
    %1297 = vmatpush1.msra.mxu0 0.0
    %1298 = vmatprep.subr.mxu0 0.0
    %1299 = vmatpush1.msra.mxu0 0.0
    %1300 = vmatprep.subr.mxu0 0.0
    %1301 = vmatpush1.msra.mxu0 0.0
    %1302 = vmatprep.subr.mxu0 0.0
    %1303 = vmatpush1.msra.mxu0 0.0
    %1304 = vmatprep.subr.mxu0 0.0
    %1305 = vmatpush1.msra.mxu0 0.0
    %1306 = vmatprep.subr.mxu0 0.0
    %1307 = vmatpush1.msra.mxu0 0.0
    %1308 = vmatprep.subr.mxu0 0.0
    %1309 = vmatpush1.msra.mxu0 0.0
    %1310 = vmatprep.subr.mxu0 0.0
    %1311 = vmatpush1.msra.mxu0 0.0
    %1312 = vmatprep.subr.mxu0 0.0
    %1313 = vmatpush1.msra.mxu0 0.0
    %1314 = vmatprep.mubr.f32.mxu0 0.0
    %1315 = vmatmul.mubr.f32.gmra.mrb[0].mxu0 %v1248
    %v1316 = vpop.f32.mrb[0].mxu0
    %v1317 = vadd.f32 %v411, %v1316
    %v1318 = vpop.f32.mrb[0].mxu0
    %1319 = vdwg.mxu0
    %v1320 = vadd.f32 %v1242, %v1317
    %v1321 = vxor.u32 %v1320, 2147483648
    %v1322 = vmul.f32 %v1321, 1.442695
    %v1323 = vpow.pop %v1322
    %v1324 = vadd.f32 %v1323, 1.0
    %v1325 = vrcp.pop %v1324
    %v1326 = vmul.f32 1.0, %v1325
    %1328 = vrot.lane.b32.xlu0 %v1317, 64
    %v1329 = vpop.permute.xlu0 %1328
    %v1331 = vmul.f32 %v1326, %v1329
    %1333 = vrot.lane.b32.xlu0 %v1331, 64
    %v1334 = vpop.permute.xlu0 %1333
    %v1336 = vadd.f32 %v1242, %v1334
    %v1337 = vtanh.pop %v1336
    %v1338 = vsub.f32 1.0, %v1326
    %1340 = vrot.lane.b32.xlu0 %v1337, 96
    %v1341 = vpop.permute.xlu0 %1340
    %v1343 = vmul.f32 %v1338, %v1341
    %v1344 = vmul.f32 %v1326, %v1068
    %v1345 = vadd.f32 %v1343, %v1344
    %1346 = vmatprep.subr.mxu0 0.0
    %1347 = vmatpush1.msra.mxu0 %v110
    %1348 = vmatprep.subr.mxu0 0.0
    %1349 = vmatpush1.msra.mxu0 %v111
    %1350 = vmatprep.subr.mxu0 0.0
    %1351 = vmatpush1.msra.mxu0 %v112
    %1352 = vmatprep.subr.mxu0 0.0
    %1353 = vmatpush1.msra.mxu0 %v113
    %1354 = vmatprep.subr.mxu0 0.0
    %1355 = vmatpush1.msra.mxu0 0.0
    %1356 = vmatprep.subr.mxu0 0.0
    %1357 = vmatpush1.msra.mxu0 0.0
    %1358 = vmatprep.subr.mxu0 0.0
    %1359 = vmatpush1.msra.mxu0 0.0
    %1360 = vmatprep.subr.mxu0 0.0
    %1361 = vmatpush1.msra.mxu0 0.0
    %1362 = vmatprep.subr.mxu0 0.0
    %1363 = vmatpush1.msra.mxu0 0.0
    %1364 = vmatprep.subr.mxu0 0.0
    %1365 = vmatpush1.msra.mxu0 0.0
    %1366 = vmatprep.subr.mxu0 0.0
    %1367 = vmatpush1.msra.mxu0 0.0
    %1368 = vmatprep.subr.mxu0 0.0
    %1369 = vmatpush1.msra.mxu0 0.0
    %1370 = vmatprep.subr.mxu0 0.0
    %1371 = vmatpush1.msra.mxu0 0.0
    %1372 = vmatprep.subr.mxu0 0.0
    %1373 = vmatpush1.msra.mxu0 0.0
    %1374 = vmatprep.subr.mxu0 0.0
    %1375 = vmatpush1.msra.mxu0 0.0
    %1376 = vmatprep.subr.mxu0 0.0
    %1377 = vmatpush1.msra.mxu0 0.0
    %1378 = vmatprep.subr.mxu0 0.0
    %1379 = vmatpush1.msra.mxu0 0.0
    %1380 = vmatprep.subr.mxu0 0.0
    %1381 = vmatpush1.msra.mxu0 0.0
    %1382 = vmatprep.subr.mxu0 0.0
    %1383 = vmatpush1.msra.mxu0 0.0
    %1384 = vmatprep.subr.mxu0 0.0
    %1385 = vmatpush1.msra.mxu0 0.0
    %1386 = vmatprep.subr.mxu0 0.0
    %1387 = vmatpush1.msra.mxu0 0.0
    %1388 = vmatprep.subr.mxu0 0.0
    %1389 = vmatpush1.msra.mxu0 0.0
    %1390 = vmatprep.subr.mxu0 0.0
    %1391 = vmatpush1.msra.mxu0 0.0
    %1392 = vmatprep.subr.mxu0 0.0
    %1393 = vmatpush1.msra.mxu0 0.0
    %1394 = vmatprep.subr.mxu0 0.0
    %1395 = vmatpush1.msra.mxu0 0.0
    %1396 = vmatprep.subr.mxu0 0.0
    %1397 = vmatpush1.msra.mxu0 0.0
    %1398 = vmatprep.subr.mxu0 0.0
    %1399 = vmatpush1.msra.mxu0 0.0
    %1400 = vmatprep.subr.mxu0 0.0
    %1401 = vmatpush1.msra.mxu0 0.0
    %1402 = vmatprep.subr.mxu0 0.0
    %1403 = vmatpush1.msra.mxu0 0.0
    %1404 = vmatprep.subr.mxu0 0.0
    %1405 = vmatpush1.msra.mxu0 0.0
    %1406 = vmatprep.subr.mxu0 0.0
    %1407 = vmatpush1.msra.mxu0 0.0
    %1408 = vmatprep.subr.mxu0 0.0
    %1409 = vmatpush1.msra.mxu0 0.0
    %1410 = vmatprep.mubr.f32.mxu0 0.0
    %1411 = vmatmul.mubr.f32.gmra.mrb[0].mxu0 %v1173
    %v1412 = vpop.f32.mrb[0].mxu0
    %v1413 = vadd.f32 %v222, %v1412
    %v1414 = vpop.f32.mrb[0].mxu0
    %1415 = vdwg.mxu0
    %v1416 = vadd.f32 %v212, %v1413
    %v1417 = vxor.u32 %v1416, 2147483648
    %v1418 = vmul.f32 %v1417, 1.442695
    %v1419 = vpow.pop %v1418
    %v1420 = vadd.f32 %v1419, 1.0
    %v1421 = vrcp.pop %v1420
    %v1422 = vmul.f32 1.0, %v1421
    %1424 = vrot.lane.b32.xlu0 %v1413, 64
    %v1425 = vpop.permute.xlu0 %1424
    %v1427 = vmul.f32 %v1422, %v1425
    %1429 = vrot.lane.b32.xlu0 %v1427, 64
    %v1430 = vpop.permute.xlu0 %1429
    %v1432 = vadd.f32 %v212, %v1430
    %v1433 = vtanh.pop %v1432
    %v1434 = vsub.f32 1.0, %v1422
    %1436 = vrot.lane.b32.xlu0 %v1433, 96
    %v1437 = vpop.permute.xlu0 %1436
    %v1439 = vmul.f32 %v1434, %v1437
    %v1441 = vmul.f32 %v1422, %v1170
    %v1442 = vadd.f32 %v1439, %v1441
    %1444 = vrot.lane.b32.xlu0 %v1442, 96
    %v1445 = vpop.permute.xlu0 %1444
    %v1446 = vsel %vm133, %v1445, 0
    %1448 = vmatprep.subr.mxu0 0.0
    %1449 = vmatpush1.msra.mxu0 %v106
    %1450 = vmatprep.subr.mxu0 0.0
    %1451 = vmatpush1.msra.mxu0 %v107
    %1452 = vmatprep.subr.mxu0 0.0
    %1453 = vmatpush1.msra.mxu0 %v108
    %1454 = vmatprep.subr.mxu0 0.0
    %1455 = vmatpush1.msra.mxu0 %v109
    %1456 = vmatprep.subr.mxu0 0.0
    %1457 = vmatpush1.msra.mxu0 0.0
    %1458 = vmatprep.subr.mxu0 0.0
    %1459 = vmatpush1.msra.mxu0 0.0
    %1460 = vmatprep.subr.mxu0 0.0
    %1461 = vmatpush1.msra.mxu0 0.0
    %1462 = vmatprep.subr.mxu0 0.0
    %1463 = vmatpush1.msra.mxu0 0.0
    %1464 = vmatprep.subr.mxu0 0.0
    %1465 = vmatpush1.msra.mxu0 0.0
    %1466 = vmatprep.subr.mxu0 0.0
    %1467 = vmatpush1.msra.mxu0 0.0
    %1468 = vmatprep.subr.mxu0 0.0
    %1469 = vmatpush1.msra.mxu0 0.0
    %1470 = vmatprep.subr.mxu0 0.0
    %1471 = vmatpush1.msra.mxu0 0.0
    %1472 = vmatprep.subr.mxu0 0.0
    %1473 = vmatpush1.msra.mxu0 0.0
    %1474 = vmatprep.subr.mxu0 0.0
    %1475 = vmatpush1.msra.mxu0 0.0
    %1476 = vmatprep.subr.mxu0 0.0
    %1477 = vmatpush1.msra.mxu0 0.0
    %1478 = vmatprep.subr.mxu0 0.0
    %1479 = vmatpush1.msra.mxu0 0.0
    %1480 = vmatprep.subr.mxu0 0.0
    %1481 = vmatpush1.msra.mxu0 0.0
    %1482 = vmatprep.subr.mxu0 0.0
    %1483 = vmatpush1.msra.mxu0 0.0
    %1484 = vmatprep.subr.mxu0 0.0
    %1485 = vmatpush1.msra.mxu0 0.0
    %1486 = vmatprep.subr.mxu0 0.0
    %1487 = vmatpush1.msra.mxu0 0.0
    %1488 = vmatprep.subr.mxu0 0.0
    %1489 = vmatpush1.msra.mxu0 0.0
    %1490 = vmatprep.subr.mxu0 0.0
    %1491 = vmatpush1.msra.mxu0 0.0
    %1492 = vmatprep.subr.mxu0 0.0
    %1493 = vmatpush1.msra.mxu0 0.0
    %1494 = vmatprep.subr.mxu0 0.0
    %1495 = vmatpush1.msra.mxu0 0.0
    %1496 = vmatprep.subr.mxu0 0.0
    %1497 = vmatpush1.msra.mxu0 0.0
    %1498 = vmatprep.subr.mxu0 0.0
    %1499 = vmatpush1.msra.mxu0 0.0
    %1500 = vmatprep.subr.mxu0 0.0
    %1501 = vmatpush1.msra.mxu0 0.0
    %1502 = vmatprep.subr.mxu0 0.0
    %1503 = vmatpush1.msra.mxu0 0.0
    %1504 = vmatprep.subr.mxu0 0.0
    %1505 = vmatpush1.msra.mxu0 0.0
    %1506 = vmatprep.subr.mxu0 0.0
    %1507 = vmatpush1.msra.mxu0 0.0
    %1508 = vmatprep.subr.mxu0 0.0
    %1509 = vmatpush1.msra.mxu0 0.0
    %1510 = vmatprep.subr.mxu0 0.0
    %1511 = vmatpush1.msra.mxu0 0.0
    %1512 = vmatprep.mubr.f32.mxu0 0.0
    %1513 = vmatmul.mubr.f32.gmra.mrb[0].mxu0 %v1446
    %v1514 = vpop.f32.mrb[0].mxu0
    %v1515 = vadd.f32 %v330, %v1514
    %v1516 = vpop.f32.mrb[0].mxu0
    %1517 = vdwg.mxu0
    %1519 = vrot.lane.b32.xlu0 %v1345, 96
    %v1520 = vpop.permute.xlu0 %1519
    %v1521 = vsel %vm133, %v1520, 0
    %1523 = vmatprep.subr.mxu0 0.0
    %1524 = vmatpush1.msra.mxu0 %v115
    %1525 = vmatprep.subr.mxu0 0.0
    %1526 = vmatpush1.msra.mxu0 %v116
    %1527 = vmatprep.subr.mxu0 0.0
    %1528 = vmatpush1.msra.mxu0 %v117
    %1529 = vmatprep.subr.mxu0 0.0
    %1530 = vmatpush1.msra.mxu0 %v118
    %1531 = vmatprep.subr.mxu0 0.0
    %1532 = vmatpush1.msra.mxu0 0.0
    %1533 = vmatprep.subr.mxu0 0.0
    %1534 = vmatpush1.msra.mxu0 0.0
    %1535 = vmatprep.subr.mxu0 0.0
    %1536 = vmatpush1.msra.mxu0 0.0
    %1537 = vmatprep.subr.mxu0 0.0
    %1538 = vmatpush1.msra.mxu0 0.0
    %1539 = vmatprep.subr.mxu0 0.0
    %1540 = vmatpush1.msra.mxu0 0.0
    %1541 = vmatprep.subr.mxu0 0.0
    %1542 = vmatpush1.msra.mxu0 0.0
    %1543 = vmatprep.subr.mxu0 0.0
    %1544 = vmatpush1.msra.mxu0 0.0
    %1545 = vmatprep.subr.mxu0 0.0
    %1546 = vmatpush1.msra.mxu0 0.0
    %1547 = vmatprep.subr.mxu0 0.0
    %1548 = vmatpush1.msra.mxu0 0.0
    %1549 = vmatprep.subr.mxu0 0.0
    %1550 = vmatpush1.msra.mxu0 0.0
    %1551 = vmatprep.subr.mxu0 0.0
    %1552 = vmatpush1.msra.mxu0 0.0
    %1553 = vmatprep.subr.mxu0 0.0
    %1554 = vmatpush1.msra.mxu0 0.0
    %1555 = vmatprep.subr.mxu0 0.0
    %1556 = vmatpush1.msra.mxu0 0.0
    %1557 = vmatprep.subr.mxu0 0.0
    %1558 = vmatpush1.msra.mxu0 0.0
    %1559 = vmatprep.subr.mxu0 0.0
    %1560 = vmatpush1.msra.mxu0 0.0
    %1561 = vmatprep.subr.mxu0 0.0
    %1562 = vmatpush1.msra.mxu0 0.0
    %1563 = vmatprep.subr.mxu0 0.0
    %1564 = vmatpush1.msra.mxu0 0.0
    %1565 = vmatprep.subr.mxu0 0.0
    %1566 = vmatpush1.msra.mxu0 0.0
    %1567 = vmatprep.subr.mxu0 0.0
    %1568 = vmatpush1.msra.mxu0 0.0
    %1569 = vmatprep.subr.mxu0 0.0
    %1570 = vmatpush1.msra.mxu0 0.0
    %1571 = vmatprep.subr.mxu0 0.0
    %1572 = vmatpush1.msra.mxu0 0.0
    %1573 = vmatprep.subr.mxu0 0.0
    %1574 = vmatpush1.msra.mxu0 0.0
    %1575 = vmatprep.subr.mxu0 0.0
    %1576 = vmatpush1.msra.mxu0 0.0
    %1577 = vmatprep.subr.mxu0 0.0
    %1578 = vmatpush1.msra.mxu0 0.0
    %1579 = vmatprep.subr.mxu0 0.0
    %1580 = vmatpush1.msra.mxu0 0.0
    %1581 = vmatprep.subr.mxu0 0.0
    %1582 = vmatpush1.msra.mxu0 0.0
    %1583 = vmatprep.subr.mxu0 0.0
    %1584 = vmatpush1.msra.mxu0 0.0
    %1585 = vmatprep.subr.mxu0 0.0
    %1586 = vmatpush1.msra.mxu0 0.0
    %1587 = vmatprep.mubr.f32.mxu0 0.0
    %1588 = vmatmul.mubr.f32.gmra.mrb[0].mxu0 %v1521
    %v1589 = vpop.f32.mrb[0].mxu0
    %v1590 = vadd.f32 %v411, %v1589
    %v1591 = vpop.f32.mrb[0].mxu0
    %1592 = vdwg.mxu0
    %v1593 = vadd.f32 %v1515, %v1590
    %v1594 = vxor.u32 %v1593, 2147483648
    %v1595 = vmul.f32 %v1594, 1.442695
    %v1596 = vpow.pop %v1595
    %v1597 = vadd.f32 %v1596, 1.0
    %v1598 = vrcp.pop %v1597
    %v1599 = vmul.f32 1.0, %v1598
    %1601 = vrot.lane.b32.xlu0 %v1590, 64
    %v1602 = vpop.permute.xlu0 %1601
    %v1604 = vmul.f32 %v1599, %v1602
    %1606 = vrot.lane.b32.xlu0 %v1604, 64
    %v1607 = vpop.permute.xlu0 %1606
    %v1609 = vadd.f32 %v1515, %v1607
    %v1610 = vtanh.pop %v1609
    %v1611 = vsub.f32 1.0, %v1599
    %1613 = vrot.lane.b32.xlu0 %v1610, 96
    %v1614 = vpop.permute.xlu0 %1613
    %v1616 = vmul.f32 %v1611, %v1614
    %v1617 = vmul.f32 %v1599, %v1345
    %v1618 = vadd.f32 %v1616, %v1617
    %1619 = vmatprep.subr.mxu0 0.0
    %1620 = vmatpush1.msra.mxu0 %v110
    %1621 = vmatprep.subr.mxu0 0.0
    %1622 = vmatpush1.msra.mxu0 %v111
    %1623 = vmatprep.subr.mxu0 0.0
    %1624 = vmatpush1.msra.mxu0 %v112
    %1625 = vmatprep.subr.mxu0 0.0
    %1626 = vmatpush1.msra.mxu0 %v113
    %1627 = vmatprep.subr.mxu0 0.0
    %1628 = vmatpush1.msra.mxu0 0.0
    %1629 = vmatprep.subr.mxu0 0.0
    %1630 = vmatpush1.msra.mxu0 0.0
    %1631 = vmatprep.subr.mxu0 0.0
    %1632 = vmatpush1.msra.mxu0 0.0
    %1633 = vmatprep.subr.mxu0 0.0
    %1634 = vmatpush1.msra.mxu0 0.0
    %1635 = vmatprep.subr.mxu0 0.0
    %1636 = vmatpush1.msra.mxu0 0.0
    %1637 = vmatprep.subr.mxu0 0.0
    %1638 = vmatpush1.msra.mxu0 0.0
    %1639 = vmatprep.subr.mxu0 0.0
    %1640 = vmatpush1.msra.mxu0 0.0
    %1641 = vmatprep.subr.mxu0 0.0
    %1642 = vmatpush1.msra.mxu0 0.0
    %1643 = vmatprep.subr.mxu0 0.0
    %1644 = vmatpush1.msra.mxu0 0.0
    %1645 = vmatprep.subr.mxu0 0.0
    %1646 = vmatpush1.msra.mxu0 0.0
    %1647 = vmatprep.subr.mxu0 0.0
    %1648 = vmatpush1.msra.mxu0 0.0
    %1649 = vmatprep.subr.mxu0 0.0
    %1650 = vmatpush1.msra.mxu0 0.0
    %1651 = vmatprep.subr.mxu0 0.0
    %1652 = vmatpush1.msra.mxu0 0.0
    %1653 = vmatprep.subr.mxu0 0.0
    %1654 = vmatpush1.msra.mxu0 0.0
    %1655 = vmatprep.subr.mxu0 0.0
    %1656 = vmatpush1.msra.mxu0 0.0
    %1657 = vmatprep.subr.mxu0 0.0
    %1658 = vmatpush1.msra.mxu0 0.0
    %1659 = vmatprep.subr.mxu0 0.0
    %1660 = vmatpush1.msra.mxu0 0.0
    %1661 = vmatprep.subr.mxu0 0.0
    %1662 = vmatpush1.msra.mxu0 0.0
    %1663 = vmatprep.subr.mxu0 0.0
    %1664 = vmatpush1.msra.mxu0 0.0
    %1665 = vmatprep.subr.mxu0 0.0
    %1666 = vmatpush1.msra.mxu0 0.0
    %1667 = vmatprep.subr.mxu0 0.0
    %1668 = vmatpush1.msra.mxu0 0.0
    %1669 = vmatprep.subr.mxu0 0.0
    %1670 = vmatpush1.msra.mxu0 0.0
    %1671 = vmatprep.subr.mxu0 0.0
    %1672 = vmatpush1.msra.mxu0 0.0
    %1673 = vmatprep.subr.mxu0 0.0
    %1674 = vmatpush1.msra.mxu0 0.0
    %1675 = vmatprep.subr.mxu0 0.0
    %1676 = vmatpush1.msra.mxu0 0.0
    %1677 = vmatprep.subr.mxu0 0.0
    %1678 = vmatpush1.msra.mxu0 0.0
    %1679 = vmatprep.subr.mxu0 0.0
    %1680 = vmatpush1.msra.mxu0 0.0
    %1681 = vmatprep.subr.mxu0 0.0
    %1682 = vmatpush1.msra.mxu0 0.0
    %1683 = vmatprep.mubr.f32.mxu0 0.0
    %1684 = vmatmul.mubr.f32.gmra.mrb[0].mxu0 %v1446
    %v1685 = vpop.f32.mrb[0].mxu0
    %v1686 = vadd.f32 %v222, %v1685
    %v1687 = vpop.f32.mrb[0].mxu0
    %1688 = vdwg.mxu0
    %v1690 = vrot.slane %v1686, 6
    %v1692 = vadd.f32 %v212, %v1690
    %v1693 = vxor.u32 %v1692, 2147483648
    %v1694 = vmul.f32 %v1693, 1.442695
    %v1695 = vpow.pop %v1694
    %v1696 = vadd.f32 %v1695, 1.0
    %v1697 = vrcp.pop %v1696
    %v1698 = vmul.f32 1.0, %v1697
    %1699 = vrot.lane.b32.xlu0 %v1690, 64
    %v1700 = vpop.permute.xlu0 %1699
    %v1702 = vmul.f32 %v1698, %v1700
    %1704 = vrot.lane.b32.xlu0 %v1702, 64
    %v1705 = vpop.permute.xlu0 %1704
    %v1707 = vadd.f32 %v212, %v1705
    %v1708 = vtanh.pop %v1707
    %v1709 = vsub.f32 1.0, %v1698
    %1711 = vrot.lane.b32.xlu0 %v1708, 96
    %v1712 = vpop.permute.xlu0 %1711
    %v1714 = vmul.f32 %v1709, %v1712
    %v1715 = vrot.slane %v1442, 6
    %v1717 = vmul.f32 %v1698, %v1715
    %v1718 = vadd.f32 %v1714, %v1717
    %v1720 = vrot.slane %v1718, 2
    %1721 = vrot.lane.b32.xlu0 %v1720, 96
    %v1722 = vpop.permute.xlu0 %1721
    %v1723 = vsel %vm133, %v1722, 0
    %1725 = vmatprep.subr.mxu0 0.0
    %1726 = vmatpush1.msra.mxu0 %v106
    %1727 = vmatprep.subr.mxu0 0.0
    %1728 = vmatpush1.msra.mxu0 %v107
    %1729 = vmatprep.subr.mxu0 0.0
    %1730 = vmatpush1.msra.mxu0 %v108
    %1731 = vmatprep.subr.mxu0 0.0
    %1732 = vmatpush1.msra.mxu0 %v109
    %1733 = vmatprep.subr.mxu0 0.0
    %1734 = vmatpush1.msra.mxu0 0.0
    %1735 = vmatprep.subr.mxu0 0.0
    %1736 = vmatpush1.msra.mxu0 0.0
    %1737 = vmatprep.subr.mxu0 0.0
    %1738 = vmatpush1.msra.mxu0 0.0
    %1739 = vmatprep.subr.mxu0 0.0
    %1740 = vmatpush1.msra.mxu0 0.0
    %1741 = vmatprep.subr.mxu0 0.0
    %1742 = vmatpush1.msra.mxu0 0.0
    %1743 = vmatprep.subr.mxu0 0.0
    %1744 = vmatpush1.msra.mxu0 0.0
    %1745 = vmatprep.subr.mxu0 0.0
    %1746 = vmatpush1.msra.mxu0 0.0
    %1747 = vmatprep.subr.mxu0 0.0
    %1748 = vmatpush1.msra.mxu0 0.0
    %1749 = vmatprep.subr.mxu0 0.0
    %1750 = vmatpush1.msra.mxu0 0.0
    %1751 = vmatprep.subr.mxu0 0.0
    %1752 = vmatpush1.msra.mxu0 0.0
    %1753 = vmatprep.subr.mxu0 0.0
    %1754 = vmatpush1.msra.mxu0 0.0
    %1755 = vmatprep.subr.mxu0 0.0
    %1756 = vmatpush1.msra.mxu0 0.0
    %1757 = vmatprep.subr.mxu0 0.0
    %1758 = vmatpush1.msra.mxu0 0.0
    %1759 = vmatprep.subr.mxu0 0.0
    %1760 = vmatpush1.msra.mxu0 0.0
    %1761 = vmatprep.subr.mxu0 0.0
    %1762 = vmatpush1.msra.mxu0 0.0
    %1763 = vmatprep.subr.mxu0 0.0
    %1764 = vmatpush1.msra.mxu0 0.0
    %1765 = vmatprep.subr.mxu0 0.0
    %1766 = vmatpush1.msra.mxu0 0.0
    %1767 = vmatprep.subr.mxu0 0.0
    %1768 = vmatpush1.msra.mxu0 0.0
    %1769 = vmatprep.subr.mxu0 0.0
    %1770 = vmatpush1.msra.mxu0 0.0
    %1771 = vmatprep.subr.mxu0 0.0
    %1772 = vmatpush1.msra.mxu0 0.0
    %1773 = vmatprep.subr.mxu0 0.0
    %1774 = vmatpush1.msra.mxu0 0.0
    %1775 = vmatprep.subr.mxu0 0.0
    %1776 = vmatpush1.msra.mxu0 0.0
    %1777 = vmatprep.subr.mxu0 0.0
    %1778 = vmatpush1.msra.mxu0 0.0
    %1779 = vmatprep.subr.mxu0 0.0
    %1780 = vmatpush1.msra.mxu0 0.0
    %1781 = vmatprep.subr.mxu0 0.0
    %1782 = vmatpush1.msra.mxu0 0.0
    %1783 = vmatprep.subr.mxu0 0.0
    %1784 = vmatpush1.msra.mxu0 0.0
    %1785 = vmatprep.subr.mxu0 0.0
    %1786 = vmatpush1.msra.mxu0 0.0
    %1787 = vmatprep.subr.mxu0 0.0
    %1788 = vmatpush1.msra.mxu0 0.0
    %1789 = vmatprep.mubr.f32.mxu0 0.0
    %1790 = vmatmul.mubr.f32.gmra.mrb[0].mxu0 %v1723
    %v1791 = vpop.f32.mrb[0].mxu0
    %v1792 = vadd.f32 %v330, %v1791
    %v1793 = vpop.f32.mrb[0].mxu0
    %1794 = vdwg.mxu0
    %1796 = vrot.lane.b32.xlu0 %v1618, 96
    %v1797 = vpop.permute.xlu0 %1796
    %v1798 = vsel %vm133, %v1797, 0
    %1800 = vmatprep.subr.mxu0 0.0
    %1801 = vmatpush1.msra.mxu0 %v115
    %1802 = vmatprep.subr.mxu0 0.0
    %1803 = vmatpush1.msra.mxu0 %v116
    %1804 = vmatprep.subr.mxu0 0.0
    %1805 = vmatpush1.msra.mxu0 %v117
    %1806 = vmatprep.subr.mxu0 0.0
    %1807 = vmatpush1.msra.mxu0 %v118
    %1808 = vmatprep.subr.mxu0 0.0
    %1809 = vmatpush1.msra.mxu0 0.0
    %1810 = vmatprep.subr.mxu0 0.0
    %1811 = vmatpush1.msra.mxu0 0.0
    %1812 = vmatprep.subr.mxu0 0.0
    %1813 = vmatpush1.msra.mxu0 0.0
    %1814 = vmatprep.subr.mxu0 0.0
    %1815 = vmatpush1.msra.mxu0 0.0
    %1816 = vmatprep.subr.mxu0 0.0
    %1817 = vmatpush1.msra.mxu0 0.0
    %1818 = vmatprep.subr.mxu0 0.0
    %1819 = vmatpush1.msra.mxu0 0.0
    %1820 = vmatprep.subr.mxu0 0.0
    %1821 = vmatpush1.msra.mxu0 0.0
    %1822 = vmatprep.subr.mxu0 0.0
    %1823 = vmatpush1.msra.mxu0 0.0
    %1824 = vmatprep.subr.mxu0 0.0
    %1825 = vmatpush1.msra.mxu0 0.0
    %1826 = vmatprep.subr.mxu0 0.0
    %1827 = vmatpush1.msra.mxu0 0.0
    %1828 = vmatprep.subr.mxu0 0.0
    %1829 = vmatpush1.msra.mxu0 0.0
    %1830 = vmatprep.subr.mxu0 0.0
    %1831 = vmatpush1.msra.mxu0 0.0
    %1832 = vmatprep.subr.mxu0 0.0
    %1833 = vmatpush1.msra.mxu0 0.0
    %1834 = vmatprep.subr.mxu0 0.0
    %1835 = vmatpush1.msra.mxu0 0.0
    %1836 = vmatprep.subr.mxu0 0.0
    %1837 = vmatpush1.msra.mxu0 0.0
    %1838 = vmatprep.subr.mxu0 0.0
    %1839 = vmatpush1.msra.mxu0 0.0
    %1840 = vmatprep.subr.mxu0 0.0
    %1841 = vmatpush1.msra.mxu0 0.0
    %1842 = vmatprep.subr.mxu0 0.0
    %1843 = vmatpush1.msra.mxu0 0.0
    %1844 = vmatprep.subr.mxu0 0.0
    %1845 = vmatpush1.msra.mxu0 0.0
    %1846 = vmatprep.subr.mxu0 0.0
    %1847 = vmatpush1.msra.mxu0 0.0
    %1848 = vmatprep.subr.mxu0 0.0
    %1849 = vmatpush1.msra.mxu0 0.0
    %1850 = vmatprep.subr.mxu0 0.0
    %1851 = vmatpush1.msra.mxu0 0.0
    %1852 = vmatprep.subr.mxu0 0.0
    %1853 = vmatpush1.msra.mxu0 0.0
    %1854 = vmatprep.subr.mxu0 0.0
    %1855 = vmatpush1.msra.mxu0 0.0
    %1856 = vmatprep.subr.mxu0 0.0
    %1857 = vmatpush1.msra.mxu0 0.0
    %1858 = vmatprep.subr.mxu0 0.0
    %1859 = vmatpush1.msra.mxu0 0.0
    %1860 = vmatprep.subr.mxu0 0.0
    %1861 = vmatpush1.msra.mxu0 0.0
    %1862 = vmatprep.subr.mxu0 0.0
    %1863 = vmatpush1.msra.mxu0 0.0
    %1864 = vmatprep.mubr.f32.mxu0 0.0
    %1865 = vmatmul.mubr.f32.gmra.mrb[0].mxu0 %v1798
    %v1866 = vpop.f32.mrb[0].mxu0
    %v1867 = vadd.f32 %v411, %v1866
    %v1868 = vpop.f32.mrb[0].mxu0
    %1869 = vdwg.mxu0
    %v1870 = vadd.f32 %v1792, %v1867
    %v1871 = vxor.u32 %v1870, 2147483648
    %v1872 = vmul.f32 %v1871, 1.442695
    %v1873 = vpow.pop %v1872
    %v1874 = vadd.f32 %v1873, 1.0
    %v1875 = vrcp.pop %v1874
    %v1876 = vmul.f32 1.0, %v1875
    %1878 = vrot.lane.b32.xlu0 %v1867, 64
    %v1879 = vpop.permute.xlu0 %1878
    %v1881 = vmul.f32 %v1876, %v1879
    %1883 = vrot.lane.b32.xlu0 %v1881, 64
    %v1884 = vpop.permute.xlu0 %1883
    %v1886 = vadd.f32 %v1792, %v1884
    %v1887 = vtanh.pop %v1886
    %v1888 = vsub.f32 1.0, %v1876
    %1890 = vrot.lane.b32.xlu0 %v1887, 96
    %v1891 = vpop.permute.xlu0 %1890
    %v1893 = vmul.f32 %v1888, %v1891
    %v1894 = vmul.f32 %v1876, %v1618
    %v1895 = vadd.f32 %v1893, %v1894
    %1896 = vmatprep.subr.mxu0 0.0
    %1897 = vmatpush1.msra.mxu0 %v110
    %1898 = vmatprep.subr.mxu0 0.0
    %1899 = vmatpush1.msra.mxu0 %v111
    %1900 = vmatprep.subr.mxu0 0.0
    %1901 = vmatpush1.msra.mxu0 %v112
    %1902 = vmatprep.subr.mxu0 0.0
    %1903 = vmatpush1.msra.mxu0 %v113
    %1904 = vmatprep.subr.mxu0 0.0
    %1905 = vmatpush1.msra.mxu0 0.0
    %1906 = vmatprep.subr.mxu0 0.0
    %1907 = vmatpush1.msra.mxu0 0.0
    %1908 = vmatprep.subr.mxu0 0.0
    %1909 = vmatpush1.msra.mxu0 0.0
    %1910 = vmatprep.subr.mxu0 0.0
    %1911 = vmatpush1.msra.mxu0 0.0
    %1912 = vmatprep.subr.mxu0 0.0
    %1913 = vmatpush1.msra.mxu0 0.0
    %1914 = vmatprep.subr.mxu0 0.0
    %1915 = vmatpush1.msra.mxu0 0.0
    %1916 = vmatprep.subr.mxu0 0.0
    %1917 = vmatpush1.msra.mxu0 0.0
    %1918 = vmatprep.subr.mxu0 0.0
    %1919 = vmatpush1.msra.mxu0 0.0
    %1920 = vmatprep.subr.mxu0 0.0
    %1921 = vmatpush1.msra.mxu0 0.0
    %1922 = vmatprep.subr.mxu0 0.0
    %1923 = vmatpush1.msra.mxu0 0.0
    %1924 = vmatprep.subr.mxu0 0.0
    %1925 = vmatpush1.msra.mxu0 0.0
    %1926 = vmatprep.subr.mxu0 0.0
    %1927 = vmatpush1.msra.mxu0 0.0
    %1928 = vmatprep.subr.mxu0 0.0
    %1929 = vmatpush1.msra.mxu0 0.0
    %1930 = vmatprep.subr.mxu0 0.0
    %1931 = vmatpush1.msra.mxu0 0.0
    %1932 = vmatprep.subr.mxu0 0.0
    %1933 = vmatpush1.msra.mxu0 0.0
    %1934 = vmatprep.subr.mxu0 0.0
    %1935 = vmatpush1.msra.mxu0 0.0
    %1936 = vmatprep.subr.mxu0 0.0
    %1937 = vmatpush1.msra.mxu0 0.0
    %1938 = vmatprep.subr.mxu0 0.0
    %1939 = vmatpush1.msra.mxu0 0.0
    %1940 = vmatprep.subr.mxu0 0.0
    %1941 = vmatpush1.msra.mxu0 0.0
    %1942 = vmatprep.subr.mxu0 0.0
    %1943 = vmatpush1.msra.mxu0 0.0
    %1944 = vmatprep.subr.mxu0 0.0
    %1945 = vmatpush1.msra.mxu0 0.0
    %1946 = vmatprep.subr.mxu0 0.0
    %1947 = vmatpush1.msra.mxu0 0.0
    %1948 = vmatprep.subr.mxu0 0.0
    %1949 = vmatpush1.msra.mxu0 0.0
    %1950 = vmatprep.subr.mxu0 0.0
    %1951 = vmatpush1.msra.mxu0 0.0
    %1952 = vmatprep.subr.mxu0 0.0
    %1953 = vmatpush1.msra.mxu0 0.0
    %1954 = vmatprep.subr.mxu0 0.0
    %1955 = vmatpush1.msra.mxu0 0.0
    %1956 = vmatprep.subr.mxu0 0.0
    %1957 = vmatpush1.msra.mxu0 0.0
    %1958 = vmatprep.subr.mxu0 0.0
    %1959 = vmatpush1.msra.mxu0 0.0
    %1960 = vmatprep.mubr.f32.mxu0 0.0
    %1961 = vmatmul.mubr.f32.gmra.mrb[0].mxu0 %v1723
    %v1962 = vpop.f32.mrb[0].mxu0
    %v1963 = vadd.f32 %v222, %v1962
    %v1964 = vpop.f32.mrb[0].mxu0
    %1965 = vdwg.mxu0
    %v1967 = vrot.slane %v1963, 4
    %v1969 = vadd.f32 %v212, %v1967
    %v1970 = vxor.u32 %v1969, 2147483648
    %v1971 = vmul.f32 %v1970, 1.442695
    %v1972 = vpow.pop %v1971
    %v1973 = vadd.f32 %v1972, 1.0
    %v1974 = vrcp.pop %v1973
    %v1975 = vmul.f32 1.0, %v1974
    %1976 = vrot.lane.b32.xlu0 %v1967, 64
    %v1977 = vpop.permute.xlu0 %1976
    %v1979 = vmul.f32 %v1975, %v1977
    %1981 = vrot.lane.b32.xlu0 %v1979, 64
    %v1982 = vpop.permute.xlu0 %1981
    %v1984 = vadd.f32 %v212, %v1982
    %v1985 = vtanh.pop %v1984
    %v1986 = vsub.f32 1.0, %v1975
    %1988 = vrot.lane.b32.xlu0 %v1985, 96
    %v1989 = vpop.permute.xlu0 %1988
    %v1991 = vmul.f32 %v1986, %v1989
    %v1992 = vrot.slane %v1718, 6
    %v1994 = vmul.f32 %v1975, %v1992
    %v1995 = vadd.f32 %v1991, %v1994
    %v1997 = vrot.slane %v1995, 4
    %1998 = vrot.lane.b32.xlu0 %v1997, 96
    %v1999 = vpop.permute.xlu0 %1998
    %v2000 = vsel %vm133, %v1999, 0
    %2002 = vmatprep.subr.mxu0 0.0
    %2003 = vmatpush1.msra.mxu0 %v106
    %2004 = vmatprep.subr.mxu0 0.0
    %2005 = vmatpush1.msra.mxu0 %v107
    %2006 = vmatprep.subr.mxu0 0.0
    %2007 = vmatpush1.msra.mxu0 %v108
    %2008 = vmatprep.subr.mxu0 0.0
    %2009 = vmatpush1.msra.mxu0 %v109
    %2010 = vmatprep.subr.mxu0 0.0
    %2011 = vmatpush1.msra.mxu0 0.0
    %2012 = vmatprep.subr.mxu0 0.0
    %2013 = vmatpush1.msra.mxu0 0.0
    %2014 = vmatprep.subr.mxu0 0.0
    %2015 = vmatpush1.msra.mxu0 0.0
    %2016 = vmatprep.subr.mxu0 0.0
    %2017 = vmatpush1.msra.mxu0 0.0
    %2018 = vmatprep.subr.mxu0 0.0
    %2019 = vmatpush1.msra.mxu0 0.0
    %2020 = vmatprep.subr.mxu0 0.0
    %2021 = vmatpush1.msra.mxu0 0.0
    %2022 = vmatprep.subr.mxu0 0.0
    %2023 = vmatpush1.msra.mxu0 0.0
    %2024 = vmatprep.subr.mxu0 0.0
    %2025 = vmatpush1.msra.mxu0 0.0
    %2026 = vmatprep.subr.mxu0 0.0
    %2027 = vmatpush1.msra.mxu0 0.0
    %2028 = vmatprep.subr.mxu0 0.0
    %2029 = vmatpush1.msra.mxu0 0.0
    %2030 = vmatprep.subr.mxu0 0.0
    %2031 = vmatpush1.msra.mxu0 0.0
    %2032 = vmatprep.subr.mxu0 0.0
    %2033 = vmatpush1.msra.mxu0 0.0
    %2034 = vmatprep.subr.mxu0 0.0
    %2035 = vmatpush1.msra.mxu0 0.0
    %2036 = vmatprep.subr.mxu0 0.0
    %2037 = vmatpush1.msra.mxu0 0.0
    %2038 = vmatprep.subr.mxu0 0.0
    %2039 = vmatpush1.msra.mxu0 0.0
    %2040 = vmatprep.subr.mxu0 0.0
    %2041 = vmatpush1.msra.mxu0 0.0
    %2042 = vmatprep.subr.mxu0 0.0
    %2043 = vmatpush1.msra.mxu0 0.0
    %2044 = vmatprep.subr.mxu0 0.0
    %2045 = vmatpush1.msra.mxu0 0.0
    %2046 = vmatprep.subr.mxu0 0.0
    %2047 = vmatpush1.msra.mxu0 0.0
    %2048 = vmatprep.subr.mxu0 0.0
    %2049 = vmatpush1.msra.mxu0 0.0
    %2050 = vmatprep.subr.mxu0 0.0
    %2051 = vmatpush1.msra.mxu0 0.0
    %2052 = vmatprep.subr.mxu0 0.0
    %2053 = vmatpush1.msra.mxu0 0.0
    %2054 = vmatprep.subr.mxu0 0.0
    %2055 = vmatpush1.msra.mxu0 0.0
    %2056 = vmatprep.subr.mxu0 0.0
    %2057 = vmatpush1.msra.mxu0 0.0
    %2058 = vmatprep.subr.mxu0 0.0
    %2059 = vmatpush1.msra.mxu0 0.0
    %2060 = vmatprep.subr.mxu0 0.0
    %2061 = vmatpush1.msra.mxu0 0.0
    %2062 = vmatprep.subr.mxu0 0.0
    %2063 = vmatpush1.msra.mxu0 0.0
    %2064 = vmatprep.subr.mxu0 0.0
    %2065 = vmatpush1.msra.mxu0 0.0
    %2066 = vmatprep.mubr.f32.mxu0 0.0
    %2067 = vmatmul.mubr.f32.gmra.mrb[0].mxu0 %v2000
    %v2068 = vpop.f32.mrb[0].mxu0
    %v2069 = vadd.f32 %v330, %v2068
    %v2070 = vpop.f32.mrb[0].mxu0
    %2071 = vdwg.mxu0
    %2073 = vrot.lane.b32.xlu0 %v1895, 96
    %v2074 = vpop.permute.xlu0 %2073
    %v2075 = vsel %vm133, %v2074, 0
    %2077 = vmatprep.subr.mxu0 0.0
    %2078 = vmatpush1.msra.mxu0 %v115
    %2079 = vmatprep.subr.mxu0 0.0
    %2080 = vmatpush1.msra.mxu0 %v116
    %2081 = vmatprep.subr.mxu0 0.0
    %2082 = vmatpush1.msra.mxu0 %v117
    %2083 = vmatprep.subr.mxu0 0.0
    %2084 = vmatpush1.msra.mxu0 %v118
    %2085 = vmatprep.subr.mxu0 0.0
    %2086 = vmatpush1.msra.mxu0 0.0
    %2087 = vmatprep.subr.mxu0 0.0
    %2088 = vmatpush1.msra.mxu0 0.0
    %2089 = vmatprep.subr.mxu0 0.0
    %2090 = vmatpush1.msra.mxu0 0.0
    %2091 = vmatprep.subr.mxu0 0.0
    %2092 = vmatpush1.msra.mxu0 0.0
    %2093 = vmatprep.subr.mxu0 0.0
    %2094 = vmatpush1.msra.mxu0 0.0
    %2095 = vmatprep.subr.mxu0 0.0
    %2096 = vmatpush1.msra.mxu0 0.0
    %2097 = vmatprep.subr.mxu0 0.0
    %2098 = vmatpush1.msra.mxu0 0.0
    %2099 = vmatprep.subr.mxu0 0.0
    %2100 = vmatpush1.msra.mxu0 0.0
    %2101 = vmatprep.subr.mxu0 0.0
    %2102 = vmatpush1.msra.mxu0 0.0
    %2103 = vmatprep.subr.mxu0 0.0
    %2104 = vmatpush1.msra.mxu0 0.0
    %2105 = vmatprep.subr.mxu0 0.0
    %2106 = vmatpush1.msra.mxu0 0.0
    %2107 = vmatprep.subr.mxu0 0.0
    %2108 = vmatpush1.msra.mxu0 0.0
    %2109 = vmatprep.subr.mxu0 0.0
    %2110 = vmatpush1.msra.mxu0 0.0
    %2111 = vmatprep.subr.mxu0 0.0
    %2112 = vmatpush1.msra.mxu0 0.0
    %2113 = vmatprep.subr.mxu0 0.0
    %2114 = vmatpush1.msra.mxu0 0.0
    %2115 = vmatprep.subr.mxu0 0.0
    %2116 = vmatpush1.msra.mxu0 0.0
    %2117 = vmatprep.subr.mxu0 0.0
    %2118 = vmatpush1.msra.mxu0 0.0
    %2119 = vmatprep.subr.mxu0 0.0
    %2120 = vmatpush1.msra.mxu0 0.0
    %2121 = vmatprep.subr.mxu0 0.0
    %2122 = vmatpush1.msra.mxu0 0.0
    %2123 = vmatprep.subr.mxu0 0.0
    %2124 = vmatpush1.msra.mxu0 0.0
    %2125 = vmatprep.subr.mxu0 0.0
    %2126 = vmatpush1.msra.mxu0 0.0
    %2127 = vmatprep.subr.mxu0 0.0
    %2128 = vmatpush1.msra.mxu0 0.0
    %2129 = vmatprep.subr.mxu0 0.0
    %2130 = vmatpush1.msra.mxu0 0.0
    %2131 = vmatprep.subr.mxu0 0.0
    %2132 = vmatpush1.msra.mxu0 0.0
    %2133 = vmatprep.subr.mxu0 0.0
    %2134 = vmatpush1.msra.mxu0 0.0
    %2135 = vmatprep.subr.mxu0 0.0
    %2136 = vmatpush1.msra.mxu0 0.0
    %2137 = vmatprep.subr.mxu0 0.0
    %2138 = vmatpush1.msra.mxu0 0.0
    %2139 = vmatprep.subr.mxu0 0.0
    %2140 = vmatpush1.msra.mxu0 0.0
    %2141 = vmatprep.mubr.f32.mxu0 0.0
    %2142 = vmatmul.mubr.f32.gmra.mrb[0].mxu0 %v2075
    %v2143 = vpop.f32.mrb[0].mxu0
    %v2144 = vadd.f32 %v411, %v2143
    %v2145 = vpop.f32.mrb[0].mxu0
    %2146 = vdwg.mxu0
    %v2147 = vadd.f32 %v2069, %v2144
    %v2148 = vxor.u32 %v2147, 2147483648
    %v2149 = vmul.f32 %v2148, 1.442695
    %v2150 = vpow.pop %v2149
    %v2151 = vadd.f32 %v2150, 1.0
    %v2152 = vrcp.pop %v2151
    %v2153 = vmul.f32 1.0, %v2152
    %2155 = vrot.lane.b32.xlu0 %v2144, 64
    %v2156 = vpop.permute.xlu0 %2155
    %v2158 = vmul.f32 %v2153, %v2156
    %2160 = vrot.lane.b32.xlu0 %v2158, 64
    %v2161 = vpop.permute.xlu0 %2160
    %v2163 = vadd.f32 %v2069, %v2161
    %v2164 = vtanh.pop %v2163
    %v2165 = vsub.f32 1.0, %v2153
    %2167 = vrot.lane.b32.xlu0 %v2164, 96
    %v2168 = vpop.permute.xlu0 %2167
    %v2170 = vmul.f32 %v2165, %v2168
    %v2171 = vmul.f32 %v2153, %v1895
    %v2172 = vadd.f32 %v2170, %v2171
    %2173 = vmatprep.subr.mxu0 0.0
    %2174 = vmatpush1.msra.mxu0 %v110
    %2175 = vmatprep.subr.mxu0 0.0
    %2176 = vmatpush1.msra.mxu0 %v111
    %2177 = vmatprep.subr.mxu0 0.0
    %2178 = vmatpush1.msra.mxu0 %v112
    %2179 = vmatprep.subr.mxu0 0.0
    %2180 = vmatpush1.msra.mxu0 %v113
    %2181 = vmatprep.subr.mxu0 0.0
    %2182 = vmatpush1.msra.mxu0 0.0
    %2183 = vmatprep.subr.mxu0 0.0
    %2184 = vmatpush1.msra.mxu0 0.0
    %2185 = vmatprep.subr.mxu0 0.0
    %2186 = vmatpush1.msra.mxu0 0.0
    %2187 = vmatprep.subr.mxu0 0.0
    %2188 = vmatpush1.msra.mxu0 0.0
    %2189 = vmatprep.subr.mxu0 0.0
    %2190 = vmatpush1.msra.mxu0 0.0
    %2191 = vmatprep.subr.mxu0 0.0
    %2192 = vmatpush1.msra.mxu0 0.0
    %2193 = vmatprep.subr.mxu0 0.0
    %2194 = vmatpush1.msra.mxu0 0.0
    %2195 = vmatprep.subr.mxu0 0.0
    %2196 = vmatpush1.msra.mxu0 0.0
    %2197 = vmatprep.subr.mxu0 0.0
    %2198 = vmatpush1.msra.mxu0 0.0
    %2199 = vmatprep.subr.mxu0 0.0
    %2200 = vmatpush1.msra.mxu0 0.0
    %2201 = vmatprep.subr.mxu0 0.0
    %2202 = vmatpush1.msra.mxu0 0.0
    %2203 = vmatprep.subr.mxu0 0.0
    %2204 = vmatpush1.msra.mxu0 0.0
    %2205 = vmatprep.subr.mxu0 0.0
    %2206 = vmatpush1.msra.mxu0 0.0
    %2207 = vmatprep.subr.mxu0 0.0
    %2208 = vmatpush1.msra.mxu0 0.0
    %2209 = vmatprep.subr.mxu0 0.0
    %2210 = vmatpush1.msra.mxu0 0.0
    %2211 = vmatprep.subr.mxu0 0.0
    %2212 = vmatpush1.msra.mxu0 0.0
    %2213 = vmatprep.subr.mxu0 0.0
    %2214 = vmatpush1.msra.mxu0 0.0
    %2215 = vmatprep.subr.mxu0 0.0
    %2216 = vmatpush1.msra.mxu0 0.0
    %2217 = vmatprep.subr.mxu0 0.0
    %2218 = vmatpush1.msra.mxu0 0.0
    %2219 = vmatprep.subr.mxu0 0.0
    %2220 = vmatpush1.msra.mxu0 0.0
    %2221 = vmatprep.subr.mxu0 0.0
    %2222 = vmatpush1.msra.mxu0 0.0
    %2223 = vmatprep.subr.mxu0 0.0
    %2224 = vmatpush1.msra.mxu0 0.0
    %2225 = vmatprep.subr.mxu0 0.0
    %2226 = vmatpush1.msra.mxu0 0.0
    %2227 = vmatprep.subr.mxu0 0.0
    %2228 = vmatpush1.msra.mxu0 0.0
    %2229 = vmatprep.subr.mxu0 0.0
    %2230 = vmatpush1.msra.mxu0 0.0
    %2231 = vmatprep.subr.mxu0 0.0
    %2232 = vmatpush1.msra.mxu0 0.0
    %2233 = vmatprep.subr.mxu0 0.0
    %2234 = vmatpush1.msra.mxu0 0.0
    %2235 = vmatprep.subr.mxu0 0.0
    %2236 = vmatpush1.msra.mxu0 0.0
    %2237 = vmatprep.mubr.f32.mxu0 0.0
    %2238 = vmatmul.mubr.f32.gmra.mrb[0].mxu0 %v2000
    %v2239 = vpop.f32.mrb[0].mxu0
    %v2240 = vadd.f32 %v222, %v2239
    %v2241 = vpop.f32.mrb[0].mxu0
    %2242 = vdwg.mxu0
    %v2244 = vrot.slane %v2240, 2
    %v2246 = vadd.f32 %v212, %v2244
    %v2247 = vxor.u32 %v2246, 2147483648
    %v2248 = vmul.f32 %v2247, 1.442695
    %v2249 = vpow.pop %v2248
    %v2250 = vadd.f32 %v2249, 1.0
    %v2251 = vrcp.pop %v2250
    %v2252 = vmul.f32 1.0, %v2251
    %2253 = vrot.lane.b32.xlu0 %v2244, 64
    %v2254 = vpop.permute.xlu0 %2253
    %v2256 = vmul.f32 %v2252, %v2254
    %2258 = vrot.lane.b32.xlu0 %v2256, 64
    %v2259 = vpop.permute.xlu0 %2258
    %v2261 = vadd.f32 %v212, %v2259
    %v2262 = vtanh.pop %v2261
    %v2263 = vsub.f32 1.0, %v2252
    %2265 = vrot.lane.b32.xlu0 %v2262, 96
    %v2266 = vpop.permute.xlu0 %2265
    %v2268 = vmul.f32 %v2263, %v2266
    %v2269 = vrot.slane %v1995, 6
    %v2271 = vmul.f32 %v2252, %v2269
    %v2272 = vadd.f32 %v2268, %v2271
    %v2274 = vrot.slane %v2272, 6
    %2275 = vrot.lane.b32.xlu0 %v2274, 96
    %v2276 = vpop.permute.xlu0 %2275
    %v2277 = vsel %vm133, %v2276, 0
    %2279 = vmatprep.subr.mxu0 0.0
    %2280 = vmatpush1.msra.mxu0 %v106
    %2281 = vmatprep.subr.mxu0 0.0
    %2282 = vmatpush1.msra.mxu0 %v107
    %2283 = vmatprep.subr.mxu0 0.0
    %2284 = vmatpush1.msra.mxu0 %v108
    %2285 = vmatprep.subr.mxu0 0.0
    %2286 = vmatpush1.msra.mxu0 %v109
    %2287 = vmatprep.subr.mxu0 0.0
    %2288 = vmatpush1.msra.mxu0 0.0
    %2289 = vmatprep.subr.mxu0 0.0
    %2290 = vmatpush1.msra.mxu0 0.0
    %2291 = vmatprep.subr.mxu0 0.0
    %2292 = vmatpush1.msra.mxu0 0.0
    %2293 = vmatprep.subr.mxu0 0.0
    %2294 = vmatpush1.msra.mxu0 0.0
    %2295 = vmatprep.subr.mxu0 0.0
    %2296 = vmatpush1.msra.mxu0 0.0
    %2297 = vmatprep.subr.mxu0 0.0
    %2298 = vmatpush1.msra.mxu0 0.0
    %2299 = vmatprep.subr.mxu0 0.0
    %2300 = vmatpush1.msra.mxu0 0.0
    %2301 = vmatprep.subr.mxu0 0.0
    %2302 = vmatpush1.msra.mxu0 0.0
    %2303 = vmatprep.subr.mxu0 0.0
    %2304 = vmatpush1.msra.mxu0 0.0
    %2305 = vmatprep.subr.mxu0 0.0
    %2306 = vmatpush1.msra.mxu0 0.0
    %2307 = vmatprep.subr.mxu0 0.0
    %2308 = vmatpush1.msra.mxu0 0.0
    %2309 = vmatprep.subr.mxu0 0.0
    %2310 = vmatpush1.msra.mxu0 0.0
    %2311 = vmatprep.subr.mxu0 0.0
    %2312 = vmatpush1.msra.mxu0 0.0
    %2313 = vmatprep.subr.mxu0 0.0
    %2314 = vmatpush1.msra.mxu0 0.0
    %2315 = vmatprep.subr.mxu0 0.0
    %2316 = vmatpush1.msra.mxu0 0.0
    %2317 = vmatprep.subr.mxu0 0.0
    %2318 = vmatpush1.msra.mxu0 0.0
    %2319 = vmatprep.subr.mxu0 0.0
    %2320 = vmatpush1.msra.mxu0 0.0
    %2321 = vmatprep.subr.mxu0 0.0
    %2322 = vmatpush1.msra.mxu0 0.0
    %2323 = vmatprep.subr.mxu0 0.0
    %2324 = vmatpush1.msra.mxu0 0.0
    %2325 = vmatprep.subr.mxu0 0.0
    %2326 = vmatpush1.msra.mxu0 0.0
    %2327 = vmatprep.subr.mxu0 0.0
    %2328 = vmatpush1.msra.mxu0 0.0
    %2329 = vmatprep.subr.mxu0 0.0
    %2330 = vmatpush1.msra.mxu0 0.0
    %2331 = vmatprep.subr.mxu0 0.0
    %2332 = vmatpush1.msra.mxu0 0.0
    %2333 = vmatprep.subr.mxu0 0.0
    %2334 = vmatpush1.msra.mxu0 0.0
    %2335 = vmatprep.subr.mxu0 0.0
    %2336 = vmatpush1.msra.mxu0 0.0
    %2337 = vmatprep.subr.mxu0 0.0
    %2338 = vmatpush1.msra.mxu0 0.0
    %2339 = vmatprep.subr.mxu0 0.0
    %2340 = vmatpush1.msra.mxu0 0.0
    %2341 = vmatprep.subr.mxu0 0.0
    %2342 = vmatpush1.msra.mxu0 0.0
    %2343 = vmatprep.mubr.f32.mxu0 0.0
    %2344 = vmatmul.mubr.f32.gmra.mrb[0].mxu0 %v2277
    %v2345 = vpop.f32.mrb[0].mxu0
    %v2346 = vadd.f32 %v330, %v2345
    %v2347 = vpop.f32.mrb[0].mxu0
    %2348 = vdwg.mxu0
    %2350 = vrot.lane.b32.xlu0 %v2172, 96
    %v2351 = vpop.permute.xlu0 %2350
    %v2352 = vsel %vm133, %v2351, 0
    %2354 = vmatprep.subr.mxu0 0.0
    %2355 = vmatpush1.msra.mxu0 %v115
    %2356 = vmatprep.subr.mxu0 0.0
    %2357 = vmatpush1.msra.mxu0 %v116
    %2358 = vmatprep.subr.mxu0 0.0
    %2359 = vmatpush1.msra.mxu0 %v117
    %2360 = vmatprep.subr.mxu0 0.0
    %2361 = vmatpush1.msra.mxu0 %v118
    %2362 = vmatprep.subr.mxu0 0.0
    %2363 = vmatpush1.msra.mxu0 0.0
    %2364 = vmatprep.subr.mxu0 0.0
    %2365 = vmatpush1.msra.mxu0 0.0
    %2366 = vmatprep.subr.mxu0 0.0
    %2367 = vmatpush1.msra.mxu0 0.0
    %2368 = vmatprep.subr.mxu0 0.0
    %2369 = vmatpush1.msra.mxu0 0.0
    %2370 = vmatprep.subr.mxu0 0.0
    %2371 = vmatpush1.msra.mxu0 0.0
    %2372 = vmatprep.subr.mxu0 0.0
    %2373 = vmatpush1.msra.mxu0 0.0
    %2374 = vmatprep.subr.mxu0 0.0
    %2375 = vmatpush1.msra.mxu0 0.0
    %2376 = vmatprep.subr.mxu0 0.0
    %2377 = vmatpush1.msra.mxu0 0.0
    %2378 = vmatprep.subr.mxu0 0.0
    %2379 = vmatpush1.msra.mxu0 0.0
    %2380 = vmatprep.subr.mxu0 0.0
    %2381 = vmatpush1.msra.mxu0 0.0
    %2382 = vmatprep.subr.mxu0 0.0
    %2383 = vmatpush1.msra.mxu0 0.0
    %2384 = vmatprep.subr.mxu0 0.0
    %2385 = vmatpush1.msra.mxu0 0.0
    %2386 = vmatprep.subr.mxu0 0.0
    %2387 = vmatpush1.msra.mxu0 0.0
    %2388 = vmatprep.subr.mxu0 0.0
    %2389 = vmatpush1.msra.mxu0 0.0
    %2390 = vmatprep.subr.mxu0 0.0
    %2391 = vmatpush1.msra.mxu0 0.0
    %2392 = vmatprep.subr.mxu0 0.0
    %2393 = vmatpush1.msra.mxu0 0.0
    %2394 = vmatprep.subr.mxu0 0.0
    %2395 = vmatpush1.msra.mxu0 0.0
    %2396 = vmatprep.subr.mxu0 0.0
    %2397 = vmatpush1.msra.mxu0 0.0
    %2398 = vmatprep.subr.mxu0 0.0
    %2399 = vmatpush1.msra.mxu0 0.0
    %2400 = vmatprep.subr.mxu0 0.0
    %2401 = vmatpush1.msra.mxu0 0.0
    %2402 = vmatprep.subr.mxu0 0.0
    %2403 = vmatpush1.msra.mxu0 0.0
    %2404 = vmatprep.subr.mxu0 0.0
    %2405 = vmatpush1.msra.mxu0 0.0
    %2406 = vmatprep.subr.mxu0 0.0
    %2407 = vmatpush1.msra.mxu0 0.0
    %2408 = vmatprep.subr.mxu0 0.0
    %2409 = vmatpush1.msra.mxu0 0.0
    %2410 = vmatprep.subr.mxu0 0.0
    %2411 = vmatpush1.msra.mxu0 0.0
    %2412 = vmatprep.subr.mxu0 0.0
    %2413 = vmatpush1.msra.mxu0 0.0
    %2414 = vmatprep.subr.mxu0 0.0
    %2415 = vmatpush1.msra.mxu0 0.0
    %2416 = vmatprep.subr.mxu0 0.0
    %2417 = vmatpush1.msra.mxu0 0.0
    %2418 = vmatprep.mubr.f32.mxu0 0.0
    %2419 = vmatmul.mubr.f32.gmra.mrb[0].mxu0 %v2352
    %v2420 = vpop.f32.mrb[0].mxu0
    %v2421 = vadd.f32 %v411, %v2420
    %v2422 = vpop.f32.mrb[0].mxu0
    %2423 = vdwg.mxu0
    %v2424 = vadd.f32 %v2346, %v2421
    %v2425 = vxor.u32 %v2424, 2147483648
    %v2426 = vmul.f32 %v2425, 1.442695
    %v2427 = vpow.pop %v2426
    %v2428 = vadd.f32 %v2427, 1.0
    %v2429 = vrcp.pop %v2428
    %v2430 = vmul.f32 1.0, %v2429
    %2432 = vrot.lane.b32.xlu0 %v2421, 64
    %v2433 = vpop.permute.xlu0 %2432
    %v2435 = vmul.f32 %v2430, %v2433
    %2437 = vrot.lane.b32.xlu0 %v2435, 64
    %v2438 = vpop.permute.xlu0 %2437
    %v2440 = vadd.f32 %v2346, %v2438
    %v2441 = vtanh.pop %v2440
    %v2442 = vsub.f32 1.0, %v2430
    %2444 = vrot.lane.b32.xlu0 %v2441, 96
    %v2445 = vpop.permute.xlu0 %2444
    %v2447 = vmul.f32 %v2442, %v2445
    %v2448 = vmul.f32 %v2430, %v2172
    %v2449 = vadd.f32 %v2447, %v2448
    %2450 = vrot.lane.b32.xlu0 %v2272, 96
    %v2451 = vpop.permute.xlu0 %2450
    %vm2453 = vcmask 261126
    %2454 = vst.msk [vmem:[#allocation12 - $0x6] sm:$0xc0] %vm2453, %v2451
    %2456 = vrot.lane.b32.xlu0 %v2449, 96
    %v2457 = vpop.permute.xlu0 %2456
    %s2459 = scalar_lea.vmem [#allocation12], 2
    %vm2460 = vcmask 254976
    %2461 = vst.msk [vmem:[%s2459] sm:$0x3] %vm2460, %v2457
    %v2462 = vrot.slane %v791, 7
    %v2464 = vrot.slane %v1068, 6
    %v2466 = vrot.slane %v1345, 5
    %v2468 = vrot.slane %v1618, 4
    %v2470 = vrot.slane %v1895, 3
    %v2472 = vrot.slane %v2172, 2
    %v2474 = vrot.slane %v2449, 1
    %vm2476 = vcmask 1040384
    %v2477 = vsel %vm2476, %v514, %v2462
    %vm2478 = vcmask 1041408
    %v2479 = vsel %vm2478, %v2477, %v2464
    %vm2480 = vcmask 1042432
    %v2481 = vsel %vm2480, %v2479, %v2466
    %vm2482 = vcmask 1043456
    %v2483 = vsel %vm2482, %v2481, %v2468
    %vm2484 = vcmask 1044480
    %v2485 = vsel %vm2484, %v2483, %v2470
    %vm2486 = vcmask 1045504
    %v2487 = vsel %vm2486, %v2485, %v2472
    %vm2488 = vcmask 1046528
    %v2489 = vsel %vm2488, %v2487, %v2474
    %v2490 = vld [vmem:[#allocation10] sm:$0xff]
    %v2491 = vld [vmem:[#allocation10 + $0x8] sm:$0xff]
    %v2492 = vld [vmem:[#allocation10 + $0x10] sm:$0xff]
    %v2493 = vld [vmem:[#allocation10 + $0x18] sm:$0xff]
    %v2494 = vld [vmem:[%s7] sm:$0x1]
    %v2496 = vlaneseq
    %v2497 = vshrl.u32 %v2496, 7
    %v2498 = vsub.s32 0, %v2497
    %v2499 = vrot.slane %v2494, %v2498
    %2502 = vrot.lane.b32.xlu0 %v2489, 96
    %v2503 = vpop.permute.xlu0 %2502
    %v2504 = vsel %vm133, %v2503, 0
    %2506 = vmatprep.subr.mxu0 0.0
    %2507 = vmatpush1.msra.mxu0 %v2490
    %2508 = vmatprep.subr.mxu0 0.0
    %2509 = vmatpush1.msra.mxu0 %v2491
    %2510 = vmatprep.subr.mxu0 0.0
    %2511 = vmatpush1.msra.mxu0 %v2492
    %2512 = vmatprep.subr.mxu0 0.0
    %2513 = vmatpush1.msra.mxu0 %v2493
    %2514 = vmatprep.subr.mxu0 0.0
    %2515 = vmatpush1.msra.mxu0 0.0
    %2516 = vmatprep.subr.mxu0 0.0
    %2517 = vmatpush1.msra.mxu0 0.0
    %2518 = vmatprep.subr.mxu0 0.0
    %2519 = vmatpush1.msra.mxu0 0.0
    %2520 = vmatprep.subr.mxu0 0.0
    %2521 = vmatpush1.msra.mxu0 0.0
    %2522 = vmatprep.subr.mxu0 0.0
    %2523 = vmatpush1.msra.mxu0 0.0
    %2524 = vmatprep.subr.mxu0 0.0
    %2525 = vmatpush1.msra.mxu0 0.0
    %2526 = vmatprep.subr.mxu0 0.0
    %2527 = vmatpush1.msra.mxu0 0.0
    %2528 = vmatprep.subr.mxu0 0.0
    %2529 = vmatpush1.msra.mxu0 0.0
    %2530 = vmatprep.subr.mxu0 0.0
    %2531 = vmatpush1.msra.mxu0 0.0
    %2532 = vmatprep.subr.mxu0 0.0
    %2533 = vmatpush1.msra.mxu0 0.0
    %2534 = vmatprep.subr.mxu0 0.0
    %2535 = vmatpush1.msra.mxu0 0.0
    %2536 = vmatprep.subr.mxu0 0.0
    %2537 = vmatpush1.msra.mxu0 0.0
    %2538 = vmatprep.subr.mxu0 0.0
    %2539 = vmatpush1.msra.mxu0 0.0
    %2540 = vmatprep.subr.mxu0 0.0
    %2541 = vmatpush1.msra.mxu0 0.0
    %2542 = vmatprep.subr.mxu0 0.0
    %2543 = vmatpush1.msra.mxu0 0.0
    %2544 = vmatprep.subr.mxu0 0.0
    %2545 = vmatpush1.msra.mxu0 0.0
    %2546 = vmatprep.subr.mxu0 0.0
    %2547 = vmatpush1.msra.mxu0 0.0
    %2548 = vmatprep.subr.mxu0 0.0
    %2549 = vmatpush1.msra.mxu0 0.0
    %2550 = vmatprep.subr.mxu0 0.0
    %2551 = vmatpush1.msra.mxu0 0.0
    %2552 = vmatprep.subr.mxu0 0.0
    %2553 = vmatpush1.msra.mxu0 0.0
    %2554 = vmatprep.subr.mxu0 0.0
    %2555 = vmatpush1.msra.mxu0 0.0
    %2556 = vmatprep.subr.mxu0 0.0
    %2557 = vmatpush1.msra.mxu0 0.0
    %2558 = vmatprep.subr.mxu0 0.0
    %2559 = vmatpush1.msra.mxu0 0.0
    %2560 = vmatprep.subr.mxu0 0.0
    %2561 = vmatpush1.msra.mxu0 0.0
    %2562 = vmatprep.subr.mxu0 0.0
    %2563 = vmatpush1.msra.mxu0 0.0
    %2564 = vmatprep.subr.mxu0 0.0
    %2565 = vmatpush1.msra.mxu0 0.0
    %2566 = vmatprep.subr.mxu0 0.0
    %2567 = vmatpush1.msra.mxu0 0.0
    %2568 = vmatprep.subr.mxu0 0.0
    %2569 = vmatpush1.msra.mxu0 0.0
    %2570 = vmatprep.mubr.f32.mxu0 0.0
    %2571 = vmatmul.mubr.f32.gmra.mrb[0].mxu0 %v2504
    %v2572 = vpop.f32.mrb[0].mxu0
    %v2573 = vadd.f32 %v2499, %v2572
    %v2574 = vpop.f32.mrb[0].mxu0
    %2575 = vdwg.mxu0
    %v2576 = vsel %vm133, %v2573, -inf
    %2577 = vmax.xlane.f32.xlu0 %v2576
    %v2578 = vpop.xlane.xlu0 %2577
    %v2579 = vsub.f32 %v2573, %v2578
    %v2580 = vmul.f32 %v2579, 1.442695
    %v2581 = vpow.pop %v2580
    %v2582 = vsel %vm133, %v2581, 0.0
    %2583 = vadd.xlane.f32.xlu0 %v2582
    %v2584 = vpop.xlane.xlu0 %2583
    %v2585 = vlog2.pop %v2584
    %v2586 = vmul.f32 %v2585, 0.6931472
    %v2587 = vsub.f32 %v2579, %v2586
    %2588 = vst.msk [vmem:[#allocation11] sm:$0xff] %vm133, %v2587
    // Predicated region
    $region54: #{tpu_custom_call.1} parent=1 // pred_check
      _
    $region55: #{tpu_custom_call.1} parent=1 // pred_check_branch
      %2590 = sbr.rel (0) target = $region57
    $region56: #{tpu_custom_call.1} parent=1 // pred_region
      %s2592 = ssub.s32 128, 128
      %2593 = vsyncadd [#allocation4], %s2592
      %s2595 = sshll.u32 [#allocation11], 4
      %s2596 = int_to_ptr.vmem [resolvable:$true] %s2595
      %2598 = dma.vmem_to_hbm [thread:$0]  %s2596, 128, %s8, [#allocation4]
    $region57: #{tpu_custom_call.1} parent=1 // pred_fallthru
      _
    // Predicated region
    $region58: #{tpu_custom_call.1} parent=1 // pred_check
      _
    $region59: #{tpu_custom_call.1} parent=1 // pred_check_branch
      %2600 = sbr.rel (0) target = $region61
    $region60: #{tpu_custom_call.1} parent=1 // pred_region
      %s2602 = ssub.s32 64, 64
      %2603 = vsyncadd [#allocation13], %s2602
      %s2604 = sshll.u32 [#allocation12], 4
      %s2605 = int_to_ptr.vmem [resolvable:$true] %s2604
      %2610 = dma.vmem_to_hbm [thread:$0]  %s2605, 64, %s9, [#allocation13], 32, 32, 2
    $region61: #{tpu_custom_call.1} parent=1 // pred_fallthru
      _
    // Predicated region
    $region62: #{tpu_custom_call.1} parent=1 // pred_check
      _
    $region63: #{tpu_custom_call.1} parent=1 // pred_check_branch
      %2612 = sbr.rel (0) target = $region65
    $region64: #{tpu_custom_call.1} parent=1 // pred_region
      %2613 = dma.done [#allocation4], 128
    $region65: #{tpu_custom_call.1} parent=1 // pred_fallthru
      _
    // Predicated region
    $region66: #{tpu_custom_call.1} parent=1 // pred_check
      _
    $region67: #{tpu_custom_call.1} parent=1 // pred_check_branch
      %2615 = sbr.rel (0) target = $region69
    $region68: #{tpu_custom_call.1} parent=1 // pred_region
      %2616 = dma.done [#allocation13], 64
    $region69: #{tpu_custom_call.1} parent=1 // pred_fallthru
      _
    %2617 = vsyncpa [#allocation3], 1
    %2618 = vsyncpa [#allocation6], 1
    %2619 = vsyncpa [#allocation9], 1
    %2620 = vsyncpa [#allocation4], 1
    %2621 = vsyncpa [#allocation13], 1

</llo_original>
